<compile_context>
chip_gen: v7x
topology: tpu7x:2x2x1
jax: 0.10.0
libtpu: 0.0.40
codegen_flags: <defaults>
</compile_context>

<pallas_src>
import functools
import math

import jax
import jax.numpy as jnp
from jax import lax
from jax.experimental import pallas as pl
from jax.experimental.pallas import tpu as pltpu

_BIG = 1e30  # sentinel "no point" z value (a valid view z >= 1e30 would be dropped)


# ----------------------------------------------------------------------------
# Pixel-center NDC coordinates (PyTorch3D convention: +X left, +Y up).
# ----------------------------------------------------------------------------
def _pixel_centers_from_flat(flat_idx, H, W):
    row = flat_idx // W
    col = flat_idx - row * W
    y_rng = 2.0 * H / W if H > W else 2.0
    x_rng = 2.0 * W / H if W > H else 2.0
    iy = jnp.float32(H - 1) - row.astype(jnp.float32)   # row 0 -> +Y (top)
    ix = jnp.float32(W - 1) - col.astype(jnp.float32)   # col 0 -> +X (left)
    pix_y = jnp.float32(-y_rng / 2.0) + (2.0 * iy + 1.0) * jnp.float32(y_rng / (2.0 * H))
    pix_x = jnp.float32(-x_rng / 2.0) + (2.0 * ix + 1.0) * jnp.float32(x_rng / (2.0 * W))
    return pix_x.astype(jnp.float32), pix_y.astype(jnp.float32)


# ----------------------------------------------------------------------------
# world -> view -> NDC transform (hoisted out of the kernel; tiny elementwise
# pass, shared verbatim by wrapper and reference so values are identical).
# ----------------------------------------------------------------------------
def _transform_points_ndc(xyz, cam, eps):
    X, Y, Z = xyz[..., 0], xyz[..., 1], xyz[..., 2]
    vx = X * cam[0] + Y * cam[3] + Z * cam[6] + cam[9]
    vy = X * cam[1] + Y * cam[4] + Z * cam[7] + cam[10]
    vz = X * cam[2] + Y * cam[5] + Z * cam[8] + cam[11]
    eps_f = jnp.float32(eps)
    denom = jnp.where(vz >= 0.0, jnp.maximum(vz, eps_f), jnp.minimum(vz, -eps_f))
    inv = 1.0 / denom
    px = cam[12] * vx * inv + cam[14]
    py = cam[13] * vy * inv + cam[15]
    return jnp.stack([px, py, vz], axis=-1).astype(jnp.float32)   # (N, P, 3)


# ----------------------------------------------------------------------------
# Pallas kernel: one grid step = (batch element, pixel tile).
# ----------------------------------------------------------------------------
def _rasterize_kernel(pts_ref, pix_ref, occ_ref, idx_ref, zbuf_ref, dist_ref, *,
                      n_points, p_pad, points_per_pixel, radius, chunk, tile_hw):
    n = pl.program_id(0)
    t = pl.program_id(1)
    K = points_per_pixel
    n_chunks = tile_hw // chunk
    big = jnp.float32(_BIG)
    r2 = jnp.float32(radius * radius)

    # conservative per-tile occupancy, precomputed in the wrapper (SMEM scalar)
    occ = occ_ref[n * pl.num_programs(1) + t]

    @pl.when(occ == 0)
    def _():
        # empty-tile fast path: no point can touch this tile -> -1 everywhere
        idx_ref[...] = jnp.full((1, K, tile_hw), -1, jnp.int32)
        zbuf_ref[...] = jnp.full((1, K, tile_hw), -1.0, jnp.float32)
        dist_ref[...] = jnp.full((1, K, tile_hw), -1.0, jnp.float32)

    @pl.when(occ > 0)
    def _():
        # NDC-projected points as (p_pad, 1) columns: points live on sublanes.
        px = pts_ref[0, :, 0:1]
        py = pts_ref[0, :, 1:2]
        pz = pts_ref[0, :, 2:3]          # view-space z
        p_ids = lax.broadcasted_iota(jnp.int32, (p_pad, 1), 0)
        point_ok = (p_ids < n_points) & (pz >= 0.0)   # mask padding + behind camera
        base = n * n_points

        def do_chunk(lanes):
            pix_x = pix_ref[0:1, lanes]                 # (1, chunk)
            pix_y = pix_ref[1:2, lanes]
            dx = pix_x - px                             # (p_pad, chunk)
            dy = pix_y - py
            dist2 = dx * dx + dy * dy
            key = jnp.where((dist2 < r2) & point_ok, pz, big)

            for k in range(K):
                # argmin over the SUBLANE (point) axis
                zmin = jnp.min(key, axis=0, keepdims=True)              # (1, chunk)
                has = zmin < big
                eq = key == zmin                                        # computed once
                sel = jnp.min(jnp.where(eq, p_ids, p_pad),
                              axis=0, keepdims=True)                    # (1, chunk)
                sel_mask = p_ids == sel                                 # unique winner
                d_sel = jnp.sum(jnp.where(sel_mask, dist2, 0.0),
                                axis=0, keepdims=True)                  # (1, chunk)
                # lane-dense row stores
                idx_ref[0, k:k + 1, lanes] = jnp.where(has, base + sel, -1).astype(jnp.int32)
                zbuf_ref[0, k:k + 1, lanes] = jnp.where(has, zmin, -1.0)
                dist_ref[0, k:k + 1, lanes] = jnp.where(has, d_sel, -1.0)
                if k + 1 < K:                        # last knockout is dead code
                    key = jnp.where(sel_mask, big, key)

        if n_chunks == 1:
            do_chunk(slice(None))                    # fully static path
        else:
            @pl.loop(0, n_chunks)
            def _(c):
                lane0 = pl.multiple_of(c * chunk, 128)
                do_chunk(pl.ds(lane0, chunk))


# ----------------------------------------------------------------------------
# Tiling plan: lane chunk sized from p_pad to keep the K-selection working set
# in registers; BlockSpec tile large for DMA / grid-overhead amortisation;
# >= 2 pixel tiles when N == 1 so v7x's two TensorCores both get work.
# ----------------------------------------------------------------------------
def _round_up(x, m):
    return ((x + m - 1) // m) * m


def _plan_tiles(hw, p_pad, n_batch):
    # ~2 live (p_pad, chunk) f32 matrices (key, dist2) must fit the vreg file
    chunk = (16 * 128 * 8) // max(p_pad, 8)
    chunk = max(128, min(512, (chunk // 128) * 128))
    cap = 4096                              # double-buffered outputs stay < 1 MiB
    if n_batch == 1:
        cap = min(cap, max(chunk, _round_up(-(-hw // 2), chunk)))
    tile = max(chunk, min(cap, _round_up(hw, chunk)))
    hw_pad = _round_up(hw, tile)
    return chunk, tile, hw_pad, hw_pad // tile


# ----------------------------------------------------------------------------
# Wrapper: transform, occupancy table, padding, pallas_call, layout transpose.
# ----------------------------------------------------------------------------
def points_rasterizer_forward(xyz_points, cam_params, *, image_size=16,
                              radius=0.25, points_per_pixel=8, eps=1e-8):
    N, P, _ = xyz_points.shape
    if isinstance(image_size, (tuple, list)):
        H, W = int(image_size[0]), int(image_size[1])
    else:
        H = W = int(image_size)
    K = int(points_per_pixel)
    HW = H * W
    assert N * P < 2 ** 31, "packed point index (n*P + p) would overflow int32"

    # 1) transform once per point (plain XLA; not redone per pixel tile)
    pts_ndc = _transform_points_ndc(xyz_points.astype(jnp.float32),
                                    cam_params.astype(jnp.float32), eps)   # (N,P,3)

    p_pad = max(8, ((P + 7) // 8) * 8)
    chunk, tile_hw, hw_pad, num_tiles = _plan_tiles(HW, p_pad, N)

    # lane-dense pixel-center table: row 0 = x, row 1 = y (padded lanes far away)
    flat = jnp.arange(HW, dtype=jnp.int32)
    pix_x, pix_y = _pixel_centers_from_flat(flat, H, W)
    pix = jnp.stack([pix_x, pix_y], axis=0)                       # (2, HW)
    if hw_pad != HW:
        pix = jnp.pad(pix, ((0, 0), (0, hw_pad - HW)), constant_values=1e6)

    # 2) conservative per-(batch, tile) occupancy (coarse "bin" test):
    #    a hit needs |px - x0| < r and |py - y0| < r for some pixel in the tile.
    def _tile_lo_hi(v):
        lo = jnp.pad(v, (0, hw_pad - HW), constant_values=jnp.inf)
        hi = jnp.pad(v, (0, hw_pad - HW), constant_values=-jnp.inf)
        return (lo.reshape(num_tiles, tile_hw).min(axis=1),
                hi.reshape(num_tiles, tile_hw).max(axis=1))
    x_lo, x_hi = _tile_lo_hi(pix_x)
    y_lo, y_hi = _tile_lo_hi(pix_y)
    pxa, pya, pza = pts_ndc[..., 0], pts_ndc[..., 1], pts_ndc[..., 2]   # (N, P)
    r = jnp.float32(radius)
    in_x = (pxa[:, None, :] > (x_lo - r)[None, :, None]) & \
           (pxa[:, None, :] < (x_hi + r)[None, :, None])
    in_y = (pya[:, None, :] > (y_lo - r)[None, :, None]) & \
           (pya[:, None, :] < (y_hi + r)[None, :, None])
    occ = jnp.any((pza >= 0.0)[:, None, :] & in_x & in_y, axis=-1)
    occ = occ.astype(jnp.int32).reshape(N * num_tiles)

    # pad the point axis to a sublane multiple; padded points masked in-kernel
    if p_pad != P:
        pts_ndc = jnp.pad(pts_ndc, ((0, 0), (0, p_pad - P), (0, 0)))

    kernel = functools.partial(
        _rasterize_kernel, n_points=P, p_pad=p_pad, points_per_pixel=K,
        radius=float(radius), chunk=chunk, tile_hw=tile_hw)

    out_spec = pl.BlockSpec((1, K, tile_hw), lambda n, t: (n, 0, t))

    # tile-accurate VMEM accounting (no 32-MiB scoped-default assumption):
    # double-buffered pts + pixel-center + 3 output blocks + live temporaries.
    vmem_bytes = (2 * p_pad * 3 * 4
                  + 2 * 2 * tile_hw * 4
                  + 2 * 3 * K * tile_hw * 4
                  + 8 * p_pad * chunk * 4)
    vmem_limit = int(min(56 * 2 ** 20, max(8 * 2 ** 20, 4 * vmem_bytes)))

    n_chunks = tile_hw // chunk
    flops = N * num_tiles * n_chunks * (6 + 12 * K) * p_pad * chunk
    bytes_accessed = (pts_ndc.size + pix.size + occ.size) * 4 + 3 * N * K * hw_pad * 4

    idx, zbuf, dists = pl.pallas_call(
        kernel,
        out_shape=(
            jax.ShapeDtypeStruct((N, K, hw_pad), jnp.int32),
            jax.ShapeDtypeStruct((N, K, hw_pad), jnp.float32),
            jax.ShapeDtypeStruct((N, K, hw_pad), jnp.float32),
        ),
        grid=(N, num_tiles),
        in_specs=[
            pl.BlockSpec((1, p_pad, 3), lambda n, t: (n, 0, 0)),
            pl.BlockSpec((2, tile_hw), lambda n, t: (0, t)),
            pl.BlockSpec(memory_space=pltpu.MemorySpace.SMEM),
        ],
        out_specs=(out_spec, out_spec, out_spec),
        compiler_params=pltpu.CompilerParams(
            dimension_semantics=("parallel", "parallel"),
            vmem_limit_bytes=vmem_limit),
        cost_estimate=pl.CostEstimate(
            flops=flops, transcendentals=0, bytes_accessed=bytes_accessed),
    )(pts_ndc, pix, occ)

    # (N, K, HW) lane-dense kernel layout -> PyTorch3D (N, H, W, K)
    idx = jnp.transpose(idx[:, :, :HW], (0, 2, 1)).reshape(N, H, W, K)
    zbuf = jnp.transpose(zbuf[:, :, :HW], (0, 2, 1)).reshape(N, H, W, K)
    dists = jnp.transpose(dists[:, :, :HW], (0, 2, 1)).reshape(N, H, W, K)
    return idx, zbuf, dists


# ----------------------------------------------------------------------------
# Pure-JAX reference (same math, no Pallas) — correctness check.
# ----------------------------------------------------------------------------
def _reference_forward(xyz, cam, H, W, K, radius, eps):
    N, P, _ = xyz.shape
    pts = _transform_points_ndc(xyz.astype(jnp.float32), cam.astype(jnp.float32), eps)
    px, py, pz = pts[..., 0], pts[..., 1], pts[..., 2]            # (N, P)

    flat = jnp.arange(H * W, dtype=jnp.int32)
    pix_x, pix_y = _pixel_centers_from_flat(flat, H, W)           # (HW,)
    dx = pix_x[None, :, None] - px[:, None, :]                    # (N, HW, P)
    dy = pix_y[None, :, None] - py[:, None, :]
    dist2 = dx * dx + dy * dy
    valid = (dist2 < radius * radius) & (pz[:, None, :] >= 0.0)
    key = jnp.where(valid, jnp.broadcast_to(pz[:, None, :], dist2.shape), _BIG)

    p_ids = jnp.arange(P, dtype=jnp.int32).reshape(1, 1, P)
    base = (jnp.arange(N, dtype=jnp.int32) * P).reshape(N, 1, 1)
    idx_cols, z_cols, d_cols = [], [], []
    for _ in range(K):
        zmin = jnp.min(key, axis=2, keepdims=True)
        has = zmin < _BIG
        sel = jnp.min(jnp.where(key == zmin, p_ids, P), axis=2, keepdims=True)
        sel_mask = p_ids == sel
        d_sel = jnp.sum(jnp.where(sel_mask, dist2, 0.0), axis=2, keepdims=True)
        idx_cols.append(jnp.where(has, base + sel, -1).astype(jnp.int32))
        z_cols.append(jnp.where(has, zmin, -1.0))
        d_cols.append(jnp.where(has, d_sel, -1.0))
        key = jnp.where(sel_mask, _BIG, key)
    idx = jnp.concatenate(idx_cols, axis=2).reshape(N, H, W, K)
    zbuf = jnp.concatenate(z_cols, axis=2).reshape(N, H, W, K)
    dists = jnp.concatenate(d_cols, axis=2).reshape(N, H, W, K)
    return idx, zbuf, dists


if __name__ == "__main__":
    N, P = 2, 64
    H = W = 16
    K = 8
    radius = 0.25
    eps = 1e-8

    key = jax.random.PRNGKey(0)
    xyz = jax.random.uniform(key, (N, P, 3), jnp.float32, minval=-1.0, maxval=1.0)

    # deterministic camera: small rotation about Y, translated back along +Z,
    # unit focal length, centered principal point.
    th = 0.2
    R = [[math.cos(th), 0.0, math.sin(th)],
         [0.0, 1.0, 0.0],
         [-math.sin(th), 0.0, math.cos(th)]]
    T = [0.1, -0.05, 2.5]
    fx, fy, cx, cy = 1.0, 1.0, 0.0, 0.0
    cam_vec = jnp.array(sum(R, []) + T + [fx, fy, cx, cy], dtype=jnp.float32)  # (16,)

    idx, zbuf, dists = points_rasterizer_forward(
        xyz, cam_vec, image_size=H, radius=radius,
        points_per_pixel=K, eps=eps)
    jax.block_until_ready((idx, zbuf, dists))

    idx_r, zbuf_r, dists_r = _reference_forward(xyz, cam_vec, H, W, K, radius, eps)
    assert idx.shape == (N, H, W, K) and idx.dtype == jnp.int32
    assert zbuf.shape == (N, H, W, K) and zbuf.dtype == jnp.float32
    assert dists.shape == (N, H, W, K) and dists.dtype == jnp.float32
    assert bool(jnp.all(idx == idx_r)), "idx mismatch vs reference"
    assert bool(jnp.allclose(zbuf, zbuf_r, atol=1e-5, rtol=1e-5)), "zbuf mismatch"
    assert bool(jnp.allclose(dists, dists_r, atol=1e-5, rtol=1e-5)), "dists mismatch"

    print("KERNEL_OK")
</pallas_src>

<mosaic_0001>
module attributes {stable_mosaic.version = 11 : i64} {
  func.func @_rasterize_kernel(%arg0: i32, %arg1: i32, %arg2: memref<1x64x3xf32, #tpu.memory_space<vmem>>, %arg3: memref<2x256xf32, #tpu.memory_space<vmem>>, %arg4: memref<2xi32, #tpu.memory_space<smem>>, %arg5: memref<1x8x256xi32, #tpu.memory_space<vmem>>, %arg6: memref<1x8x256xf32, #tpu.memory_space<vmem>>, %arg7: memref<1x8x256xf32, #tpu.memory_space<vmem>>) attributes {dimension_semantics = [#tpu.dimension_semantics<parallel>, #tpu.dimension_semantics<parallel>], iteration_bounds = array<i64: 2, 1>, scalar_prefetch = 0 : i64, scratch_operands = 0 : i64, tpu.core_type = #tpu.core_type<tc>, window_params = [{transform_indices = @transform_0, window_bounds = array<i64: 1, 64, 3>}, {transform_indices = @transform_1, window_bounds = array<i64: 2, 256>}, {transform_indices = @transform_2, window_bounds = array<i64: 2>}, {transform_indices = @transform_3, window_bounds = array<i64: 1, 8, 256>}, {transform_indices = @transform_4, window_bounds = array<i64: 1, 8, 256>}, {transform_indices = @transform_5, window_bounds = array<i64: 1, 8, 256>}]} {
    %c1_i32 = arith.constant 1 : i32
    %0 = arith.muli %arg0, %c1_i32 : i32
    %1 = arith.addi %0, %arg1 : i32
    %2 = arith.index_cast %1 : i32 to index
    %3 = memref.load %arg4[%2] : memref<2xi32, #tpu.memory_space<smem>>
    %c0_i32 = arith.constant 0 : i32
    %4 = arith.cmpi eq, %3, %c0_i32 : i32
    %5 = arith.extui %4 : i1 to i32
    %c0_i32_0 = arith.constant 0 : i32
    %6 = arith.cmpi ne, %5, %c0_i32_0 : i32
    scf.if %6 {
      %c-1_i32 = arith.constant -1 : i32
      %10 = vector.broadcast %c-1_i32 : i32 to vector<1x8x256xi32>
      %c0 = arith.constant 0 : index
      %c0_4 = arith.constant 0 : index
      %c0_5 = arith.constant 0 : index
      %11 = vector.load %arg5[%c0, %c0_4, %c0_5] : memref<1x8x256xi32, #tpu.memory_space<vmem>>, vector<1x8x256xi32>
      tpu.vector_store %arg5[%c0, %c0_4, %c0_5], %10 {strides = array<i32>} : memref<1x8x256xi32, #tpu.memory_space<vmem>>, vector<1x8x256xi32>,
      %cst_6 = arith.constant -1.000000e+00 : f32
      %12 = vector.broadcast %cst_6 : f32 to vector<1x8x256xf32>
      %c0_7 = arith.constant 0 : index
      %c0_8 = arith.constant 0 : index
      %c0_9 = arith.constant 0 : index
      %13 = vector.load %arg6[%c0_7, %c0_8, %c0_9] : memref<1x8x256xf32, #tpu.memory_space<vmem>>, vector<1x8x256xf32>
      tpu.vector_store %arg6[%c0_7, %c0_8, %c0_9], %12 {strides = array<i32>} : memref<1x8x256xf32, #tpu.memory_space<vmem>>, vector<1x8x256xf32>,
      %cst_10 = arith.constant -1.000000e+00 : f32
      %14 = vector.broadcast %cst_10 : f32 to vector<1x8x256xf32>
      %c0_11 = arith.constant 0 : index
      %c0_12 = arith.constant 0 : index
      %c0_13 = arith.constant 0 : index
      %15 = vector.load %arg7[%c0_11, %c0_12, %c0_13] : memref<1x8x256xf32, #tpu.memory_space<vmem>>, vector<1x8x256xf32>
      tpu.vector_store %arg7[%c0_11, %c0_12, %c0_13], %14 {strides = array<i32>} : memref<1x8x256xf32, #tpu.memory_space<vmem>>, vector<1x8x256xf32>,
    } else {
    }
    %c0_i32_1 = arith.constant 0 : i32
    %7 = arith.cmpi sgt, %3, %c0_i32_1 : i32
    %8 = arith.extui %7 : i1 to i32
    %cst = arith.constant 6.250000e-02 : f32
    %cst_2 = arith.constant 1.000000e+30 : f32
    %c0_i32_3 = arith.constant 0 : i32
    %9 = arith.cmpi ne, %8, %c0_i32_3 : i32
    scf.if %9 {
      %c0 = arith.constant 0 : index
      %c0_4 = arith.constant 0 : index
      %c0_5 = arith.constant 0 : index
      %10 = vector.load %arg2[%c0, %c0_4, %c0_5] : memref<1x64x3xf32, #tpu.memory_space<vmem>>, vector<1x64x1xf32>
      %11 = vector.shape_cast %10 : vector<1x64x1xf32> to vector<64x1xf32>
      %c0_6 = arith.constant 0 : index
      %c0_7 = arith.constant 0 : index
      %c1 = arith.constant 1 : index
      %12 = vector.load %arg2[%c0_6, %c0_7, %c1] : memref<1x64x3xf32, #tpu.memory_space<vmem>>, vector<1x64x1xf32>
      %13 = vector.shape_cast %12 : vector<1x64x1xf32> to vector<64x1xf32>
      %c0_8 = arith.constant 0 : index
      %c0_9 = arith.constant 0 : index
      %c2 = arith.constant 2 : index
      %14 = vector.load %arg2[%c0_8, %c0_9, %c2] : memref<1x64x3xf32, #tpu.memory_space<vmem>>, vector<1x64x1xf32>
      %15 = vector.shape_cast %14 : vector<1x64x1xf32> to vector<64x1xf32>
      %16 = tpu.iota {dimensions = array<i32: 0>} : vector<64x1xi32>
      %c64_i32 = arith.constant 64 : i32
      %17 = vector.broadcast %c64_i32 : i32 to vector<64x1xi32>
      %18 = arith.cmpi slt, %16, %17 : vector<64x1xi32>
      %cst_10 = arith.constant 0.000000e+00 : f32
      %19 = vector.broadcast %cst_10 : f32 to vector<64x1xf32>
      %20 = arith.cmpf oge, %15, %19 : vector<64x1xf32>
      %21 = arith.andi %18, %20 : vector<64x1xi1>
      %c64_i32_11 = arith.constant 64 : i32
      %22 = arith.muli %arg0, %c64_i32_11 : i32
      %c0_12 = arith.constant 0 : index
      %c0_13 = arith.constant 0 : index
      %23 = vector.load %arg3[%c0_12, %c0_13] : memref<2x256xf32, #tpu.memory_space<vmem>>, vector<1x256xf32>
      %c1_14 = arith.constant 1 : index
      %c0_15 = arith.constant 0 : index
      %24 = vector.load %arg3[%c1_14, %c0_15] : memref<2x256xf32, #tpu.memory_space<vmem>>, vector<1x256xf32>
      %25 = vector.broadcast %23 : vector<1x256xf32> to vector<64x256xf32>
      %26 = vector.broadcast %11 : vector<64x1xf32> to vector<64x256xf32>
      %27 = arith.subf %25, %26 : vector<64x256xf32>
      %28 = vector.broadcast %24 : vector<1x256xf32> to vector<64x256xf32>
      %29 = vector.broadcast %13 : vector<64x1xf32> to vector<64x256xf32>
      %30 = arith.subf %28, %29 : vector<64x256xf32>
      %31 = arith.mulf %27, %27 : vector<64x256xf32>
      %32 = arith.mulf %30, %30 : vector<64x256xf32>
      %33 = arith.addf %31, %32 : vector<64x256xf32>
      %34 = vector.broadcast %cst : f32 to vector<64x256xf32>
      %35 = arith.cmpf olt, %33, %34 : vector<64x256xf32>
      %36 = vector.broadcast %21 : vector<64x1xi1> to vector<64x256xi1>
      %37 = arith.andi %35, %36 : vector<64x256xi1>
      %38 = vector.shape_cast %15 : vector<64x1xf32> to vector<64x1xf32>
      %39 = vector.broadcast %38 : vector<64x1xf32> to vector<64x256xf32>
      %40 = vector.broadcast %cst_2 : f32 to vector<64x256xf32>
      %41 = arith.select %37, %39, %40 : vector<64x256xi1>, vector<64x256xf32>
      %cst_16 = arith.constant dense<0x7F800000> : vector<256xf32>
      %42 = vector.multi_reduction <minimumf>, %41, %cst_16 [0] : vector<64x256xf32> to vector<256xf32>
      %43 = vector.shape_cast %42 : vector<256xf32> to vector<1x256xf32>
      %44 = vector.broadcast %cst_2 : f32 to vector<1x256xf32>
      %45 = arith.cmpf olt, %43, %44 : vector<1x256xf32>
      %46 = vector.broadcast %43 : vector<1x256xf32> to vector<64x256xf32>
      %47 = arith.cmpf oeq, %41, %46 : vector<64x256xf32>
      %c64_i32_17 = arith.constant 64 : i32
      %48 = vector.shape_cast %16 : vector<64x1xi32> to vector<64x1xi32>
      %49 = vector.broadcast %48 : vector<64x1xi32> to vector<64x256xi32>
      %50 = vector.broadcast %c64_i32_17 : i32 to vector<64x256xi32>
      %51 = arith.select %47, %49, %50 : vector<64x256xi1>, vector<64x256xi32>
      %cst_18 = arith.constant dense<2147483647> : vector<256xi32>
      %52 = vector.multi_reduction <minsi>, %51, %cst_18 [0] : vector<64x256xi32> to vector<256xi32>
      %53 = vector.shape_cast %52 : vector<256xi32> to vector<1x256xi32>
      %54 = vector.broadcast %16 : vector<64x1xi32> to vector<64x256xi32>
      %55 = vector.broadcast %53 : vector<1x256xi32> to vector<64x256xi32>
      %56 = arith.cmpi eq, %54, %55 : vector<64x256xi32>
      %cst_19 = arith.constant 0.000000e+00 : f32
      %57 = vector.broadcast %cst_19 : f32 to vector<64x256xf32>
      %58 = arith.select %56, %33, %57 : vector<64x256xi1>, vector<64x256xf32>
      %cst_20 = arith.constant dense<0.000000e+00> : vector<256xf32>
      %59 = vector.multi_reduction <add>, %58, %cst_20 [0] : vector<64x256xf32> to vector<256xf32>
      %60 = vector.shape_cast %59 : vector<256xf32> to vector<1x256xf32>
      %61 = vector.broadcast %22 : i32 to vector<1x256xi32>
      %62 = arith.addi %61, %53 : vector<1x256xi32>
      %c-1_i32 = arith.constant -1 : i32
      %63 = vector.broadcast %c-1_i32 : i32 to vector<1x256xi32>
      %64 = arith.select %45, %62, %63 : vector<1x256xi1>, vector<1x256xi32>
      %c0_21 = arith.constant 0 : index
      %c0_22 = arith.constant 0 : index
      %c0_23 = arith.constant 0 : index
      %65 = vector.load %arg5[%c0_21, %c0_22, %c0_23] : memref<1x8x256xi32, #tpu.memory_space<vmem>>, vector<1x1x256xi32>
      %66 = vector.shape_cast %65 : vector<1x1x256xi32> to vector<1x256xi32>
      %67 = vector.shape_cast %64 : vector<1x256xi32> to vector<1x1x256xi32>
      tpu.vector_store %arg5[%c0_21, %c0_22, %c0_23], %67 {strides = array<i32>} : memref<1x8x256xi32, #tpu.memory_space<vmem>>, vector<1x1x256xi32>,
      %cst_24 = arith.constant -1.000000e+00 : f32
      %68 = vector.broadcast %cst_24 : f32 to vector<1x256xf32>
      %69 = arith.select %45, %43, %68 : vector<1x256xi1>, vector<1x256xf32>
      %c0_25 = arith.constant 0 : index
      %c0_26 = arith.constant 0 : index
      %c0_27 = arith.constant 0 : index
      %70 = vector.load %arg6[%c0_25, %c0_26, %c0_27] : memref<1x8x256xf32, #tpu.memory_space<vmem>>, vector<1x1x256xf32>
      %71 = vector.shape_cast %70 : vector<1x1x256xf32> to vector<1x256xf32>
      %72 = vector.shape_cast %69 : vector<1x256xf32> to vector<1x1x256xf32>
      tpu.vector_store %arg6[%c0_25, %c0_26, %c0_27], %72 {strides = array<i32>} : memref<1x8x256xf32, #tpu.memory_space<vmem>>, vector<1x1x256xf32>,
      %cst_28 = arith.constant -1.000000e+00 : f32
      %73 = vector.broadcast %cst_28 : f32 to vector<1x256xf32>
      %74 = arith.select %45, %60, %73 : vector<1x256xi1>, vector<1x256xf32>
      %c0_29 = arith.constant 0 : index
      %c0_30 = arith.constant 0 : index
      %c0_31 = arith.constant 0 : index
      %75 = vector.load %arg7[%c0_29, %c0_30, %c0_31] : memref<1x8x256xf32, #tpu.memory_space<vmem>>, vector<1x1x256xf32>
      %76 = vector.shape_cast %75 : vector<1x1x256xf32> to vector<1x256xf32>
      %77 = vector.shape_cast %74 : vector<1x256xf32> to vector<1x1x256xf32>
      tpu.vector_store %arg7[%c0_29, %c0_30, %c0_31], %77 {strides = array<i32>} : memref<1x8x256xf32, #tpu.memory_space<vmem>>, vector<1x1x256xf32>,
      %78 = vector.broadcast %cst_2 : f32 to vector<64x256xf32>
      %79 = arith.select %56, %78, %41 : vector<64x256xi1>, vector<64x256xf32>
      %cst_32 = arith.constant dense<0x7F800000> : vector<256xf32>
      %80 = vector.multi_reduction <minimumf>, %79, %cst_32 [0] : vector<64x256xf32> to vector<256xf32>
      %81 = vector.shape_cast %80 : vector<256xf32> to vector<1x256xf32>
      %82 = vector.broadcast %cst_2 : f32 to vector<1x256xf32>
      %83 = arith.cmpf olt, %81, %82 : vector<1x256xf32>
      %84 = vector.broadcast %81 : vector<1x256xf32> to vector<64x256xf32>
      %85 = arith.cmpf oeq, %79, %84 : vector<64x256xf32>
      %c64_i32_33 = arith.constant 64 : i32
      %86 = vector.shape_cast %16 : vector<64x1xi32> to vector<64x1xi32>
      %87 = vector.broadcast %86 : vector<64x1xi32> to vector<64x256xi32>
      %88 = vector.broadcast %c64_i32_33 : i32 to vector<64x256xi32>
      %89 = arith.select %85, %87, %88 : vector<64x256xi1>, vector<64x256xi32>
      %cst_34 = arith.constant dense<2147483647> : vector<256xi32>
      %90 = vector.multi_reduction <minsi>, %89, %cst_34 [0] : vector<64x256xi32> to vector<256xi32>
      %91 = vector.shape_cast %90 : vector<256xi32> to vector<1x256xi32>
      %92 = vector.broadcast %16 : vector<64x1xi32> to vector<64x256xi32>
      %93 = vector.broadcast %91 : vector<1x256xi32> to vector<64x256xi32>
      %94 = arith.cmpi eq, %92, %93 : vector<64x256xi32>
      %cst_35 = arith.constant 0.000000e+00 : f32
      %95 = vector.broadcast %cst_35 : f32 to vector<64x256xf32>
      %96 = arith.select %94, %33, %95 : vector<64x256xi1>, vector<64x256xf32>
      %cst_36 = arith.constant dense<0.000000e+00> : vector<256xf32>
      %97 = vector.multi_reduction <add>, %96, %cst_36 [0] : vector<64x256xf32> to vector<256xf32>
      %98 = vector.shape_cast %97 : vector<256xf32> to vector<1x256xf32>
      %99 = vector.broadcast %22 : i32 to vector<1x256xi32>
      %100 = arith.addi %99, %91 : vector<1x256xi32>
      %c-1_i32_37 = arith.constant -1 : i32
      %101 = vector.broadcast %c-1_i32_37 : i32 to vector<1x256xi32>
      %102 = arith.select %83, %100, %101 : vector<1x256xi1>, vector<1x256xi32>
      %c0_38 = arith.constant 0 : index
      %c1_39 = arith.constant 1 : index
      %c0_40 = arith.constant 0 : index
      %103 = vector.load %arg5[%c0_38, %c1_39, %c0_40] : memref<1x8x256xi32, #tpu.memory_space<vmem>>, vector<1x1x256xi32>
      %104 = vector.shape_cast %103 : vector<1x1x256xi32> to vector<1x256xi32>
      %105 = vector.shape_cast %102 : vector<1x256xi32> to vector<1x1x256xi32>
      tpu.vector_store %arg5[%c0_38, %c1_39, %c0_40], %105 {strides = array<i32>} : memref<1x8x256xi32, #tpu.memory_space<vmem>>, vector<1x1x256xi32>,
      %cst_41 = arith.constant -1.000000e+00 : f32
      %106 = vector.broadcast %cst_41 : f32 to vector<1x256xf32>
      %107 = arith.select %83, %81, %106 : vector<1x256xi1>, vector<1x256xf32>
      %c0_42 = arith.constant 0 : index
      %c1_43 = arith.constant 1 : index
      %c0_44 = arith.constant 0 : index
      %108 = vector.load %arg6[%c0_42, %c1_43, %c0_44] : memref<1x8x256xf32, #tpu.memory_space<vmem>>, vector<1x1x256xf32>
      %109 = vector.shape_cast %108 : vector<1x1x256xf32> to vector<1x256xf32>
      %110 = vector.shape_cast %107 : vector<1x256xf32> to vector<1x1x256xf32>
      tpu.vector_store %arg6[%c0_42, %c1_43, %c0_44], %110 {strides = array<i32>} : memref<1x8x256xf32, #tpu.memory_space<vmem>>, vector<1x1x256xf32>,
      %cst_45 = arith.constant -1.000000e+00 : f32
      %111 = vector.broadcast %cst_45 : f32 to vector<1x256xf32>
      %112 = arith.select %83, %98, %111 : vector<1x256xi1>, vector<1x256xf32>
      %c0_46 = arith.constant 0 : index
      %c1_47 = arith.constant 1 : index
      %c0_48 = arith.constant 0 : index
      %113 = vector.load %arg7[%c0_46, %c1_47, %c0_48] : memref<1x8x256xf32, #tpu.memory_space<vmem>>, vector<1x1x256xf32>
      %114 = vector.shape_cast %113 : vector<1x1x256xf32> to vector<1x256xf32>
      %115 = vector.shape_cast %112 : vector<1x256xf32> to vector<1x1x256xf32>
      tpu.vector_store %arg7[%c0_46, %c1_47, %c0_48], %115 {strides = array<i32>} : memref<1x8x256xf32, #tpu.memory_space<vmem>>, vector<1x1x256xf32>,
      %116 = vector.broadcast %cst_2 : f32 to vector<64x256xf32>
      %117 = arith.select %94, %116, %79 : vector<64x256xi1>, vector<64x256xf32>
      %cst_49 = arith.constant dense<0x7F800000> : vector<256xf32>
      %118 = vector.multi_reduction <minimumf>, %117, %cst_49 [0] : vector<64x256xf32> to vector<256xf32>
      %119 = vector.shape_cast %118 : vector<256xf32> to vector<1x256xf32>
      %120 = vector.broadcast %cst_2 : f32 to vector<1x256xf32>
      %121 = arith.cmpf olt, %119, %120 : vector<1x256xf32>
      %122 = vector.broadcast %119 : vector<1x256xf32> to vector<64x256xf32>
      %123 = arith.cmpf oeq, %117, %122 : vector<64x256xf32>
      %c64_i32_50 = arith.constant 64 : i32
      %124 = vector.shape_cast %16 : vector<64x1xi32> to vector<64x1xi32>
      %125 = vector.broadcast %124 : vector<64x1xi32> to vector<64x256xi32>
      %126 = vector.broadcast %c64_i32_50 : i32 to vector<64x256xi32>
      %127 = arith.select %123, %125, %126 : vector<64x256xi1>, vector<64x256xi32>
      %cst_51 = arith.constant dense<2147483647> : vector<256xi32>
      %128 = vector.multi_reduction <minsi>, %127, %cst_51 [0] : vector<64x256xi32> to vector<256xi32>
      %129 = vector.shape_cast %128 : vector<256xi32> to vector<1x256xi32>
      %130 = vector.broadcast %16 : vector<64x1xi32> to vector<64x256xi32>
      %131 = vector.broadcast %129 : vector<1x256xi32> to vector<64x256xi32>
      %132 = arith.cmpi eq, %130, %131 : vector<64x256xi32>
      %cst_52 = arith.constant 0.000000e+00 : f32
      %133 = vector.broadcast %cst_52 : f32 to vector<64x256xf32>
      %134 = arith.select %132, %33, %133 : vector<64x256xi1>, vector<64x256xf32>
      %cst_53 = arith.constant dense<0.000000e+00> : vector<256xf32>
      %135 = vector.multi_reduction <add>, %134, %cst_53 [0] : vector<64x256xf32> to vector<256xf32>
      %136 = vector.shape_cast %135 : vector<256xf32> to vector<1x256xf32>
      %137 = vector.broadcast %22 : i32 to vector<1x256xi32>
      %138 = arith.addi %137, %129 : vector<1x256xi32>
      %c-1_i32_54 = arith.constant -1 : i32
      %139 = vector.broadcast %c-1_i32_54 : i32 to vector<1x256xi32>
      %140 = arith.select %121, %138, %139 : vector<1x256xi1>, vector<1x256xi32>
      %c0_55 = arith.constant 0 : index
      %c2_56 = arith.constant 2 : index
      %c0_57 = arith.constant 0 : index
      %141 = vector.load %arg5[%c0_55, %c2_56, %c0_57] : memref<1x8x256xi32, #tpu.memory_space<vmem>>, vector<1x1x256xi32>
      %142 = vector.shape_cast %141 : vector<1x1x256xi32> to vector<1x256xi32>
      %143 = vector.shape_cast %140 : vector<1x256xi32> to vector<1x1x256xi32>
      tpu.vector_store %arg5[%c0_55, %c2_56, %c0_57], %143 {strides = array<i32>} : memref<1x8x256xi32, #tpu.memory_space<vmem>>, vector<1x1x256xi32>,
      %cst_58 = arith.constant -1.000000e+00 : f32
      %144 = vector.broadcast %cst_58 : f32 to vector<1x256xf32>
      %145 = arith.select %121, %119, %144 : vector<1x256xi1>, vector<1x256xf32>
      %c0_59 = arith.constant 0 : index
      %c2_60 = arith.constant 2 : index
      %c0_61 = arith.constant 0 : index
      %146 = vector.load %arg6[%c0_59, %c2_60, %c0_61] : memref<1x8x256xf32, #tpu.memory_space<vmem>>, vector<1x1x256xf32>
      %147 = vector.shape_cast %146 : vector<1x1x256xf32> to vector<1x256xf32>
      %148 = vector.shape_cast %145 : vector<1x256xf32> to vector<1x1x256xf32>
      tpu.vector_store %arg6[%c0_59, %c2_60, %c0_61], %148 {strides = array<i32>} : memref<1x8x256xf32, #tpu.memory_space<vmem>>, vector<1x1x256xf32>,
      %cst_62 = arith.constant -1.000000e+00 : f32
      %149 = vector.broadcast %cst_62 : f32 to vector<1x256xf32>
      %150 = arith.select %121, %136, %149 : vector<1x256xi1>, vector<1x256xf32>
      %c0_63 = arith.constant 0 : index
      %c2_64 = arith.constant 2 : index
      %c0_65 = arith.constant 0 : index
      %151 = vector.load %arg7[%c0_63, %c2_64, %c0_65] : memref<1x8x256xf32, #tpu.memory_space<vmem>>, vector<1x1x256xf32>
      %152 = vector.shape_cast %151 : vector<1x1x256xf32> to vector<1x256xf32>
      %153 = vector.shape_cast %150 : vector<1x256xf32> to vector<1x1x256xf32>
      tpu.vector_store %arg7[%c0_63, %c2_64, %c0_65], %153 {strides = array<i32>} : memref<1x8x256xf32, #tpu.memory_space<vmem>>, vector<1x1x256xf32>,
      %154 = vector.broadcast %cst_2 : f32 to vector<64x256xf32>
      %155 = arith.select %132, %154, %117 : vector<64x256xi1>, vector<64x256xf32>
      %cst_66 = arith.constant dense<0x7F800000> : vector<256xf32>
      %156 = vector.multi_reduction <minimumf>, %155, %cst_66 [0] : vector<64x256xf32> to vector<256xf32>
      %157 = vector.shape_cast %156 : vector<256xf32> to vector<1x256xf32>
      %158 = vector.broadcast %cst_2 : f32 to vector<1x256xf32>
      %159 = arith.cmpf olt, %157, %158 : vector<1x256xf32>
      %160 = vector.broadcast %157 : vector<1x256xf32> to vector<64x256xf32>
      %161 = arith.cmpf oeq, %155, %160 : vector<64x256xf32>
      %c64_i32_67 = arith.constant 64 : i32
      %162 = vector.shape_cast %16 : vector<64x1xi32> to vector<64x1xi32>
      %163 = vector.broadcast %162 : vector<64x1xi32> to vector<64x256xi32>
      %164 = vector.broadcast %c64_i32_67 : i32 to vector<64x256xi32>
      %165 = arith.select %161, %163, %164 : vector<64x256xi1>, vector<64x256xi32>
      %cst_68 = arith.constant dense<2147483647> : vector<256xi32>
      %166 = vector.multi_reduction <minsi>, %165, %cst_68 [0] : vector<64x256xi32> to vector<256xi32>
      %167 = vector.shape_cast %166 : vector<256xi32> to vector<1x256xi32>
      %168 = vector.broadcast %16 : vector<64x1xi32> to vector<64x256xi32>
      %169 = vector.broadcast %167 : vector<1x256xi32> to vector<64x256xi32>
      %170 = arith.cmpi eq, %168, %169 : vector<64x256xi32>
      %cst_69 = arith.constant 0.000000e+00 : f32
      %171 = vector.broadcast %cst_69 : f32 to vector<64x256xf32>
      %172 = arith.select %170, %33, %171 : vector<64x256xi1>, vector<64x256xf32>
      %cst_70 = arith.constant dense<0.000000e+00> : vector<256xf32>
      %173 = vector.multi_reduction <add>, %172, %cst_70 [0] : vector<64x256xf32> to vector<256xf32>
      %174 = vector.shape_cast %173 : vector<256xf32> to vector<1x256xf32>
      %175 = vector.broadcast %22 : i32 to vector<1x256xi32>
      %176 = arith.addi %175, %167 : vector<1x256xi32>
      %c-1_i32_71 = arith.constant -1 : i32
      %177 = vector.broadcast %c-1_i32_71 : i32 to vector<1x256xi32>
      %178 = arith.select %159, %176, %177 : vector<1x256xi1>, vector<1x256xi32>
      %c0_72 = arith.constant 0 : index
      %c3 = arith.constant 3 : index
      %c0_73 = arith.constant 0 : index
      %179 = vector.load %arg5[%c0_72, %c3, %c0_73] : memref<1x8x256xi32, #tpu.memory_space<vmem>>, vector<1x1x256xi32>
      %180 = vector.shape_cast %179 : vector<1x1x256xi32> to vector<1x256xi32>
      %181 = vector.shape_cast %178 : vector<1x256xi32> to vector<1x1x256xi32>
      tpu.vector_store %arg5[%c0_72, %c3, %c0_73], %181 {strides = array<i32>} : memref<1x8x256xi32, #tpu.memory_space<vmem>>, vector<1x1x256xi32>,
      %cst_74 = arith.constant -1.000000e+00 : f32
      %182 = vector.broadcast %cst_74 : f32 to vector<1x256xf32>
      %183 = arith.select %159, %157, %182 : vector<1x256xi1>, vector<1x256xf32>
      %c0_75 = arith.constant 0 : index
      %c3_76 = arith.constant 3 : index
      %c0_77 = arith.constant 0 : index
      %184 = vector.load %arg6[%c0_75, %c3_76, %c0_77] : memref<1x8x256xf32, #tpu.memory_space<vmem>>, vector<1x1x256xf32>
      %185 = vector.shape_cast %184 : vector<1x1x256xf32> to vector<1x256xf32>
      %186 = vector.shape_cast %183 : vector<1x256xf32> to vector<1x1x256xf32>
      tpu.vector_store %arg6[%c0_75, %c3_76, %c0_77], %186 {strides = array<i32>} : memref<1x8x256xf32, #tpu.memory_space<vmem>>, vector<1x1x256xf32>,
      %cst_78 = arith.constant -1.000000e+00 : f32
      %187 = vector.broadcast %cst_78 : f32 to vector<1x256xf32>
      %188 = arith.select %159, %174, %187 : vector<1x256xi1>, vector<1x256xf32>
      %c0_79 = arith.constant 0 : index
      %c3_80 = arith.constant 3 : index
      %c0_81 = arith.constant 0 : index
      %189 = vector.load %arg7[%c0_79, %c3_80, %c0_81] : memref<1x8x256xf32, #tpu.memory_space<vmem>>, vector<1x1x256xf32>
      %190 = vector.shape_cast %189 : vector<1x1x256xf32> to vector<1x256xf32>
      %191 = vector.shape_cast %188 : vector<1x256xf32> to vector<1x1x256xf32>
      tpu.vector_store %arg7[%c0_79, %c3_80, %c0_81], %191 {strides = array<i32>} : memref<1x8x256xf32, #tpu.memory_space<vmem>>, vector<1x1x256xf32>,
      %192 = vector.broadcast %cst_2 : f32 to vector<64x256xf32>
      %193 = arith.select %170, %192, %155 : vector<64x256xi1>, vector<64x256xf32>
      %cst_82 = arith.constant dense<0x7F800000> : vector<256xf32>
      %194 = vector.multi_reduction <minimumf>, %193, %cst_82 [0] : vector<64x256xf32> to vector<256xf32>
      %195 = vector.shape_cast %194 : vector<256xf32> to vector<1x256xf32>
      %196 = vector.broadcast %cst_2 : f32 to vector<1x256xf32>
      %197 = arith.cmpf olt, %195, %196 : vector<1x256xf32>
      %198 = vector.broadcast %195 : vector<1x256xf32> to vector<64x256xf32>
      %199 = arith.cmpf oeq, %193, %198 : vector<64x256xf32>
      %c64_i32_83 = arith.constant 64 : i32
      %200 = vector.shape_cast %16 : vector<64x1xi32> to vector<64x1xi32>
      %201 = vector.broadcast %200 : vector<64x1xi32> to vector<64x256xi32>
      %202 = vector.broadcast %c64_i32_83 : i32 to vector<64x256xi32>
      %203 = arith.select %199, %201, %202 : vector<64x256xi1>, vector<64x256xi32>
      %cst_84 = arith.constant dense<2147483647> : vector<256xi32>
      %204 = vector.multi_reduction <minsi>, %203, %cst_84 [0] : vector<64x256xi32> to vector<256xi32>
      %205 = vector.shape_cast %204 : vector<256xi32> to vector<1x256xi32>
      %206 = vector.broadcast %16 : vector<64x1xi32> to vector<64x256xi32>
      %207 = vector.broadcast %205 : vector<1x256xi32> to vector<64x256xi32>
      %208 = arith.cmpi eq, %206, %207 : vector<64x256xi32>
      %cst_85 = arith.constant 0.000000e+00 : f32
      %209 = vector.broadcast %cst_85 : f32 to vector<64x256xf32>
      %210 = arith.select %208, %33, %209 : vector<64x256xi1>, vector<64x256xf32>
      %cst_86 = arith.constant dense<0.000000e+00> : vector<256xf32>
      %211 = vector.multi_reduction <add>, %210, %cst_86 [0] : vector<64x256xf32> to vector<256xf32>
      %212 = vector.shape_cast %211 : vector<256xf32> to vector<1x256xf32>
      %213 = vector.broadcast %22 : i32 to vector<1x256xi32>
      %214 = arith.addi %213, %205 : vector<1x256xi32>
      %c-1_i32_87 = arith.constant -1 : i32
      %215 = vector.broadcast %c-1_i32_87 : i32 to vector<1x256xi32>
      %216 = arith.select %197, %214, %215 : vector<1x256xi1>, vector<1x256xi32>
      %c0_88 = arith.constant 0 : index
      %c4 = arith.constant 4 : index
      %c0_89 = arith.constant 0 : index
      %217 = vector.load %arg5[%c0_88, %c4, %c0_89] : memref<1x8x256xi32, #tpu.memory_space<vmem>>, vector<1x1x256xi32>
      %218 = vector.shape_cast %217 : vector<1x1x256xi32> to vector<1x256xi32>
      %219 = vector.shape_cast %216 : vector<1x256xi32> to vector<1x1x256xi32>
      tpu.vector_store %arg5[%c0_88, %c4, %c0_89], %219 {strides = array<i32>} : memref<1x8x256xi32, #tpu.memory_space<vmem>>, vector<1x1x256xi32>,
      %cst_90 = arith.constant -1.000000e+00 : f32
      %220 = vector.broadcast %cst_90 : f32 to vector<1x256xf32>
      %221 = arith.select %197, %195, %220 : vector<1x256xi1>, vector<1x256xf32>
      %c0_91 = arith.constant 0 : index
      %c4_92 = arith.constant 4 : index
      %c0_93 = arith.constant 0 : index
      %222 = vector.load %arg6[%c0_91, %c4_92, %c0_93] : memref<1x8x256xf32, #tpu.memory_space<vmem>>, vector<1x1x256xf32>
      %223 = vector.shape_cast %222 : vector<1x1x256xf32> to vector<1x256xf32>
      %224 = vector.shape_cast %221 : vector<1x256xf32> to vector<1x1x256xf32>
      tpu.vector_store %arg6[%c0_91, %c4_92, %c0_93], %224 {strides = array<i32>} : memref<1x8x256xf32, #tpu.memory_space<vmem>>, vector<1x1x256xf32>,
      %cst_94 = arith.constant -1.000000e+00 : f32
      %225 = vector.broadcast %cst_94 : f32 to vector<1x256xf32>
      %226 = arith.select %197, %212, %225 : vector<1x256xi1>, vector<1x256xf32>
      %c0_95 = arith.constant 0 : index
      %c4_96 = arith.constant 4 : index
      %c0_97 = arith.constant 0 : index
      %227 = vector.load %arg7[%c0_95, %c4_96, %c0_97] : memref<1x8x256xf32, #tpu.memory_space<vmem>>, vector<1x1x256xf32>
      %228 = vector.shape_cast %227 : vector<1x1x256xf32> to vector<1x256xf32>
      %229 = vector.shape_cast %226 : vector<1x256xf32> to vector<1x1x256xf32>
      tpu.vector_store %arg7[%c0_95, %c4_96, %c0_97], %229 {strides = array<i32>} : memref<1x8x256xf32, #tpu.memory_space<vmem>>, vector<1x1x256xf32>,
      %230 = vector.broadcast %cst_2 : f32 to vector<64x256xf32>
      %231 = arith.select %208, %230, %193 : vector<64x256xi1>, vector<64x256xf32>
      %cst_98 = arith.constant dense<0x7F800000> : vector<256xf32>
      %232 = vector.multi_reduction <minimumf>, %231, %cst_98 [0] : vector<64x256xf32> to vector<256xf32>
      %233 = vector.shape_cast %232 : vector<256xf32> to vector<1x256xf32>
      %234 = vector.broadcast %cst_2 : f32 to vector<1x256xf32>
      %235 = arith.cmpf olt, %233, %234 : vector<1x256xf32>
      %236 = vector.broadcast %233 : vector<1x256xf32> to vector<64x256xf32>
      %237 = arith.cmpf oeq, %231, %236 : vector<64x256xf32>
      %c64_i32_99 = arith.constant 64 : i32
      %238 = vector.shape_cast %16 : vector<64x1xi32> to vector<64x1xi32>
      %239 = vector.broadcast %238 : vector<64x1xi32> to vector<64x256xi32>
      %240 = vector.broadcast %c64_i32_99 : i32 to vector<64x256xi32>
      %241 = arith.select %237, %239, %240 : vector<64x256xi1>, vector<64x256xi32>
      %cst_100 = arith.constant dense<2147483647> : vector<256xi32>
      %242 = vector.multi_reduction <minsi>, %241, %cst_100 [0] : vector<64x256xi32> to vector<256xi32>
      %243 = vector.shape_cast %242 : vector<256xi32> to vector<1x256xi32>
      %244 = vector.broadcast %16 : vector<64x1xi32> to vector<64x256xi32>
      %245 = vector.broadcast %243 : vector<1x256xi32> to vector<64x256xi32>
      %246 = arith.cmpi eq, %244, %245 : vector<64x256xi32>
      %cst_101 = arith.constant 0.000000e+00 : f32
      %247 = vector.broadcast %cst_101 : f32 to vector<64x256xf32>
      %248 = arith.select %246, %33, %247 : vector<64x256xi1>, vector<64x256xf32>
      %cst_102 = arith.constant dense<0.000000e+00> : vector<256xf32>
      %249 = vector.multi_reduction <add>, %248, %cst_102 [0] : vector<64x256xf32> to vector<256xf32>
      %250 = vector.shape_cast %249 : vector<256xf32> to vector<1x256xf32>
      %251 = vector.broadcast %22 : i32 to vector<1x256xi32>
      %252 = arith.addi %251, %243 : vector<1x256xi32>
      %c-1_i32_103 = arith.constant -1 : i32
      %253 = vector.broadcast %c-1_i32_103 : i32 to vector<1x256xi32>
      %254 = arith.select %235, %252, %253 : vector<1x256xi1>, vector<1x256xi32>
      %c0_104 = arith.constant 0 : index
      %c5 = arith.constant 5 : index
      %c0_105 = arith.constant 0 : index
      %255 = vector.load %arg5[%c0_104, %c5, %c0_105] : memref<1x8x256xi32, #tpu.memory_space<vmem>>, vector<1x1x256xi32>
      %256 = vector.shape_cast %255 : vector<1x1x256xi32> to vector<1x256xi32>
      %257 = vector.shape_cast %254 : vector<1x256xi32> to vector<1x1x256xi32>
      tpu.vector_store %arg5[%c0_104, %c5, %c0_105], %257 {strides = array<i32>} : memref<1x8x256xi32, #tpu.memory_space<vmem>>, vector<1x1x256xi32>,
      %cst_106 = arith.constant -1.000000e+00 : f32
      %258 = vector.broadcast %cst_106 : f32 to vector<1x256xf32>
      %259 = arith.select %235, %233, %258 : vector<1x256xi1>, vector<1x256xf32>
      %c0_107 = arith.constant 0 : index
      %c5_108 = arith.constant 5 : index
      %c0_109 = arith.constant 0 : index
      %260 = vector.load %arg6[%c0_107, %c5_108, %c0_109] : memref<1x8x256xf32, #tpu.memory_space<vmem>>, vector<1x1x256xf32>
      %261 = vector.shape_cast %260 : vector<1x1x256xf32> to vector<1x256xf32>
      %262 = vector.shape_cast %259 : vector<1x256xf32> to vector<1x1x256xf32>
      tpu.vector_store %arg6[%c0_107, %c5_108, %c0_109], %262 {strides = array<i32>} : memref<1x8x256xf32, #tpu.memory_space<vmem>>, vector<1x1x256xf32>,
      %cst_110 = arith.constant -1.000000e+00 : f32
      %263 = vector.broadcast %cst_110 : f32 to vector<1x256xf32>
      %264 = arith.select %235, %250, %263 : vector<1x256xi1>, vector<1x256xf32>
      %c0_111 = arith.constant 0 : index
      %c5_112 = arith.constant 5 : index
      %c0_113 = arith.constant 0 : index
      %265 = vector.load %arg7[%c0_111, %c5_112, %c0_113] : memref<1x8x256xf32, #tpu.memory_space<vmem>>, vector<1x1x256xf32>
      %266 = vector.shape_cast %265 : vector<1x1x256xf32> to vector<1x256xf32>
      %267 = vector.shape_cast %264 : vector<1x256xf32> to vector<1x1x256xf32>
      tpu.vector_store %arg7[%c0_111, %c5_112, %c0_113], %267 {strides = array<i32>} : memref<1x8x256xf32, #tpu.memory_space<vmem>>, vector<1x1x256xf32>,
      %268 = vector.broadcast %cst_2 : f32 to vector<64x256xf32>
      %269 = arith.select %246, %268, %231 : vector<64x256xi1>, vector<64x256xf32>
      %cst_114 = arith.constant dense<0x7F800000> : vector<256xf32>
      %270 = vector.multi_reduction <minimumf>, %269, %cst_114 [0] : vector<64x256xf32> to vector<256xf32>
      %271 = vector.shape_cast %270 : vector<256xf32> to vector<1x256xf32>
      %272 = vector.broadcast %cst_2 : f32 to vector<1x256xf32>
      %273 = arith.cmpf olt, %271, %272 : vector<1x256xf32>
      %274 = vector.broadcast %271 : vector<1x256xf32> to vector<64x256xf32>
      %275 = arith.cmpf oeq, %269, %274 : vector<64x256xf32>
      %c64_i32_115 = arith.constant 64 : i32
      %276 = vector.shape_cast %16 : vector<64x1xi32> to vector<64x1xi32>
      %277 = vector.broadcast %276 : vector<64x1xi32> to vector<64x256xi32>
      %278 = vector.broadcast %c64_i32_115 : i32 to vector<64x256xi32>
      %279 = arith.select %275, %277, %278 : vector<64x256xi1>, vector<64x256xi32>
      %cst_116 = arith.constant dense<2147483647> : vector<256xi32>
      %280 = vector.multi_reduction <minsi>, %279, %cst_116 [0] : vector<64x256xi32> to vector<256xi32>
      %281 = vector.shape_cast %280 : vector<256xi32> to vector<1x256xi32>
      %282 = vector.broadcast %16 : vector<64x1xi32> to vector<64x256xi32>
      %283 = vector.broadcast %281 : vector<1x256xi32> to vector<64x256xi32>
      %284 = arith.cmpi eq, %282, %283 : vector<64x256xi32>
      %cst_117 = arith.constant 0.000000e+00 : f32
      %285 = vector.broadcast %cst_117 : f32 to vector<64x256xf32>
      %286 = arith.select %284, %33, %285 : vector<64x256xi1>, vector<64x256xf32>
      %cst_118 = arith.constant dense<0.000000e+00> : vector<256xf32>
      %287 = vector.multi_reduction <add>, %286, %cst_118 [0] : vector<64x256xf32> to vector<256xf32>
      %288 = vector.shape_cast %287 : vector<256xf32> to vector<1x256xf32>
      %289 = vector.broadcast %22 : i32 to vector<1x256xi32>
      %290 = arith.addi %289, %281 : vector<1x256xi32>
      %c-1_i32_119 = arith.constant -1 : i32
      %291 = vector.broadcast %c-1_i32_119 : i32 to vector<1x256xi32>
      %292 = arith.select %273, %290, %291 : vector<1x256xi1>, vector<1x256xi32>
      %c0_120 = arith.constant 0 : index
      %c6 = arith.constant 6 : index
      %c0_121 = arith.constant 0 : index
      %293 = vector.load %arg5[%c0_120, %c6, %c0_121] : memref<1x8x256xi32, #tpu.memory_space<vmem>>, vector<1x1x256xi32>
      %294 = vector.shape_cast %293 : vector<1x1x256xi32> to vector<1x256xi32>
      %295 = vector.shape_cast %292 : vector<1x256xi32> to vector<1x1x256xi32>
      tpu.vector_store %arg5[%c0_120, %c6, %c0_121], %295 {strides = array<i32>} : memref<1x8x256xi32, #tpu.memory_space<vmem>>, vector<1x1x256xi32>,
      %cst_122 = arith.constant -1.000000e+00 : f32
      %296 = vector.broadcast %cst_122 : f32 to vector<1x256xf32>
      %297 = arith.select %273, %271, %296 : vector<1x256xi1>, vector<1x256xf32>
      %c0_123 = arith.constant 0 : index
      %c6_124 = arith.constant 6 : index
      %c0_125 = arith.constant 0 : index
      %298 = vector.load %arg6[%c0_123, %c6_124, %c0_125] : memref<1x8x256xf32, #tpu.memory_space<vmem>>, vector<1x1x256xf32>
      %299 = vector.shape_cast %298 : vector<1x1x256xf32> to vector<1x256xf32>
      %300 = vector.shape_cast %297 : vector<1x256xf32> to vector<1x1x256xf32>
      tpu.vector_store %arg6[%c0_123, %c6_124, %c0_125], %300 {strides = array<i32>} : memref<1x8x256xf32, #tpu.memory_space<vmem>>, vector<1x1x256xf32>,
      %cst_126 = arith.constant -1.000000e+00 : f32
      %301 = vector.broadcast %cst_126 : f32 to vector<1x256xf32>
      %302 = arith.select %273, %288, %301 : vector<1x256xi1>, vector<1x256xf32>
      %c0_127 = arith.constant 0 : index
      %c6_128 = arith.constant 6 : index
      %c0_129 = arith.constant 0 : index
      %303 = vector.load %arg7[%c0_127, %c6_128, %c0_129] : memref<1x8x256xf32, #tpu.memory_space<vmem>>, vector<1x1x256xf32>
      %304 = vector.shape_cast %303 : vector<1x1x256xf32> to vector<1x256xf32>
      %305 = vector.shape_cast %302 : vector<1x256xf32> to vector<1x1x256xf32>
      tpu.vector_store %arg7[%c0_127, %c6_128, %c0_129], %305 {strides = array<i32>} : memref<1x8x256xf32, #tpu.memory_space<vmem>>, vector<1x1x256xf32>,
      %306 = vector.broadcast %cst_2 : f32 to vector<64x256xf32>
      %307 = arith.select %284, %306, %269 : vector<64x256xi1>, vector<64x256xf32>
      %cst_130 = arith.constant dense<0x7F800000> : vector<256xf32>
      %308 = vector.multi_reduction <minimumf>, %307, %cst_130 [0] : vector<64x256xf32> to vector<256xf32>
      %309 = vector.shape_cast %308 : vector<256xf32> to vector<1x256xf32>
      %310 = vector.broadcast %cst_2 : f32 to vector<1x256xf32>
      %311 = arith.cmpf olt, %309, %310 : vector<1x256xf32>
      %312 = vector.broadcast %309 : vector<1x256xf32> to vector<64x256xf32>
      %313 = arith.cmpf oeq, %307, %312 : vector<64x256xf32>
      %c64_i32_131 = arith.constant 64 : i32
      %314 = vector.shape_cast %16 : vector<64x1xi32> to vector<64x1xi32>
      %315 = vector.broadcast %314 : vector<64x1xi32> to vector<64x256xi32>
      %316 = vector.broadcast %c64_i32_131 : i32 to vector<64x256xi32>
      %317 = arith.select %313, %315, %316 : vector<64x256xi1>, vector<64x256xi32>
      %cst_132 = arith.constant dense<2147483647> : vector<256xi32>
      %318 = vector.multi_reduction <minsi>, %317, %cst_132 [0] : vector<64x256xi32> to vector<256xi32>
      %319 = vector.shape_cast %318 : vector<256xi32> to vector<1x256xi32>
      %320 = vector.broadcast %16 : vector<64x1xi32> to vector<64x256xi32>
      %321 = vector.broadcast %319 : vector<1x256xi32> to vector<64x256xi32>
      %322 = arith.cmpi eq, %320, %321 : vector<64x256xi32>
      %cst_133 = arith.constant 0.000000e+00 : f32
      %323 = vector.broadcast %cst_133 : f32 to vector<64x256xf32>
      %324 = arith.select %322, %33, %323 : vector<64x256xi1>, vector<64x256xf32>
      %cst_134 = arith.constant dense<0.000000e+00> : vector<256xf32>
      %325 = vector.multi_reduction <add>, %324, %cst_134 [0] : vector<64x256xf32> to vector<256xf32>
      %326 = vector.shape_cast %325 : vector<256xf32> to vector<1x256xf32>
      %327 = vector.broadcast %22 : i32 to vector<1x256xi32>
      %328 = arith.addi %327, %319 : vector<1x256xi32>
      %c-1_i32_135 = arith.constant -1 : i32
      %329 = vector.broadcast %c-1_i32_135 : i32 to vector<1x256xi32>
      %330 = arith.select %311, %328, %329 : vector<1x256xi1>, vector<1x256xi32>
      %c0_136 = arith.constant 0 : index
      %c7 = arith.constant 7 : index
      %c0_137 = arith.constant 0 : index
      %331 = vector.load %arg5[%c0_136, %c7, %c0_137] : memref<1x8x256xi32, #tpu.memory_space<vmem>>, vector<1x1x256xi32>
      %332 = vector.shape_cast %331 : vector<1x1x256xi32> to vector<1x256xi32>
      %333 = vector.shape_cast %330 : vector<1x256xi32> to vector<1x1x256xi32>
      tpu.vector_store %arg5[%c0_136, %c7, %c0_137], %333 {strides = array<i32>} : memref<1x8x256xi32, #tpu.memory_space<vmem>>, vector<1x1x256xi32>,
      %cst_138 = arith.constant -1.000000e+00 : f32
      %334 = vector.broadcast %cst_138 : f32 to vector<1x256xf32>
      %335 = arith.select %311, %309, %334 : vector<1x256xi1>, vector<1x256xf32>
      %c0_139 = arith.constant 0 : index
      %c7_140 = arith.constant 7 : index
      %c0_141 = arith.constant 0 : index
      %336 = vector.load %arg6[%c0_139, %c7_140, %c0_141] : memref<1x8x256xf32, #tpu.memory_space<vmem>>, vector<1x1x256xf32>
      %337 = vector.shape_cast %336 : vector<1x1x256xf32> to vector<1x256xf32>
      %338 = vector.shape_cast %335 : vector<1x256xf32> to vector<1x1x256xf32>
      tpu.vector_store %arg6[%c0_139, %c7_140, %c0_141], %338 {strides = array<i32>} : memref<1x8x256xf32, #tpu.memory_space<vmem>>, vector<1x1x256xf32>,
      %cst_142 = arith.constant -1.000000e+00 : f32
      %339 = vector.broadcast %cst_142 : f32 to vector<1x256xf32>
      %340 = arith.select %311, %326, %339 : vector<1x256xi1>, vector<1x256xf32>
      %c0_143 = arith.constant 0 : index
      %c7_144 = arith.constant 7 : index
      %c0_145 = arith.constant 0 : index
      %341 = vector.load %arg7[%c0_143, %c7_144, %c0_145] : memref<1x8x256xf32, #tpu.memory_space<vmem>>, vector<1x1x256xf32>
      %342 = vector.shape_cast %341 : vector<1x1x256xf32> to vector<1x256xf32>
      %343 = vector.shape_cast %340 : vector<1x256xf32> to vector<1x1x256xf32>
      tpu.vector_store %arg7[%c0_143, %c7_144, %c0_145], %343 {strides = array<i32>} : memref<1x8x256xf32, #tpu.memory_space<vmem>>, vector<1x1x256xf32>,
    } else {
    }
    return
  }
  func.func @transform_0(%arg0: i32, %arg1: i32) -> (i32, i32, i32) {
    %c0_i32 = arith.constant 0 : i32
    %c0_i32_0 = arith.constant 0 : i32
    %c0_i32_1 = arith.constant 0 : i32
    return %arg0, %c0_i32, %c0_i32_0 : i32, i32, i32
  }
  func.func @transform_1(%arg0: i32, %arg1: i32) -> (i32, i32) {
    %c0_i32 = arith.constant 0 : i32
    %c0_i32_0 = arith.constant 0 : i32
    return %c0_i32, %arg1 : i32, i32
  }
  func.func @transform_2(%arg0: i32, %arg1: i32) -> i32 {
    %c0_i32 = arith.constant 0 : i32
    %c0_i32_0 = arith.constant 0 : i32
    return %c0_i32 : i32
  }
  func.func @transform_3(%arg0: i32, %arg1: i32) -> (i32, i32, i32) {
    %c0_i32 = arith.constant 0 : i32
    %c0_i32_0 = arith.constant 0 : i32
    return %arg0, %c0_i32, %arg1 : i32, i32, i32
  }
  func.func @transform_4(%arg0: i32, %arg1: i32) -> (i32, i32, i32) {
    %c0_i32 = arith.constant 0 : i32
    %c0_i32_0 = arith.constant 0 : i32
    return %arg0, %c0_i32, %arg1 : i32, i32, i32
  }
  func.func @transform_5(%arg0: i32, %arg1: i32) -> (i32, i32, i32) {
    %c0_i32 = arith.constant 0 : i32
    %c0_i32_0 = arith.constant 0 : i32
    return %arg0, %c0_i32, %arg1 : i32, i32, i32
  }
}

</mosaic_0001>

<llo_original>
// kernel: tpu_custom_call.1
$region0: #{tpu_custom_call.1}
  #allocation0 [shape = 'u32[]', space=smem, size = 0x4, offset = 0x4, fixed_abs, tag = 'smem constant byte address 0x4 - core index']
  #allocation1 [shape = 'u32[144,128]{1,0:T(1,128)}', space=vmem, size = 0x12000, scoped, tag = 'internal scratch']
  %s0 = inlined_call_operand.vmem [shape: f32[2,64,3], index: 0, kind: input, shape index: {}]
  %s1 = inlined_call_operand.vmem [shape: f32[2,256], index: 1, kind: input, shape index: {}]
  %s2 = inlined_call_operand.vmem [shape: s32[2], index: 2, kind: input, shape index: {}]
  %s3 = inlined_call_operand.hbm [shape: s32[2,8,256], index: 3, kind: output, shape index: {0}]
  %s4 = inlined_call_operand.hbm [shape: f32[2,8,256], index: 4, kind: output, shape index: {1}]
  %s5 = inlined_call_operand.hbm [shape: f32[2,8,256], index: 5, kind: output, shape index: {2}]
  %6 = xla_tuple %s3, %s4, %s5
  %s7 = sld [smem:[#allocation0]]
  $region73: #{tpu_custom_call.1} parent=0
    _
  %s9 = ssub.s32 1, %s7
  %s10 = scalar_select 0, %s9, %s7
  $region1: #{tpu_custom_call.1} parent=0
    #allocation2 [shape = 'u8[512]{0}', space=smem, size = 0x200, scoped, tag = 'input window, operand 2, single buffered']
    #allocation3 [shape = 's32[2]{0}', space=sflag, size = 0x8, scoped, tag = 'scoped memory for tpu_custom_call.1']
    #allocation4 [shape = 's32[2]{0}', space=sflag, size = 0x8, scoped, tag = 'scoped memory for tpu_custom_call.1']
    #allocation5 [shape = 'u8[16384]{0}', space=vmem, size = 0x4000, scoped, tag = 'output window, operand 0']
    #allocation6 [shape = 'u8[16384]{0}', space=vmem, size = 0x4000, scoped, tag = 'output window, operand 1']
    #allocation7 [shape = 's32[2]{0}', space=sflag, size = 0x8, scoped, tag = 'scoped memory for tpu_custom_call.1']
    #allocation8 [shape = 'u8[16384]{0}', space=vmem, size = 0x4000, scoped, tag = 'output window, operand 2']
    %11 = vsyncpa [#allocation4], 0
    %12 = vsyncpa [#allocation3], 0
    %s13 = scalar_lea.sflag [#allocation3], 1
    %14 = vsyncpa %s13, 0
    %15 = vsyncpa [#allocation7], 0
    %s16 = scalar_lea.sflag [#allocation7], 1
    %17 = vsyncpa %s16, 0
    loop: start=0, step=1, limit=4
    $region2: #{tpu_custom_call.1} parent=1 // loop_pre_header
      _
    $region3: #{tpu_custom_call.1} parent=1 // loop_header
      %s19 = sphi 0, %s23
      %p20 = scmp.ge.s32.totalorder %s19, 4
      %s26 = sphi 0, %s38
      %s27 = sphi 0, %s34
      %s28 = sphi 0, %s26
      %s29 = sphi 0, %s27
      %s30 = sphi 0, %s28
      %s31 = sphi 0, %s29
      %s41 = sphi 0, %s43
      %s44 = sphi 0, %s41
      %s45 = sphi 0, %s44
      %s61 = sphi 0, %s45
      %s67 = sphi 0, %s69
      %s70 = sphi 0, %s67
      %s71 = sphi 0, %s70
      %s87 = sphi 0, %s71
      %s91 = sphi 0, %s91
      %s93 = sphi 0, %s91
      %s94 = sphi 0, %s93
      %s108 = sphi 0, %s94
      %s116 = sphi 0, %s118
      %s119 = sphi 0, %s116
      %s120 = sphi 0, %s119
      %s136 = sphi 0, %s120
      %s144 = sphi 0, %s146
      %s147 = sphi 0, %s144
      %s148 = sphi 0, %s147
      %s164 = sphi 0, %s148
      %s172 = sphi 0, %s174
      %s175 = sphi 0, %s172
      %s176 = sphi 0, %s175
      %s192 = sphi 0, %s176
    $region4: #{tpu_custom_call.1} parent=1 // loop_header_branch
      %22 = sbr.rel (%p20) target = $region8
    $region5: #{tpu_custom_call.1} parent=1 // loop_body
      %s24 = ssub.s32 %s19, 1
      %s25 = ssub.s32 %s19, 2
      %s32 = sadd.s32 1, %s27
      %p33 = scmp.ge.s32.totalorder %s32, 1
      %s34 = scalar_select %p33, 0, %s32
      %s35 = sadd.s32 1, %s26
      %s36 = scalar_select %p33, %s35, %s26
      %p37 = scmp.ge.s32.totalorder %s36, 2
      %s38 = scalar_select %p37, 0, %s36
      %s39 = ssub.s32 %s26, %s38
      %p40 = scmp.eq.s32.totalorder %s39, 0
      %s42 = sadd.s32 %s41, 1
      %s43 = scalar_select %p40, %s41, %s42
      %p46 = pneg %p40
      %p47 = scmp.eq.s32.totalorder %s19, 1
      %p48 = por %p46, %p47
      %p49 = scmp.ne.s32.totalorder %s41, %s44
      %p50 = scmp.eq.s32.totalorder %s19, 0
      %p51 = por %p49, %p50
      %p52 = scmp.ne.s32.totalorder %s41, %s44
      %p53 = scmp.eq.s32.totalorder %s24, 1
      %p54 = por %p52, %p53
      %p55 = scmp.ne.s32.totalorder %s44, %s45
      %p56 = scmp.eq.s32.totalorder %s24, 0
      %p57 = por %p55, %p56
      %p58 = scmp.ne.s32.totalorder %s44, %s45
      %p59 = scmp.eq.s32.totalorder %s25, 1
      %p60 = por %p58, %p59
      %p62 = scmp.ne.s32.totalorder %s45, %s61
      %p63 = scmp.eq.s32.totalorder %s25, 0
      %p64 = por %p62, %p63
      %s65 = ssub.s32 %s27, %s34
      %p66 = scmp.eq.s32.totalorder %s65, 0
      %s68 = sadd.s32 %s67, 1
      %s69 = scalar_select %p66, %s67, %s68
      %p72 = pneg %p66
      %p73 = scmp.eq.s32.totalorder %s19, 1
      %p74 = por %p72, %p73
      %p75 = scmp.ne.s32.totalorder %s67, %s70
      %p76 = scmp.eq.s32.totalorder %s19, 0
      %p77 = por %p75, %p76
      %p78 = scmp.ne.s32.totalorder %s67, %s70
      %p79 = scmp.eq.s32.totalorder %s24, 1
      %p80 = por %p78, %p79
      %p81 = scmp.ne.s32.totalorder %s70, %s71
      %p82 = scmp.eq.s32.totalorder %s24, 0
      %p83 = por %p81, %p82
      %p84 = scmp.ne.s32.totalorder %s70, %s71
      %p85 = scmp.eq.s32.totalorder %s25, 1
      %p86 = por %p84, %p85
      %p88 = scmp.ne.s32.totalorder %s71, %s87
      %p89 = scmp.eq.s32.totalorder %s25, 0
      %p90 = por %p88, %p89
      %s92 = sadd.s32 %s91, 1
      %p95 = scmp.eq.s32.totalorder %s19, 1
      %p96 = scmp.ne.s32.totalorder %s91, %s93
      %p97 = scmp.eq.s32.totalorder %s19, 0
      %p98 = por %p96, %p97
      %p99 = scmp.ne.s32.totalorder %s91, %s93
      %p100 = scmp.eq.s32.totalorder %s24, 1
      %p101 = por %p99, %p100
      %p102 = scmp.ne.s32.totalorder %s93, %s94
      %p103 = scmp.eq.s32.totalorder %s24, 0
      %p104 = por %p102, %p103
      %p105 = scmp.ne.s32.totalorder %s93, %s94
      %p106 = scmp.eq.s32.totalorder %s25, 1
      %p107 = por %p105, %p106
      %p109 = scmp.ne.s32.totalorder %s94, %s108
      %p110 = scmp.eq.s32.totalorder %s25, 0
      %p111 = por %p109, %p110
      %s112 = ssub.s32 %s26, %s38
      %s113 = ssub.s32 %s27, %s34
      %s114 = sor.u32 %s112, %s113
      %p115 = scmp.eq.s32.totalorder %s114, 0
      %s117 = sadd.s32 %s116, 1
      %s118 = scalar_select %p115, %s116, %s117
      %p121 = pneg %p115
      %p122 = scmp.eq.s32.totalorder %s19, 1
      %p123 = por %p121, %p122
      %p124 = scmp.ne.s32.totalorder %s116, %s119
      %p125 = scmp.eq.s32.totalorder %s19, 0
      %p126 = por %p124, %p125
      %p127 = scmp.ne.s32.totalorder %s116, %s119
      %p128 = scmp.eq.s32.totalorder %s24, 1
      %p129 = por %p127, %p128
      %p130 = scmp.ne.s32.totalorder %s119, %s120
      %p131 = scmp.eq.s32.totalorder %s24, 0
      %p132 = por %p130, %p131
      %p133 = scmp.ne.s32.totalorder %s119, %s120
      %p134 = scmp.eq.s32.totalorder %s25, 1
      %p135 = por %p133, %p134
      %p137 = scmp.ne.s32.totalorder %s120, %s136
      %p138 = scmp.eq.s32.totalorder %s25, 0
      %p139 = por %p137, %p138
      %s140 = ssub.s32 %s26, %s38
      %s141 = ssub.s32 %s27, %s34
      %s142 = sor.u32 %s140, %s141
      %p143 = scmp.eq.s32.totalorder %s142, 0
      %s145 = sadd.s32 %s144, 1
      %s146 = scalar_select %p143, %s144, %s145
      %p149 = pneg %p143
      %p150 = scmp.eq.s32.totalorder %s19, 1
      %p151 = por %p149, %p150
      %p152 = scmp.ne.s32.totalorder %s144, %s147
      %p153 = scmp.eq.s32.totalorder %s19, 0
      %p154 = por %p152, %p153
      %p155 = scmp.ne.s32.totalorder %s144, %s147
      %p156 = scmp.eq.s32.totalorder %s24, 1
      %p157 = por %p155, %p156
      %p158 = scmp.ne.s32.totalorder %s147, %s148
      %p159 = scmp.eq.s32.totalorder %s24, 0
      %p160 = por %p158, %p159
      %p161 = scmp.ne.s32.totalorder %s147, %s148
      %p162 = scmp.eq.s32.totalorder %s25, 1
      %p163 = por %p161, %p162
      %p165 = scmp.ne.s32.totalorder %s148, %s164
      %p166 = scmp.eq.s32.totalorder %s25, 0
      %p167 = por %p165, %p166
      %s168 = ssub.s32 %s26, %s38
      %s169 = ssub.s32 %s27, %s34
      %s170 = sor.u32 %s168, %s169
      %p171 = scmp.eq.s32.totalorder %s170, 0
      %s173 = sadd.s32 %s172, 1
      %s174 = scalar_select %p171, %s172, %s173
      %p177 = pneg %p171
      %p178 = scmp.eq.s32.totalorder %s19, 1
      %p179 = por %p177, %p178
      %p180 = scmp.ne.s32.totalorder %s172, %s175
      %p181 = scmp.eq.s32.totalorder %s19, 0
      %p182 = por %p180, %p181
      %p183 = scmp.ne.s32.totalorder %s172, %s175
      %p184 = scmp.eq.s32.totalorder %s24, 1
      %p185 = por %p183, %p184
      %p186 = scmp.ne.s32.totalorder %s175, %s176
      %p187 = scmp.eq.s32.totalorder %s24, 0
      %p188 = por %p186, %p187
      %p189 = scmp.ne.s32.totalorder %s175, %s176
      %p190 = scmp.eq.s32.totalorder %s25, 1
      %p191 = por %p189, %p190
      %p193 = scmp.ne.s32.totalorder %s176, %s192
      %p194 = scmp.eq.s32.totalorder %s25, 0
      %p195 = por %p193, %p194
      %p196 = scmp.le.s32.totalorder 1, %s19
      %p197 = scmp.lt.s32.totalorder %s19, 3
      %p198 = pnand %p196, %p197
      %p199 = pneg %p198
      // Predicated region
      $region9: #{tpu_custom_call.1} parent=5 // pred_check
        _
      $region10: #{tpu_custom_call.1} parent=5 // pred_check_branch
        %201 = sbr.rel (%p198) target = $region12
      $region11: #{tpu_custom_call.1} parent=5 // pred_region
        %s202 = ssub.s32 %s19, 1
        // Predicated region
        $region13: #{tpu_custom_call.1} parent=11 // pred_check
          %p203 = pneg %p83
        $region14: #{tpu_custom_call.1} parent=11 // pred_check_branch
          %205 = sbr.rel (%p203) target = $region16
        $region15: #{tpu_custom_call.1} parent=11 // pred_region
          %s206 = smul.u32 2, %s29
          %p207 = scmp.lt.s32.totalorder %s206, 1
          %s208 = scalar_select %p207, %s206, 1
          %s209 = smul.addr %s208, 2
          %s210 = scalar_lea.vmem %s1, %s209
          %s211 = smul.u32 2, %s29
        $region16: #{tpu_custom_call.1} parent=11 // pred_fallthru
          _
        // Predicated region
        $region17: #{tpu_custom_call.1} parent=11 // pred_check
          %p212 = pneg %p104
        $region18: #{tpu_custom_call.1} parent=11 // pred_check_branch
          %214 = sbr.rel (%p212) target = $region20
        $region19: #{tpu_custom_call.1} parent=11 // pred_region
          %s216 = ssub.s32 16, 16
          %217 = vsyncadd [#allocation4], %s216
          %s219 = sshll.u32 %s2, 4
          %s220 = int_to_ptr.vmem [resolvable:$true] %s219
          %222 = dma.vmem_to_smem %s220, 16, [#allocation2], [#allocation4]
        $region20: #{tpu_custom_call.1} parent=11 // pred_fallthru
          _
      $region12: #{tpu_custom_call.1} parent=5 // pred_fallthru
        _
      %p223 = scmp.lt.s32.totalorder %s19, 2
      // Predicated region
      $region21: #{tpu_custom_call.1} parent=5 // pred_check
        %p224 = pneg %p223
      $region22: #{tpu_custom_call.1} parent=5 // pred_check_branch
        %226 = sbr.rel (%p224) target = $region24
      $region23: #{tpu_custom_call.1} parent=5 // pred_region
        // Predicated region
        $region25: #{tpu_custom_call.1} parent=23 // pred_check
          %p227 = pneg %p51
        $region26: #{tpu_custom_call.1} parent=23 // pred_check_branch
          %229 = sbr.rel (%p227) target = $region28
        $region27: #{tpu_custom_call.1} parent=23 // pred_region
          %p230 = scmp.lt.s32.totalorder %s26, 1
          %s231 = scalar_select %p230, %s26, 1
          %s232 = smul.addr %s231, 8
          %s233 = smul.addr %s232, 8
          %s234 = scalar_lea.vmem %s0, %s233
        $region28: #{tpu_custom_call.1} parent=23 // pred_fallthru
          _
      $region24: #{tpu_custom_call.1} parent=5 // pred_fallthru
        _
      %p235 = scmp.le.s32.totalorder 1, %s19
      %p236 = scmp.lt.s32.totalorder %s19, 3
      %p237 = pnand %p235, %p236
      %p238 = pneg %p237
      // Predicated region
      $region29: #{tpu_custom_call.1} parent=5 // pred_check
        _
      $region30: #{tpu_custom_call.1} parent=5 // pred_check_branch
        %240 = sbr.rel (%p237) target = $region32
      $region31: #{tpu_custom_call.1} parent=5 // pred_region
        %s241 = ssub.s32 %s19, 1
        // Predicated region
        $region33: #{tpu_custom_call.1} parent=31 // pred_check
          %p242 = pneg %p104
        $region34: #{tpu_custom_call.1} parent=31 // pred_check_branch
          %244 = sbr.rel (%p242) target = $region36
        $region35: #{tpu_custom_call.1} parent=31 // pred_region
          %245 = dma.done [#allocation4], 16
        $region36: #{tpu_custom_call.1} parent=31 // pred_fallthru
          _
        %246 = sfence
        %p247 = scmp.lt.s32.totalorder %s28, 1
        %s248 = scalar_select %p247, %s28, 1
        %s249 = smul.addr %s248, 8
        %s250 = smul.addr %s249, 8
        %s251 = scalar_lea.vmem %s0, %s250
        %p252 = pneg %p57
        %p253 = pneg %p54
        %s254 = smul.u32 2, %s29
        %p255 = scmp.lt.s32.totalorder %s254, 1
        %s256 = scalar_select %p255, %s254, 1
        %s257 = smul.addr %s256, 2
        %s258 = scalar_lea.vmem %s1, %s257
        %p259 = pneg %p83
        %p260 = pneg %p80
        %p261 = pneg %p104
        %p262 = pneg %p101
        %p263 = pneg %p132
        %p264 = pneg %p129
        %s265 = sand.u32 %s119, 1
        %s266 = scalar_lea.sflag [#allocation3], %s265
        %s267 = sand.u32 %s119, 1
        %s268 = smul.addr %s267, 16
        %s269 = scalar_lea.vmem [#allocation5], %s268
        %p270 = pneg %p160
        %p271 = pneg %p157
        %s272 = sand.u32 %s24, 1
        %s273 = scalar_lea.sflag [#allocation7], %s272
        %s274 = sand.u32 %s147, 1
        %s275 = smul.addr %s274, 16
        %s276 = scalar_lea.vmem [#allocation6], %s275
        %p277 = pneg %p188
        %p278 = pneg %p185
        %s279 = sand.u32 %s24, 1
        %s280 = scalar_lea.sflag [#allocation7], %s279
        %s281 = sand.u32 %s175, 1
        %s282 = smul.addr %s281, 16
        %s283 = scalar_lea.vmem [#allocation8], %s282
        %p284 = scmp.lt.s32.totalorder %s28, 1
        %s285 = scalar_select %p284, %s28, 1
        %s286 = smul.addr %s285, 8
        %s287 = smul.addr %s286, 8
        %s288 = scalar_lea.vmem %s0, %s287
        %s289 = smul.u32 2, %s29
        %p290 = scmp.lt.s32.totalorder %s289, 1
        %s291 = scalar_select %p290, %s289, 1
        %s292 = smul.addr %s291, 2
        %s293 = scalar_lea.vmem %s1, %s292
        %s294 = smul.u32 2, %s29
        %s295 = smul.u32 2, %s29
        %s296 = smul.u32 2, %s29
        %s297 = smul.u32 2, %s29
        %s298 = sadd.s32 %s28, %s29
        %s299 = sld [smem:[#allocation2 + %s298]]
        %p300 = scmp.eq.s32.totalorder %s299, 0
        // Predicated region
        $region37: #{tpu_custom_call.1} parent=31 // pred_check
          %p301 = pneg %p300
        $region38: #{tpu_custom_call.1} parent=31 // pred_check_branch
          %303 = sbr.rel (%p301) target = $region40
        $region39: #{tpu_custom_call.1} parent=31 // pred_region
          %304 = vst [vmem:[%s269] sm:$0xff] 4294967295
          %305 = vst [vmem:[%s269 + $0x8] sm:$0xff] 4294967295
          %306 = vst [vmem:[%s276] sm:$0xff] -1.0
          %307 = vst [vmem:[%s276 + $0x8] sm:$0xff] -1.0
          %308 = vst [vmem:[%s283] sm:$0xff] -1.0
          %309 = vst [vmem:[%s283 + $0x8] sm:$0xff] -1.0
        $region40: #{tpu_custom_call.1} parent=31 // pred_fallthru
          _
        %p310 = scmp.gt.s32.totalorder %s299, 0
        // Predicated region
        $region41: #{tpu_custom_call.1} parent=31 // pred_check
          %p311 = pneg %p310
        $region42: #{tpu_custom_call.1} parent=31 // pred_check_branch
          %313 = sbr.rel (%p311) target = $region44
        $region43: #{tpu_custom_call.1} parent=31 // pred_region
          %v314 = vld [vmem:[%s288] sm:$0xff]
          %v315 = vld [vmem:[%s288 + $0x8] sm:$0xff]
          %v316 = vld [vmem:[%s288 + $0x10] sm:$0xff]
          %v317 = vld [vmem:[%s288 + $0x18] sm:$0xff]
          %v318 = vld [vmem:[%s288 + $0x20] sm:$0xff]
          %v319 = vld [vmem:[%s288 + $0x28] sm:$0xff]
          %v320 = vld [vmem:[%s288 + $0x30] sm:$0xff]
          %v321 = vld [vmem:[%s288 + $0x38] sm:$0xff]
          %v322 = vlaneseq
          %v323 = vshrl.u32 %v322, 7
          %v324 = vadd.s32 %v323, 8
          %v325 = vadd.s32 %v323, 16
          %v326 = vadd.s32 %v323, 24
          %v327 = vadd.s32 %v323, 32
          %v328 = vadd.s32 %v323, 40
          %v329 = vadd.s32 %v323, 48
          %v330 = vadd.s32 %v323, 56
          %vm331 = vcmp.lt.s32.totalorder %v323, 64
          %vm332 = vcmp.lt.s32.totalorder %v324, 64
          %vm333 = vcmp.lt.s32.totalorder %v325, 64
          %vm334 = vcmp.lt.s32.totalorder %v326, 64
          %vm335 = vcmp.lt.s32.totalorder %v327, 64
          %vm336 = vcmp.lt.s32.totalorder %v328, 64
          %vm337 = vcmp.lt.s32.totalorder %v329, 64
          %vm338 = vcmp.lt.s32.totalorder %v330, 64
          %vm339 = vcmp.ge.f32.partialorder %v314, 0.0
          %vm340 = vcmp.ge.f32.partialorder %v315, 0.0
          %vm341 = vcmp.ge.f32.partialorder %v316, 0.0
          %vm342 = vcmp.ge.f32.partialorder %v317, 0.0
          %vm343 = vcmp.ge.f32.partialorder %v318, 0.0
          %vm344 = vcmp.ge.f32.partialorder %v319, 0.0
          %vm345 = vcmp.ge.f32.partialorder %v320, 0.0
          %vm346 = vcmp.ge.f32.partialorder %v321, 0.0
          %vm347 = vmand %vm331, %vm339
          %vm348 = vmand %vm332, %vm340
          %vm349 = vmand %vm333, %vm341
          %vm350 = vmand %vm334, %vm342
          %vm351 = vmand %vm335, %vm343
          %vm352 = vmand %vm336, %vm344
          %vm353 = vmand %vm337, %vm345
          %vm354 = vmand %vm338, %vm346
          %s355 = smul.u32 %s28, 64
          %v356 = vld [vmem:[%s293] ss:$2 sm:$0x3]
          %s357 = scalar_lea.vmem %s293, 1
          %v358 = vld [vmem:[%s357] ss:$2 sm:$0x3]
          %v360 = vlaneseq
          %v361 = vshrl.u32 %v360, 7
          %v362 = vsub.s32 0, %v361
          %v363 = vrot.slane %v356, %v362
          %v364 = vlaneseq
          %v365 = vshrl.u32 %v364, 7
          %v366 = vsub.s32 1, %v365
          %v367 = vrot.slane %v356, %v366
          %371 = vset.pattern.permute.xlu0 0
          %372 = vperm.xlu0 %371, %v314
          %v373 = vpop.permute.xlu0 %372
          %376 = vset.pattern.permute.xlu0 0
          %377 = vperm.xlu0 %376, %v315
          %v378 = vpop.permute.xlu0 %377
          %381 = vset.pattern.permute.xlu0 0
          %382 = vperm.xlu0 %381, %v316
          %v383 = vpop.permute.xlu0 %382
          %386 = vset.pattern.permute.xlu0 0
          %387 = vperm.xlu0 %386, %v317
          %v388 = vpop.permute.xlu0 %387
          %391 = vset.pattern.permute.xlu0 0
          %392 = vperm.xlu0 %391, %v318
          %v393 = vpop.permute.xlu0 %392
          %396 = vset.pattern.permute.xlu0 0
          %397 = vperm.xlu0 %396, %v319
          %v398 = vpop.permute.xlu0 %397
          %401 = vset.pattern.permute.xlu0 0
          %402 = vperm.xlu0 %401, %v320
          %v403 = vpop.permute.xlu0 %402
          %406 = vset.pattern.permute.xlu0 0
          %407 = vperm.xlu0 %406, %v321
          %v408 = vpop.permute.xlu0 %407
          %v410 = vsub.f32 %v363, %v373
          %v411 = vsub.f32 %v367, %v373
          %v412 = vsub.f32 %v363, %v378
          %v413 = vsub.f32 %v367, %v378
          %v414 = vsub.f32 %v363, %v383
          %v415 = vsub.f32 %v367, %v383
          %v416 = vsub.f32 %v363, %v388
          %v417 = vsub.f32 %v367, %v388
          %v418 = vsub.f32 %v363, %v393
          %v419 = vsub.f32 %v367, %v393
          %v420 = vsub.f32 %v363, %v398
          %v421 = vsub.f32 %v367, %v398
          %v422 = vsub.f32 %v363, %v403
          %v423 = vsub.f32 %v367, %v403
          %v424 = vsub.f32 %v363, %v408
          %v425 = vsub.f32 %v367, %v408
          %v427 = vlaneseq
          %v428 = vshrl.u32 %v427, 7
          %v429 = vsub.s32 0, %v428
          %v430 = vrot.slane %v358, %v429
          %v431 = vlaneseq
          %v432 = vshrl.u32 %v431, 7
          %v433 = vsub.s32 1, %v432
          %v434 = vrot.slane %v358, %v433
          %437 = vset.pattern.permute.xlu0 1
          %438 = vperm.xlu0 %437, %v314
          %v439 = vpop.permute.xlu0 %438
          %441 = vset.pattern.permute.xlu0 1
          %442 = vperm.xlu0 %441, %v315
          %v443 = vpop.permute.xlu0 %442
          %445 = vset.pattern.permute.xlu0 1
          %446 = vperm.xlu0 %445, %v316
          %v447 = vpop.permute.xlu0 %446
          %449 = vset.pattern.permute.xlu0 1
          %450 = vperm.xlu0 %449, %v317
          %v451 = vpop.permute.xlu0 %450
          %453 = vset.pattern.permute.xlu0 1
          %454 = vperm.xlu0 %453, %v318
          %v455 = vpop.permute.xlu0 %454
          %457 = vset.pattern.permute.xlu0 1
          %458 = vperm.xlu0 %457, %v319
          %v459 = vpop.permute.xlu0 %458
          %461 = vset.pattern.permute.xlu0 1
          %462 = vperm.xlu0 %461, %v320
          %v463 = vpop.permute.xlu0 %462
          %465 = vset.pattern.permute.xlu0 1
          %466 = vperm.xlu0 %465, %v321
          %v467 = vpop.permute.xlu0 %466
          %v469 = vsub.f32 %v430, %v439
          %v470 = vsub.f32 %v434, %v439
          %v471 = vsub.f32 %v430, %v443
          %v472 = vsub.f32 %v434, %v443
          %v473 = vsub.f32 %v430, %v447
          %v474 = vsub.f32 %v434, %v447
          %v475 = vsub.f32 %v430, %v451
          %v476 = vsub.f32 %v434, %v451
          %v477 = vsub.f32 %v430, %v455
          %v478 = vsub.f32 %v434, %v455
          %v479 = vsub.f32 %v430, %v459
          %v480 = vsub.f32 %v434, %v459
          %v481 = vsub.f32 %v430, %v463
          %v482 = vsub.f32 %v434, %v463
          %v483 = vsub.f32 %v430, %v467
          %v484 = vsub.f32 %v434, %v467
          %v485 = vmul.f32 %v410, %v410
          %v486 = vmul.f32 %v411, %v411
          %v487 = vmul.f32 %v412, %v412
          %v488 = vmul.f32 %v413, %v413
          %v489 = vmul.f32 %v414, %v414
          %v490 = vmul.f32 %v415, %v415
          %v491 = vmul.f32 %v416, %v416
          %v492 = vmul.f32 %v417, %v417
          %v493 = vmul.f32 %v418, %v418
          %v494 = vmul.f32 %v419, %v419
          %v495 = vmul.f32 %v420, %v420
          %v496 = vmul.f32 %v421, %v421
          %v497 = vmul.f32 %v422, %v422
          %v498 = vmul.f32 %v423, %v423
          %v499 = vmul.f32 %v424, %v424
          %v500 = vmul.f32 %v425, %v425
          %v501 = vmul.f32 %v469, %v469
          %v502 = vmul.f32 %v470, %v470
          %v503 = vmul.f32 %v471, %v471
          %v504 = vmul.f32 %v472, %v472
          %v505 = vmul.f32 %v473, %v473
          %v506 = vmul.f32 %v474, %v474
          %v507 = vmul.f32 %v475, %v475
          %v508 = vmul.f32 %v476, %v476
          %v509 = vmul.f32 %v477, %v477
          %v510 = vmul.f32 %v478, %v478
          %v511 = vmul.f32 %v479, %v479
          %v512 = vmul.f32 %v480, %v480
          %v513 = vmul.f32 %v481, %v481
          %v514 = vmul.f32 %v482, %v482
          %v515 = vmul.f32 %v483, %v483
          %v516 = vmul.f32 %v484, %v484
          %v517 = vadd.f32 %v485, %v501
          %v518 = vadd.f32 %v486, %v502
          %v519 = vadd.f32 %v487, %v503
          %v520 = vadd.f32 %v488, %v504
          %v521 = vadd.f32 %v489, %v505
          %v522 = vadd.f32 %v490, %v506
          %v523 = vadd.f32 %v491, %v507
          %v524 = vadd.f32 %v492, %v508
          %v525 = vadd.f32 %v493, %v509
          %v526 = vadd.f32 %v494, %v510
          %v527 = vadd.f32 %v495, %v511
          %v528 = vadd.f32 %v496, %v512
          %v529 = vadd.f32 %v497, %v513
          %v530 = vadd.f32 %v498, %v514
          %v531 = vadd.f32 %v499, %v515
          %v532 = vadd.f32 %v500, %v516
          %vm533 = vcmp.lt.f32.partialorder %v517, 0.0625
          %vm534 = vcmp.lt.f32.partialorder %v518, 0.0625
          %vm535 = vcmp.lt.f32.partialorder %v519, 0.0625
          %vm536 = vcmp.lt.f32.partialorder %v520, 0.0625
          %vm537 = vcmp.lt.f32.partialorder %v521, 0.0625
          %vm538 = vcmp.lt.f32.partialorder %v522, 0.0625
          %vm539 = vcmp.lt.f32.partialorder %v523, 0.0625
          %vm540 = vcmp.lt.f32.partialorder %v524, 0.0625
          %vm541 = vcmp.lt.f32.partialorder %v525, 0.0625
          %vm542 = vcmp.lt.f32.partialorder %v526, 0.0625
          %vm543 = vcmp.lt.f32.partialorder %v527, 0.0625
          %vm544 = vcmp.lt.f32.partialorder %v528, 0.0625
          %vm545 = vcmp.lt.f32.partialorder %v529, 0.0625
          %vm546 = vcmp.lt.f32.partialorder %v530, 0.0625
          %vm547 = vcmp.lt.f32.partialorder %v531, 0.0625
          %vm548 = vcmp.lt.f32.partialorder %v532, 0.0625
          %v549 = vsel %vm347, 1, 0
          %v550 = vsel %vm348, 1, 0
          %v551 = vsel %vm349, 1, 0
          %v552 = vsel %vm350, 1, 0
          %v553 = vsel %vm351, 1, 0
          %v554 = vsel %vm352, 1, 0
          %v555 = vsel %vm353, 1, 0
          %v556 = vsel %vm354, 1, 0
          %557 = vset.pattern.permute.xlu0 2
          %558 = vperm.xlu0 %557, %v549
          %v559 = vpop.permute.xlu0 %558
          %560 = vset.pattern.permute.xlu0 2
          %561 = vperm.xlu0 %560, %v550
          %v562 = vpop.permute.xlu0 %561
          %563 = vset.pattern.permute.xlu0 2
          %564 = vperm.xlu0 %563, %v551
          %v565 = vpop.permute.xlu0 %564
          %566 = vset.pattern.permute.xlu0 2
          %567 = vperm.xlu0 %566, %v552
          %v568 = vpop.permute.xlu0 %567
          %569 = vset.pattern.permute.xlu0 2
          %570 = vperm.xlu0 %569, %v553
          %v571 = vpop.permute.xlu0 %570
          %572 = vset.pattern.permute.xlu0 2
          %573 = vperm.xlu0 %572, %v554
          %v574 = vpop.permute.xlu0 %573
          %575 = vset.pattern.permute.xlu0 2
          %576 = vperm.xlu0 %575, %v555
          %v577 = vpop.permute.xlu0 %576
          %578 = vset.pattern.permute.xlu0 2
          %579 = vperm.xlu0 %578, %v556
          %v580 = vpop.permute.xlu0 %579
          %vm581 = vcmp.eq.s32.totalorder %v559, 1
          %vm582 = vcmp.eq.s32.totalorder %v562, 1
          %vm583 = vcmp.eq.s32.totalorder %v565, 1
          %vm584 = vcmp.eq.s32.totalorder %v568, 1
          %vm585 = vcmp.eq.s32.totalorder %v571, 1
          %vm586 = vcmp.eq.s32.totalorder %v574, 1
          %vm587 = vcmp.eq.s32.totalorder %v577, 1
          %vm588 = vcmp.eq.s32.totalorder %v580, 1
          %vm589 = vmand %vm533, %vm581
          %vm590 = vmand %vm534, %vm581
          %vm591 = vmand %vm535, %vm582
          %vm592 = vmand %vm536, %vm582
          %vm593 = vmand %vm537, %vm583
          %vm594 = vmand %vm538, %vm583
          %vm595 = vmand %vm539, %vm584
          %vm596 = vmand %vm540, %vm584
          %vm597 = vmand %vm541, %vm585
          %vm598 = vmand %vm542, %vm585
          %vm599 = vmand %vm543, %vm586
          %vm600 = vmand %vm544, %vm586
          %vm601 = vmand %vm545, %vm587
          %vm602 = vmand %vm546, %vm587
          %vm603 = vmand %vm547, %vm588
          %vm604 = vmand %vm548, %vm588
          %605 = vset.pattern.permute.xlu0 2
          %606 = vperm.xlu0 %605, %v314
          %v607 = vpop.permute.xlu0 %606
          %609 = vset.pattern.permute.xlu0 2
          %610 = vperm.xlu0 %609, %v315
          %v611 = vpop.permute.xlu0 %610
          %613 = vset.pattern.permute.xlu0 2
          %614 = vperm.xlu0 %613, %v316
          %v615 = vpop.permute.xlu0 %614
          %617 = vset.pattern.permute.xlu0 2
          %618 = vperm.xlu0 %617, %v317
          %v619 = vpop.permute.xlu0 %618
          %621 = vset.pattern.permute.xlu0 2
          %622 = vperm.xlu0 %621, %v318
          %v623 = vpop.permute.xlu0 %622
          %625 = vset.pattern.permute.xlu0 2
          %626 = vperm.xlu0 %625, %v319
          %v627 = vpop.permute.xlu0 %626
          %629 = vset.pattern.permute.xlu0 2
          %630 = vperm.xlu0 %629, %v320
          %v631 = vpop.permute.xlu0 %630
          %633 = vset.pattern.permute.xlu0 2
          %634 = vperm.xlu0 %633, %v321
          %v635 = vpop.permute.xlu0 %634
          %v637 = vsel %vm589, %v607, 1e+30
          %v638 = vsel %vm590, %v607, 1e+30
          %v639 = vsel %vm591, %v611, 1e+30
          %v640 = vsel %vm592, %v611, 1e+30
          %v641 = vsel %vm593, %v615, 1e+30
          %v642 = vsel %vm594, %v615, 1e+30
          %v643 = vsel %vm595, %v619, 1e+30
          %v644 = vsel %vm596, %v619, 1e+30
          %v645 = vsel %vm597, %v623, 1e+30
          %v646 = vsel %vm598, %v623, 1e+30
          %v647 = vsel %vm599, %v627, 1e+30
          %v648 = vsel %vm600, %v627, 1e+30
          %v649 = vsel %vm601, %v631, 1e+30
          %v650 = vsel %vm602, %v631, 1e+30
          %v651 = vsel %vm603, %v635, 1e+30
          %v652 = vsel %vm604, %v635, 1e+30
          %v653 = vmin.f32 %v637, %v641
          %v654 = vmin.f32 %v639, %v643
          %v655 = vmin.f32 %v653, %v645
          %v656 = vmin.f32 %v654, %v647
          %v657 = vmin.f32 %v655, %v649
          %v658 = vmin.f32 %v656, %v651
          %v659 = vmin.f32 %v657, %v658
          %v660 = vrot.slane %v659, 4
          %v661 = vmin.f32 %v659, %v660
          %v662 = vrot.slane %v661, 2
          %v663 = vmin.f32 %v661, %v662
          %v664 = vrot.slane %v663, 1
          %v665 = vmin.f32 %v663, %v664
          %v666 = vmin.f32 %v638, %v642
          %v667 = vmin.f32 %v640, %v644
          %v668 = vmin.f32 %v666, %v646
          %v669 = vmin.f32 %v667, %v648
          %v670 = vmin.f32 %v668, %v650
          %v671 = vmin.f32 %v669, %v652
          %v672 = vmin.f32 %v670, %v671
          %v673 = vrot.slane %v672, 4
          %v674 = vmin.f32 %v672, %v673
          %v675 = vrot.slane %v674, 2
          %v676 = vmin.f32 %v674, %v675
          %v677 = vrot.slane %v676, 1
          %v678 = vmin.f32 %v676, %v677
          %vm679 = vcmp.lt.f32.partialorder %v665, 1e+30
          %vm680 = vcmp.lt.f32.partialorder %v678, 1e+30
          %vm681 = vcmp.eq.f32.partialorder %v637, %v665
          %vm682 = vcmp.eq.f32.partialorder %v638, %v678
          %vm683 = vcmp.eq.f32.partialorder %v639, %v665
          %vm684 = vcmp.eq.f32.partialorder %v640, %v678
          %vm685 = vcmp.eq.f32.partialorder %v641, %v665
          %vm686 = vcmp.eq.f32.partialorder %v642, %v678
          %vm687 = vcmp.eq.f32.partialorder %v643, %v665
          %vm688 = vcmp.eq.f32.partialorder %v644, %v678
          %vm689 = vcmp.eq.f32.partialorder %v645, %v665
          %vm690 = vcmp.eq.f32.partialorder %v646, %v678
          %vm691 = vcmp.eq.f32.partialorder %v647, %v665
          %vm692 = vcmp.eq.f32.partialorder %v648, %v678
          %vm693 = vcmp.eq.f32.partialorder %v649, %v665
          %vm694 = vcmp.eq.f32.partialorder %v650, %v678
          %vm695 = vcmp.eq.f32.partialorder %v651, %v665
          %vm696 = vcmp.eq.f32.partialorder %v652, %v678
          %v697 = vsel %vm681, %v323, 64
          %v698 = vsel %vm682, %v323, 64
          %v699 = vsel %vm683, %v324, 64
          %v700 = vsel %vm684, %v324, 64
          %v701 = vsel %vm685, %v325, 64
          %v702 = vsel %vm686, %v325, 64
          %v703 = vsel %vm687, %v326, 64
          %v704 = vsel %vm688, %v326, 64
          %v705 = vsel %vm689, %v327, 64
          %v706 = vsel %vm690, %v327, 64
          %v707 = vsel %vm691, %v328, 64
          %v708 = vsel %vm692, %v328, 64
          %v709 = vsel %vm693, %v329, 64
          %v710 = vsel %vm694, %v329, 64
          %v711 = vsel %vm695, %v330, 64
          %v712 = vsel %vm696, %v330, 64
          %vm713 = vcmp.lt.s32.totalorder %v697, %v701
          %v714 = vsel %vm713, %v697, %v701
          %vm715 = vcmp.lt.s32.totalorder %v699, %v703
          %v716 = vsel %vm715, %v699, %v703
          %vm717 = vcmp.lt.s32.totalorder %v714, %v705
          %v718 = vsel %vm717, %v714, %v705
          %vm719 = vcmp.lt.s32.totalorder %v716, %v707
          %v720 = vsel %vm719, %v716, %v707
          %vm721 = vcmp.lt.s32.totalorder %v718, %v709
          %v722 = vsel %vm721, %v718, %v709
          %vm723 = vcmp.lt.s32.totalorder %v720, %v711
          %v724 = vsel %vm723, %v720, %v711
          %vm725 = vcmp.lt.s32.totalorder %v722, %v724
          %v726 = vsel %vm725, %v722, %v724
          %v727 = vrot.slane %v726, 4
          %vm728 = vcmp.lt.s32.totalorder %v726, %v727
          %v729 = vsel %vm728, %v726, %v727
          %v730 = vrot.slane %v729, 2
          %vm731 = vcmp.lt.s32.totalorder %v729, %v730
          %v732 = vsel %vm731, %v729, %v730
          %v733 = vrot.slane %v732, 1
          %vm734 = vcmp.lt.s32.totalorder %v732, %v733
          %v735 = vsel %vm734, %v732, %v733
          %vm736 = vcmp.lt.s32.totalorder %v698, %v702
          %v737 = vsel %vm736, %v698, %v702
          %vm738 = vcmp.lt.s32.totalorder %v700, %v704
          %v739 = vsel %vm738, %v700, %v704
          %vm740 = vcmp.lt.s32.totalorder %v737, %v706
          %v741 = vsel %vm740, %v737, %v706
          %vm742 = vcmp.lt.s32.totalorder %v739, %v708
          %v743 = vsel %vm742, %v739, %v708
          %vm744 = vcmp.lt.s32.totalorder %v741, %v710
          %v745 = vsel %vm744, %v741, %v710
          %vm746 = vcmp.lt.s32.totalorder %v743, %v712
          %v747 = vsel %vm746, %v743, %v712
          %vm748 = vcmp.lt.s32.totalorder %v745, %v747
          %v749 = vsel %vm748, %v745, %v747
          %v750 = vrot.slane %v749, 4
          %vm751 = vcmp.lt.s32.totalorder %v749, %v750
          %v752 = vsel %vm751, %v749, %v750
          %v753 = vrot.slane %v752, 2
          %vm754 = vcmp.lt.s32.totalorder %v752, %v753
          %v755 = vsel %vm754, %v752, %v753
          %v756 = vrot.slane %v755, 1
          %vm757 = vcmp.lt.s32.totalorder %v755, %v756
          %v758 = vsel %vm757, %v755, %v756
          %vm759 = vcmp.eq.s32.totalorder %v323, %v735
          %vm760 = vcmp.eq.s32.totalorder %v323, %v758
          %vm761 = vcmp.eq.s32.totalorder %v324, %v735
          %vm762 = vcmp.eq.s32.totalorder %v324, %v758
          %vm763 = vcmp.eq.s32.totalorder %v325, %v735
          %vm764 = vcmp.eq.s32.totalorder %v325, %v758
          %vm765 = vcmp.eq.s32.totalorder %v326, %v735
          %vm766 = vcmp.eq.s32.totalorder %v326, %v758
          %vm767 = vcmp.eq.s32.totalorder %v327, %v735
          %vm768 = vcmp.eq.s32.totalorder %v327, %v758
          %vm769 = vcmp.eq.s32.totalorder %v328, %v735
          %vm770 = vcmp.eq.s32.totalorder %v328, %v758
          %vm771 = vcmp.eq.s32.totalorder %v329, %v735
          %vm772 = vcmp.eq.s32.totalorder %v329, %v758
          %vm773 = vcmp.eq.s32.totalorder %v330, %v735
          %vm774 = vcmp.eq.s32.totalorder %v330, %v758
          %v775 = vsel %vm759, %v517, 0.0
          %v776 = vsel %vm760, %v518, 0.0
          %v777 = vsel %vm761, %v519, 0.0
          %v778 = vsel %vm762, %v520, 0.0
          %v779 = vsel %vm763, %v521, 0.0
          %v780 = vsel %vm764, %v522, 0.0
          %v781 = vsel %vm765, %v523, 0.0
          %v782 = vsel %vm766, %v524, 0.0
          %v783 = vsel %vm767, %v525, 0.0
          %v784 = vsel %vm768, %v526, 0.0
          %v785 = vsel %vm769, %v527, 0.0
          %v786 = vsel %vm770, %v528, 0.0
          %v787 = vsel %vm771, %v529, 0.0
          %v788 = vsel %vm772, %v530, 0.0
          %v789 = vsel %vm773, %v531, 0.0
          %v790 = vsel %vm774, %v532, 0.0
          %v791 = vadd.f32 %v775, %v777
          %v792 = vadd.f32 %v791, %v779
          %v793 = vadd.f32 %v792, %v781
          %v794 = vadd.f32 %v793, %v783
          %v795 = vadd.f32 %v794, %v785
          %v796 = vadd.f32 %v795, %v787
          %v797 = vadd.f32 %v796, %v789
          %v798 = vrot.slane %v797, 4
          %v799 = vadd.f32 %v797, %v798
          %v800 = vrot.slane %v799, 2
          %v801 = vadd.f32 %v799, %v800
          %v802 = vrot.slane %v801, 1
          %v803 = vadd.f32 %v801, %v802
          %v804 = vadd.f32 %v776, %v778
          %v805 = vadd.f32 %v804, %v780
          %v806 = vadd.f32 %v805, %v782
          %v807 = vadd.f32 %v806, %v784
          %v808 = vadd.f32 %v807, %v786
          %v809 = vadd.f32 %v808, %v788
          %v810 = vadd.f32 %v809, %v790
          %v811 = vrot.slane %v810, 4
          %v812 = vadd.f32 %v810, %v811
          %v813 = vrot.slane %v812, 2
          %v814 = vadd.f32 %v812, %v813
          %v815 = vrot.slane %v814, 1
          %v816 = vadd.f32 %v814, %v815
          %v817 = vstv %s355
          %v818 = vadd.s32 %v817, %v735
          %v819 = vadd.s32 %v817, %v758
          %v820 = vsel %vm679, %v818, 4294967295
          %v821 = vsel %vm680, %v819, 4294967295
          %v822 = vcombine.low %v820, %v821
          %v824 = vunpack.c.l.s4 1966171168
          %v825 = vunpack.c.0.s8 %v824
          %v826 = vlaneseq
          %v827 = vshrl.u32 %v826, 7
          %v828 = vsub.s32 %v825, %v827
          %v829 = vrot.slane %v822, %v828
          %v831 = vunpack.c.l.s4 1966171168
          %v832 = vunpack.c.0.s8 %v831
          %v833 = vlaneseq
          %v834 = vshrl.u32 %v833, 7
          %v835 = vsub.s32 %v832, %v834
          %v836 = vrot.slane %v829, %v835
          %v837 = vlaneseq
          %vm838 = vcmp.ge.s32.totalorder %v837, 0
          %vm839 = vcmp.lt.s32.totalorder %v837, 256
          %vm840 = vmand %vm838, %vm839
          %841 = vst.msk [vmem:[%s269] ss:$8 sm:$0x3] %vm840, %v836
          %842 = vst.msk [vmem:[%s269] ss:$8 sm:$0x0] %vm840, %v836
          %v843 = vsel %vm679, %v665, -1.0
          %v844 = vsel %vm680, %v678, -1.0
          %v847 = vcombine.low %v843, %v844
          %v849 = vunpack.c.l.s4 1966171168
          %v850 = vunpack.c.0.s8 %v849
          %v851 = vlaneseq
          %v852 = vshrl.u32 %v851, 7
          %v853 = vsub.s32 %v850, %v852
          %v854 = vrot.slane %v847, %v853
          %v856 = vunpack.c.l.s4 1966171168
          %v857 = vunpack.c.0.s8 %v856
          %v858 = vlaneseq
          %v859 = vshrl.u32 %v858, 7
          %v860 = vsub.s32 %v857, %v859
          %v861 = vrot.slane %v854, %v860
          %863 = vst.msk [vmem:[%s276] ss:$8 sm:$0x3] %vm840, %v861
          %864 = vst.msk [vmem:[%s276] ss:$8 sm:$0x0] %vm840, %v861
          %v865 = vsel %vm679, %v803, -1.0
          %v866 = vsel %vm680, %v816, -1.0
          %v869 = vcombine.low %v865, %v866
          %v871 = vunpack.c.l.s4 1966171168
          %v872 = vunpack.c.0.s8 %v871
          %v873 = vlaneseq
          %v874 = vshrl.u32 %v873, 7
          %v875 = vsub.s32 %v872, %v874
          %v876 = vrot.slane %v869, %v875
          %v878 = vunpack.c.l.s4 1966171168
          %v879 = vunpack.c.0.s8 %v878
          %v880 = vlaneseq
          %v881 = vshrl.u32 %v880, 7
          %v882 = vsub.s32 %v879, %v881
          %v883 = vrot.slane %v876, %v882
          %885 = vst.msk [vmem:[%s283] ss:$8 sm:$0x3] %vm840, %v883
          %886 = vst.msk [vmem:[%s283] ss:$8 sm:$0x0] %vm840, %v883
          %v887 = vsel %vm759, 1e+30, %v637
          %v888 = vsel %vm760, 1e+30, %v638
          %v889 = vsel %vm761, 1e+30, %v639
          %v890 = vsel %vm762, 1e+30, %v640
          %v891 = vsel %vm763, 1e+30, %v641
          %v892 = vsel %vm764, 1e+30, %v642
          %v893 = vsel %vm765, 1e+30, %v643
          %v894 = vsel %vm766, 1e+30, %v644
          %v895 = vsel %vm767, 1e+30, %v645
          %v896 = vsel %vm768, 1e+30, %v646
          %v897 = vsel %vm769, 1e+30, %v647
          %v898 = vsel %vm770, 1e+30, %v648
          %v899 = vsel %vm771, 1e+30, %v649
          %v900 = vsel %vm772, 1e+30, %v650
          %v901 = vsel %vm773, 1e+30, %v651
          %v902 = vsel %vm774, 1e+30, %v652
          %v903 = vmin.f32 %v887, %v891
          %v904 = vmin.f32 %v889, %v893
          %v905 = vmin.f32 %v903, %v895
          %v906 = vmin.f32 %v904, %v897
          %v907 = vmin.f32 %v905, %v899
          %v908 = vmin.f32 %v906, %v901
          %v909 = vmin.f32 %v907, %v908
          %v910 = vrot.slane %v909, 4
          %v911 = vmin.f32 %v909, %v910
          %v912 = vrot.slane %v911, 2
          %v913 = vmin.f32 %v911, %v912
          %v914 = vrot.slane %v913, 1
          %v915 = vmin.f32 %v913, %v914
          %v916 = vmin.f32 %v888, %v892
          %v917 = vmin.f32 %v890, %v894
          %v918 = vmin.f32 %v916, %v896
          %v919 = vmin.f32 %v917, %v898
          %v920 = vmin.f32 %v918, %v900
          %v921 = vmin.f32 %v919, %v902
          %v922 = vmin.f32 %v920, %v921
          %v923 = vrot.slane %v922, 4
          %v924 = vmin.f32 %v922, %v923
          %v925 = vrot.slane %v924, 2
          %v926 = vmin.f32 %v924, %v925
          %v927 = vrot.slane %v926, 1
          %v928 = vmin.f32 %v926, %v927
          %vm929 = vcmp.lt.f32.partialorder %v915, 1e+30
          %vm930 = vcmp.lt.f32.partialorder %v928, 1e+30
          %vm931 = vcmp.eq.f32.partialorder %v887, %v915
          %vm932 = vcmp.eq.f32.partialorder %v888, %v928
          %vm933 = vcmp.eq.f32.partialorder %v889, %v915
          %vm934 = vcmp.eq.f32.partialorder %v890, %v928
          %vm935 = vcmp.eq.f32.partialorder %v891, %v915
          %vm936 = vcmp.eq.f32.partialorder %v892, %v928
          %vm937 = vcmp.eq.f32.partialorder %v893, %v915
          %vm938 = vcmp.eq.f32.partialorder %v894, %v928
          %vm939 = vcmp.eq.f32.partialorder %v895, %v915
          %vm940 = vcmp.eq.f32.partialorder %v896, %v928
          %vm941 = vcmp.eq.f32.partialorder %v897, %v915
          %vm942 = vcmp.eq.f32.partialorder %v898, %v928
          %vm943 = vcmp.eq.f32.partialorder %v899, %v915
          %vm944 = vcmp.eq.f32.partialorder %v900, %v928
          %vm945 = vcmp.eq.f32.partialorder %v901, %v915
          %vm946 = vcmp.eq.f32.partialorder %v902, %v928
          %v947 = vsel %vm931, %v323, 64
          %v948 = vsel %vm932, %v323, 64
          %v949 = vsel %vm933, %v324, 64
          %v950 = vsel %vm934, %v324, 64
          %v951 = vsel %vm935, %v325, 64
          %v952 = vsel %vm936, %v325, 64
          %v953 = vsel %vm937, %v326, 64
          %v954 = vsel %vm938, %v326, 64
          %v955 = vsel %vm939, %v327, 64
          %v956 = vsel %vm940, %v327, 64
          %v957 = vsel %vm941, %v328, 64
          %v958 = vsel %vm942, %v328, 64
          %v959 = vsel %vm943, %v329, 64
          %v960 = vsel %vm944, %v329, 64
          %v961 = vsel %vm945, %v330, 64
          %v962 = vsel %vm946, %v330, 64
          %vm963 = vcmp.lt.s32.totalorder %v947, %v951
          %v964 = vsel %vm963, %v947, %v951
          %vm965 = vcmp.lt.s32.totalorder %v949, %v953
          %v966 = vsel %vm965, %v949, %v953
          %vm967 = vcmp.lt.s32.totalorder %v964, %v955
          %v968 = vsel %vm967, %v964, %v955
          %vm969 = vcmp.lt.s32.totalorder %v966, %v957
          %v970 = vsel %vm969, %v966, %v957
          %vm971 = vcmp.lt.s32.totalorder %v968, %v959
          %v972 = vsel %vm971, %v968, %v959
          %vm973 = vcmp.lt.s32.totalorder %v970, %v961
          %v974 = vsel %vm973, %v970, %v961
          %vm975 = vcmp.lt.s32.totalorder %v972, %v974
          %v976 = vsel %vm975, %v972, %v974
          %v977 = vrot.slane %v976, 4
          %vm978 = vcmp.lt.s32.totalorder %v976, %v977
          %v979 = vsel %vm978, %v976, %v977
          %v980 = vrot.slane %v979, 2
          %vm981 = vcmp.lt.s32.totalorder %v979, %v980
          %v982 = vsel %vm981, %v979, %v980
          %v983 = vrot.slane %v982, 1
          %vm984 = vcmp.lt.s32.totalorder %v982, %v983
          %v985 = vsel %vm984, %v982, %v983
          %vm986 = vcmp.lt.s32.totalorder %v948, %v952
          %v987 = vsel %vm986, %v948, %v952
          %vm988 = vcmp.lt.s32.totalorder %v950, %v954
          %v989 = vsel %vm988, %v950, %v954
          %vm990 = vcmp.lt.s32.totalorder %v987, %v956
          %v991 = vsel %vm990, %v987, %v956
          %vm992 = vcmp.lt.s32.totalorder %v989, %v958
          %v993 = vsel %vm992, %v989, %v958
          %vm994 = vcmp.lt.s32.totalorder %v991, %v960
          %v995 = vsel %vm994, %v991, %v960
          %vm996 = vcmp.lt.s32.totalorder %v993, %v962
          %v997 = vsel %vm996, %v993, %v962
          %vm998 = vcmp.lt.s32.totalorder %v995, %v997
          %v999 = vsel %vm998, %v995, %v997
          %v1000 = vrot.slane %v999, 4
          %vm1001 = vcmp.lt.s32.totalorder %v999, %v1000
          %v1002 = vsel %vm1001, %v999, %v1000
          %v1003 = vrot.slane %v1002, 2
          %vm1004 = vcmp.lt.s32.totalorder %v1002, %v1003
          %v1005 = vsel %vm1004, %v1002, %v1003
          %v1006 = vrot.slane %v1005, 1
          %vm1007 = vcmp.lt.s32.totalorder %v1005, %v1006
          %v1008 = vsel %vm1007, %v1005, %v1006
          %vm1009 = vcmp.eq.s32.totalorder %v323, %v985
          %vm1010 = vcmp.eq.s32.totalorder %v323, %v1008
          %vm1011 = vcmp.eq.s32.totalorder %v324, %v985
          %vm1012 = vcmp.eq.s32.totalorder %v324, %v1008
          %vm1013 = vcmp.eq.s32.totalorder %v325, %v985
          %vm1014 = vcmp.eq.s32.totalorder %v325, %v1008
          %vm1015 = vcmp.eq.s32.totalorder %v326, %v985
          %vm1016 = vcmp.eq.s32.totalorder %v326, %v1008
          %vm1017 = vcmp.eq.s32.totalorder %v327, %v985
          %vm1018 = vcmp.eq.s32.totalorder %v327, %v1008
          %vm1019 = vcmp.eq.s32.totalorder %v328, %v985
          %vm1020 = vcmp.eq.s32.totalorder %v328, %v1008
          %vm1021 = vcmp.eq.s32.totalorder %v329, %v985
          %vm1022 = vcmp.eq.s32.totalorder %v329, %v1008
          %vm1023 = vcmp.eq.s32.totalorder %v330, %v985
          %vm1024 = vcmp.eq.s32.totalorder %v330, %v1008
          %v1025 = vsel %vm1009, %v517, 0.0
          %v1026 = vsel %vm1010, %v518, 0.0
          %v1027 = vsel %vm1011, %v519, 0.0
          %v1028 = vsel %vm1012, %v520, 0.0
          %v1029 = vsel %vm1013, %v521, 0.0
          %v1030 = vsel %vm1014, %v522, 0.0
          %v1031 = vsel %vm1015, %v523, 0.0
          %v1032 = vsel %vm1016, %v524, 0.0
          %v1033 = vsel %vm1017, %v525, 0.0
          %v1034 = vsel %vm1018, %v526, 0.0
          %v1035 = vsel %vm1019, %v527, 0.0
          %v1036 = vsel %vm1020, %v528, 0.0
          %v1037 = vsel %vm1021, %v529, 0.0
          %v1038 = vsel %vm1022, %v530, 0.0
          %v1039 = vsel %vm1023, %v531, 0.0
          %v1040 = vsel %vm1024, %v532, 0.0
          %v1041 = vadd.f32 %v1025, %v1027
          %v1042 = vadd.f32 %v1041, %v1029
          %v1043 = vadd.f32 %v1042, %v1031
          %v1044 = vadd.f32 %v1043, %v1033
          %v1045 = vadd.f32 %v1044, %v1035
          %v1046 = vadd.f32 %v1045, %v1037
          %v1047 = vadd.f32 %v1046, %v1039
          %v1048 = vrot.slane %v1047, 4
          %v1049 = vadd.f32 %v1047, %v1048
          %v1050 = vrot.slane %v1049, 2
          %v1051 = vadd.f32 %v1049, %v1050
          %v1052 = vrot.slane %v1051, 1
          %v1053 = vadd.f32 %v1051, %v1052
          %v1054 = vadd.f32 %v1026, %v1028
          %v1055 = vadd.f32 %v1054, %v1030
          %v1056 = vadd.f32 %v1055, %v1032
          %v1057 = vadd.f32 %v1056, %v1034
          %v1058 = vadd.f32 %v1057, %v1036
          %v1059 = vadd.f32 %v1058, %v1038
          %v1060 = vadd.f32 %v1059, %v1040
          %v1061 = vrot.slane %v1060, 4
          %v1062 = vadd.f32 %v1060, %v1061
          %v1063 = vrot.slane %v1062, 2
          %v1064 = vadd.f32 %v1062, %v1063
          %v1065 = vrot.slane %v1064, 1
          %v1066 = vadd.f32 %v1064, %v1065
          %v1067 = vadd.s32 %v817, %v985
          %v1068 = vadd.s32 %v817, %v1008
          %v1069 = vsel %vm929, %v1067, 4294967295
          %v1070 = vsel %vm930, %v1068, 4294967295
          %v1071 = vcombine.low %v1069, %v1070
          %v1073 = vunpack.c.l.s4 1966171168
          %v1074 = vunpack.c.0.s8 %v1073
          %v1075 = vlaneseq
          %v1076 = vshrl.u32 %v1075, 7
          %v1077 = vsub.s32 %v1074, %v1076
          %v1078 = vrot.slane %v1071, %v1077
          %v1080 = vunpack.c.l.s4 1966171168
          %v1081 = vunpack.c.0.s8 %v1080
          %v1082 = vlaneseq
          %v1083 = vshrl.u32 %v1082, 7
          %v1084 = vsub.s32 %v1081, %v1083
          %v1085 = vrot.slane %v1078, %v1084
          %s1086 = scalar_lea.vmem %s269, 1 [#allocation5]
          %1087 = vst.msk [vmem:[%s1086] ss:$8 sm:$0x3] %vm840, %v1085
          %1088 = vst.msk [vmem:[%s1086] ss:$8 sm:$0x0] %vm840, %v1085
          %v1089 = vsel %vm929, %v915, -1.0
          %v1090 = vsel %vm930, %v928, -1.0
          %v1093 = vcombine.low %v1089, %v1090
          %v1095 = vunpack.c.l.s4 1966171168
          %v1096 = vunpack.c.0.s8 %v1095
          %v1097 = vlaneseq
          %v1098 = vshrl.u32 %v1097, 7
          %v1099 = vsub.s32 %v1096, %v1098
          %v1100 = vrot.slane %v1093, %v1099
          %v1102 = vunpack.c.l.s4 1966171168
          %v1103 = vunpack.c.0.s8 %v1102
          %v1104 = vlaneseq
          %v1105 = vshrl.u32 %v1104, 7
          %v1106 = vsub.s32 %v1103, %v1105
          %v1107 = vrot.slane %v1100, %v1106
          %s1109 = scalar_lea.vmem %s276, 1 [#allocation6]
          %1110 = vst.msk [vmem:[%s1109] ss:$8 sm:$0x3] %vm840, %v1107
          %1111 = vst.msk [vmem:[%s1109] ss:$8 sm:$0x0] %vm840, %v1107
          %v1112 = vsel %vm929, %v1053, -1.0
          %v1113 = vsel %vm930, %v1066, -1.0
          %v1116 = vcombine.low %v1112, %v1113
          %v1118 = vunpack.c.l.s4 1966171168
          %v1119 = vunpack.c.0.s8 %v1118
          %v1120 = vlaneseq
          %v1121 = vshrl.u32 %v1120, 7
          %v1122 = vsub.s32 %v1119, %v1121
          %v1123 = vrot.slane %v1116, %v1122
          %v1125 = vunpack.c.l.s4 1966171168
          %v1126 = vunpack.c.0.s8 %v1125
          %v1127 = vlaneseq
          %v1128 = vshrl.u32 %v1127, 7
          %v1129 = vsub.s32 %v1126, %v1128
          %v1130 = vrot.slane %v1123, %v1129
          %s1132 = scalar_lea.vmem %s283, 1 [#allocation8]
          %1133 = vst.msk [vmem:[%s1132] ss:$8 sm:$0x3] %vm840, %v1130
          %1134 = vst.msk [vmem:[%s1132] ss:$8 sm:$0x0] %vm840, %v1130
          %v1135 = vsel %vm1009, 1e+30, %v887
          %v1136 = vsel %vm1010, 1e+30, %v888
          %v1137 = vsel %vm1011, 1e+30, %v889
          %v1138 = vsel %vm1012, 1e+30, %v890
          %v1139 = vsel %vm1013, 1e+30, %v891
          %v1140 = vsel %vm1014, 1e+30, %v892
          %v1141 = vsel %vm1015, 1e+30, %v893
          %v1142 = vsel %vm1016, 1e+30, %v894
          %v1143 = vsel %vm1017, 1e+30, %v895
          %v1144 = vsel %vm1018, 1e+30, %v896
          %v1145 = vsel %vm1019, 1e+30, %v897
          %v1146 = vsel %vm1020, 1e+30, %v898
          %v1147 = vsel %vm1021, 1e+30, %v899
          %v1148 = vsel %vm1022, 1e+30, %v900
          %v1149 = vsel %vm1023, 1e+30, %v901
          %v1150 = vsel %vm1024, 1e+30, %v902
          %v1151 = vmin.f32 %v1135, %v1139
          %v1152 = vmin.f32 %v1137, %v1141
          %v1153 = vmin.f32 %v1151, %v1143
          %v1154 = vmin.f32 %v1152, %v1145
          %v1155 = vmin.f32 %v1153, %v1147
          %v1156 = vmin.f32 %v1154, %v1149
          %v1157 = vmin.f32 %v1155, %v1156
          %v1158 = vrot.slane %v1157, 4
          %v1159 = vmin.f32 %v1157, %v1158
          %v1160 = vrot.slane %v1159, 2
          %v1161 = vmin.f32 %v1159, %v1160
          %v1162 = vrot.slane %v1161, 1
          %v1163 = vmin.f32 %v1161, %v1162
          %v1164 = vmin.f32 %v1136, %v1140
          %v1165 = vmin.f32 %v1138, %v1142
          %v1166 = vmin.f32 %v1164, %v1144
          %v1167 = vmin.f32 %v1165, %v1146
          %v1168 = vmin.f32 %v1166, %v1148
          %v1169 = vmin.f32 %v1167, %v1150
          %v1170 = vmin.f32 %v1168, %v1169
          %v1171 = vrot.slane %v1170, 4
          %v1172 = vmin.f32 %v1170, %v1171
          %v1173 = vrot.slane %v1172, 2
          %v1174 = vmin.f32 %v1172, %v1173
          %v1175 = vrot.slane %v1174, 1
          %v1176 = vmin.f32 %v1174, %v1175
          %vm1177 = vcmp.lt.f32.partialorder %v1163, 1e+30
          %vm1178 = vcmp.lt.f32.partialorder %v1176, 1e+30
          %vm1179 = vcmp.eq.f32.partialorder %v1135, %v1163
          %vm1180 = vcmp.eq.f32.partialorder %v1136, %v1176
          %vm1181 = vcmp.eq.f32.partialorder %v1137, %v1163
          %vm1182 = vcmp.eq.f32.partialorder %v1138, %v1176
          %vm1183 = vcmp.eq.f32.partialorder %v1139, %v1163
          %vm1184 = vcmp.eq.f32.partialorder %v1140, %v1176
          %vm1185 = vcmp.eq.f32.partialorder %v1141, %v1163
          %vm1186 = vcmp.eq.f32.partialorder %v1142, %v1176
          %vm1187 = vcmp.eq.f32.partialorder %v1143, %v1163
          %vm1188 = vcmp.eq.f32.partialorder %v1144, %v1176
          %vm1189 = vcmp.eq.f32.partialorder %v1145, %v1163
          %vm1190 = vcmp.eq.f32.partialorder %v1146, %v1176
          %vm1191 = vcmp.eq.f32.partialorder %v1147, %v1163
          %vm1192 = vcmp.eq.f32.partialorder %v1148, %v1176
          %vm1193 = vcmp.eq.f32.partialorder %v1149, %v1163
          %vm1194 = vcmp.eq.f32.partialorder %v1150, %v1176
          %v1195 = vsel %vm1179, %v323, 64
          %v1196 = vsel %vm1180, %v323, 64
          %v1197 = vsel %vm1181, %v324, 64
          %v1198 = vsel %vm1182, %v324, 64
          %v1199 = vsel %vm1183, %v325, 64
          %v1200 = vsel %vm1184, %v325, 64
          %v1201 = vsel %vm1185, %v326, 64
          %v1202 = vsel %vm1186, %v326, 64
          %v1203 = vsel %vm1187, %v327, 64
          %v1204 = vsel %vm1188, %v327, 64
          %v1205 = vsel %vm1189, %v328, 64
          %v1206 = vsel %vm1190, %v328, 64
          %v1207 = vsel %vm1191, %v329, 64
          %v1208 = vsel %vm1192, %v329, 64
          %v1209 = vsel %vm1193, %v330, 64
          %v1210 = vsel %vm1194, %v330, 64
          %vm1211 = vcmp.lt.s32.totalorder %v1195, %v1199
          %v1212 = vsel %vm1211, %v1195, %v1199
          %vm1213 = vcmp.lt.s32.totalorder %v1197, %v1201
          %v1214 = vsel %vm1213, %v1197, %v1201
          %vm1215 = vcmp.lt.s32.totalorder %v1212, %v1203
          %v1216 = vsel %vm1215, %v1212, %v1203
          %vm1217 = vcmp.lt.s32.totalorder %v1214, %v1205
          %v1218 = vsel %vm1217, %v1214, %v1205
          %vm1219 = vcmp.lt.s32.totalorder %v1216, %v1207
          %v1220 = vsel %vm1219, %v1216, %v1207
          %vm1221 = vcmp.lt.s32.totalorder %v1218, %v1209
          %v1222 = vsel %vm1221, %v1218, %v1209
          %vm1223 = vcmp.lt.s32.totalorder %v1220, %v1222
          %v1224 = vsel %vm1223, %v1220, %v1222
          %v1225 = vrot.slane %v1224, 4
          %vm1226 = vcmp.lt.s32.totalorder %v1224, %v1225
          %v1227 = vsel %vm1226, %v1224, %v1225
          %v1228 = vrot.slane %v1227, 2
          %vm1229 = vcmp.lt.s32.totalorder %v1227, %v1228
          %v1230 = vsel %vm1229, %v1227, %v1228
          %v1231 = vrot.slane %v1230, 1
          %vm1232 = vcmp.lt.s32.totalorder %v1230, %v1231
          %v1233 = vsel %vm1232, %v1230, %v1231
          %vm1234 = vcmp.lt.s32.totalorder %v1196, %v1200
          %v1235 = vsel %vm1234, %v1196, %v1200
          %vm1236 = vcmp.lt.s32.totalorder %v1198, %v1202
          %v1237 = vsel %vm1236, %v1198, %v1202
          %vm1238 = vcmp.lt.s32.totalorder %v1235, %v1204
          %v1239 = vsel %vm1238, %v1235, %v1204
          %vm1240 = vcmp.lt.s32.totalorder %v1237, %v1206
          %v1241 = vsel %vm1240, %v1237, %v1206
          %vm1242 = vcmp.lt.s32.totalorder %v1239, %v1208
          %v1243 = vsel %vm1242, %v1239, %v1208
          %vm1244 = vcmp.lt.s32.totalorder %v1241, %v1210
          %v1245 = vsel %vm1244, %v1241, %v1210
          %vm1246 = vcmp.lt.s32.totalorder %v1243, %v1245
          %v1247 = vsel %vm1246, %v1243, %v1245
          %v1248 = vrot.slane %v1247, 4
          %vm1249 = vcmp.lt.s32.totalorder %v1247, %v1248
          %v1250 = vsel %vm1249, %v1247, %v1248
          %v1251 = vrot.slane %v1250, 2
          %vm1252 = vcmp.lt.s32.totalorder %v1250, %v1251
          %v1253 = vsel %vm1252, %v1250, %v1251
          %v1254 = vrot.slane %v1253, 1
          %vm1255 = vcmp.lt.s32.totalorder %v1253, %v1254
          %v1256 = vsel %vm1255, %v1253, %v1254
          %vm1257 = vcmp.eq.s32.totalorder %v323, %v1233
          %vm1258 = vcmp.eq.s32.totalorder %v323, %v1256
          %vm1259 = vcmp.eq.s32.totalorder %v324, %v1233
          %vm1260 = vcmp.eq.s32.totalorder %v324, %v1256
          %vm1261 = vcmp.eq.s32.totalorder %v325, %v1233
          %vm1262 = vcmp.eq.s32.totalorder %v325, %v1256
          %vm1263 = vcmp.eq.s32.totalorder %v326, %v1233
          %vm1264 = vcmp.eq.s32.totalorder %v326, %v1256
          %vm1265 = vcmp.eq.s32.totalorder %v327, %v1233
          %vm1266 = vcmp.eq.s32.totalorder %v327, %v1256
          %vm1267 = vcmp.eq.s32.totalorder %v328, %v1233
          %vm1268 = vcmp.eq.s32.totalorder %v328, %v1256
          %vm1269 = vcmp.eq.s32.totalorder %v329, %v1233
          %vm1270 = vcmp.eq.s32.totalorder %v329, %v1256
          %vm1271 = vcmp.eq.s32.totalorder %v330, %v1233
          %vm1272 = vcmp.eq.s32.totalorder %v330, %v1256
          %v1273 = vsel %vm1257, %v517, 0.0
          %v1274 = vsel %vm1258, %v518, 0.0
          %v1275 = vsel %vm1259, %v519, 0.0
          %v1276 = vsel %vm1260, %v520, 0.0
          %v1277 = vsel %vm1261, %v521, 0.0
          %v1278 = vsel %vm1262, %v522, 0.0
          %v1279 = vsel %vm1263, %v523, 0.0
          %v1280 = vsel %vm1264, %v524, 0.0
          %v1281 = vsel %vm1265, %v525, 0.0
          %v1282 = vsel %vm1266, %v526, 0.0
          %v1283 = vsel %vm1267, %v527, 0.0
          %v1284 = vsel %vm1268, %v528, 0.0
          %v1285 = vsel %vm1269, %v529, 0.0
          %v1286 = vsel %vm1270, %v530, 0.0
          %v1287 = vsel %vm1271, %v531, 0.0
          %v1288 = vsel %vm1272, %v532, 0.0
          %v1289 = vadd.f32 %v1273, %v1275
          %v1290 = vadd.f32 %v1289, %v1277
          %v1291 = vadd.f32 %v1290, %v1279
          %v1292 = vadd.f32 %v1291, %v1281
          %v1293 = vadd.f32 %v1292, %v1283
          %v1294 = vadd.f32 %v1293, %v1285
          %v1295 = vadd.f32 %v1294, %v1287
          %v1296 = vrot.slane %v1295, 4
          %v1297 = vadd.f32 %v1295, %v1296
          %v1298 = vrot.slane %v1297, 2
          %v1299 = vadd.f32 %v1297, %v1298
          %v1300 = vrot.slane %v1299, 1
          %v1301 = vadd.f32 %v1299, %v1300
          %v1302 = vadd.f32 %v1274, %v1276
          %v1303 = vadd.f32 %v1302, %v1278
          %v1304 = vadd.f32 %v1303, %v1280
          %v1305 = vadd.f32 %v1304, %v1282
          %v1306 = vadd.f32 %v1305, %v1284
          %v1307 = vadd.f32 %v1306, %v1286
          %v1308 = vadd.f32 %v1307, %v1288
          %v1309 = vrot.slane %v1308, 4
          %v1310 = vadd.f32 %v1308, %v1309
          %v1311 = vrot.slane %v1310, 2
          %v1312 = vadd.f32 %v1310, %v1311
          %v1313 = vrot.slane %v1312, 1
          %v1314 = vadd.f32 %v1312, %v1313
          %v1315 = vadd.s32 %v817, %v1233
          %v1316 = vadd.s32 %v817, %v1256
          %v1317 = vsel %vm1177, %v1315, 4294967295
          %v1318 = vsel %vm1178, %v1316, 4294967295
          %v1319 = vcombine.low %v1317, %v1318
          %v1321 = vunpack.c.l.s4 1966171168
          %v1322 = vunpack.c.0.s8 %v1321
          %v1323 = vlaneseq
          %v1324 = vshrl.u32 %v1323, 7
          %v1325 = vsub.s32 %v1322, %v1324
          %v1326 = vrot.slane %v1319, %v1325
          %v1328 = vunpack.c.l.s4 1966171168
          %v1329 = vunpack.c.0.s8 %v1328
          %v1330 = vlaneseq
          %v1331 = vshrl.u32 %v1330, 7
          %v1332 = vsub.s32 %v1329, %v1331
          %v1333 = vrot.slane %v1326, %v1332
          %s1334 = scalar_lea.vmem %s269, 2 [#allocation5]
          %1335 = vst.msk [vmem:[%s1334] ss:$8 sm:$0x3] %vm840, %v1333
          %1336 = vst.msk [vmem:[%s1334] ss:$8 sm:$0x0] %vm840, %v1333
          %v1337 = vsel %vm1177, %v1163, -1.0
          %v1338 = vsel %vm1178, %v1176, -1.0
          %v1341 = vcombine.low %v1337, %v1338
          %v1343 = vunpack.c.l.s4 1966171168
          %v1344 = vunpack.c.0.s8 %v1343
          %v1345 = vlaneseq
          %v1346 = vshrl.u32 %v1345, 7
          %v1347 = vsub.s32 %v1344, %v1346
          %v1348 = vrot.slane %v1341, %v1347
          %v1350 = vunpack.c.l.s4 1966171168
          %v1351 = vunpack.c.0.s8 %v1350
          %v1352 = vlaneseq
          %v1353 = vshrl.u32 %v1352, 7
          %v1354 = vsub.s32 %v1351, %v1353
          %v1355 = vrot.slane %v1348, %v1354
          %s1357 = scalar_lea.vmem %s276, 2 [#allocation6]
          %1358 = vst.msk [vmem:[%s1357] ss:$8 sm:$0x3] %vm840, %v1355
          %1359 = vst.msk [vmem:[%s1357] ss:$8 sm:$0x0] %vm840, %v1355
          %v1360 = vsel %vm1177, %v1301, -1.0
          %v1361 = vsel %vm1178, %v1314, -1.0
          %v1364 = vcombine.low %v1360, %v1361
          %v1366 = vunpack.c.l.s4 1966171168
          %v1367 = vunpack.c.0.s8 %v1366
          %v1368 = vlaneseq
          %v1369 = vshrl.u32 %v1368, 7
          %v1370 = vsub.s32 %v1367, %v1369
          %v1371 = vrot.slane %v1364, %v1370
          %v1373 = vunpack.c.l.s4 1966171168
          %v1374 = vunpack.c.0.s8 %v1373
          %v1375 = vlaneseq
          %v1376 = vshrl.u32 %v1375, 7
          %v1377 = vsub.s32 %v1374, %v1376
          %v1378 = vrot.slane %v1371, %v1377
          %s1380 = scalar_lea.vmem %s283, 2 [#allocation8]
          %1381 = vst.msk [vmem:[%s1380] ss:$8 sm:$0x3] %vm840, %v1378
          %1382 = vst.msk [vmem:[%s1380] ss:$8 sm:$0x0] %vm840, %v1378
          %v1383 = vsel %vm1257, 1e+30, %v1135
          %v1384 = vsel %vm1258, 1e+30, %v1136
          %v1385 = vsel %vm1259, 1e+30, %v1137
          %v1386 = vsel %vm1260, 1e+30, %v1138
          %v1387 = vsel %vm1261, 1e+30, %v1139
          %v1388 = vsel %vm1262, 1e+30, %v1140
          %v1389 = vsel %vm1263, 1e+30, %v1141
          %v1390 = vsel %vm1264, 1e+30, %v1142
          %v1391 = vsel %vm1265, 1e+30, %v1143
          %v1392 = vsel %vm1266, 1e+30, %v1144
          %v1393 = vsel %vm1267, 1e+30, %v1145
          %v1394 = vsel %vm1268, 1e+30, %v1146
          %v1395 = vsel %vm1269, 1e+30, %v1147
          %v1396 = vsel %vm1270, 1e+30, %v1148
          %v1397 = vsel %vm1271, 1e+30, %v1149
          %v1398 = vsel %vm1272, 1e+30, %v1150
          %v1399 = vmin.f32 %v1383, %v1387
          %v1400 = vmin.f32 %v1385, %v1389
          %v1401 = vmin.f32 %v1399, %v1391
          %v1402 = vmin.f32 %v1400, %v1393
          %v1403 = vmin.f32 %v1401, %v1395
          %v1404 = vmin.f32 %v1402, %v1397
          %v1405 = vmin.f32 %v1403, %v1404
          %v1406 = vrot.slane %v1405, 4
          %v1407 = vmin.f32 %v1405, %v1406
          %v1408 = vrot.slane %v1407, 2
          %v1409 = vmin.f32 %v1407, %v1408
          %v1410 = vrot.slane %v1409, 1
          %v1411 = vmin.f32 %v1409, %v1410
          %v1412 = vmin.f32 %v1384, %v1388
          %v1413 = vmin.f32 %v1386, %v1390
          %v1414 = vmin.f32 %v1412, %v1392
          %v1415 = vmin.f32 %v1413, %v1394
          %v1416 = vmin.f32 %v1414, %v1396
          %v1417 = vmin.f32 %v1415, %v1398
          %v1418 = vmin.f32 %v1416, %v1417
          %v1419 = vrot.slane %v1418, 4
          %v1420 = vmin.f32 %v1418, %v1419
          %v1421 = vrot.slane %v1420, 2
          %v1422 = vmin.f32 %v1420, %v1421
          %v1423 = vrot.slane %v1422, 1
          %v1424 = vmin.f32 %v1422, %v1423
          %vm1425 = vcmp.lt.f32.partialorder %v1411, 1e+30
          %vm1426 = vcmp.lt.f32.partialorder %v1424, 1e+30
          %vm1427 = vcmp.eq.f32.partialorder %v1383, %v1411
          %vm1428 = vcmp.eq.f32.partialorder %v1384, %v1424
          %vm1429 = vcmp.eq.f32.partialorder %v1385, %v1411
          %vm1430 = vcmp.eq.f32.partialorder %v1386, %v1424
          %vm1431 = vcmp.eq.f32.partialorder %v1387, %v1411
          %vm1432 = vcmp.eq.f32.partialorder %v1388, %v1424
          %vm1433 = vcmp.eq.f32.partialorder %v1389, %v1411
          %vm1434 = vcmp.eq.f32.partialorder %v1390, %v1424
          %vm1435 = vcmp.eq.f32.partialorder %v1391, %v1411
          %vm1436 = vcmp.eq.f32.partialorder %v1392, %v1424
          %vm1437 = vcmp.eq.f32.partialorder %v1393, %v1411
          %vm1438 = vcmp.eq.f32.partialorder %v1394, %v1424
          %vm1439 = vcmp.eq.f32.partialorder %v1395, %v1411
          %vm1440 = vcmp.eq.f32.partialorder %v1396, %v1424
          %vm1441 = vcmp.eq.f32.partialorder %v1397, %v1411
          %vm1442 = vcmp.eq.f32.partialorder %v1398, %v1424
          %v1443 = vsel %vm1427, %v323, 64
          %v1444 = vsel %vm1428, %v323, 64
          %v1445 = vsel %vm1429, %v324, 64
          %v1446 = vsel %vm1430, %v324, 64
          %v1447 = vsel %vm1431, %v325, 64
          %v1448 = vsel %vm1432, %v325, 64
          %v1449 = vsel %vm1433, %v326, 64
          %v1450 = vsel %vm1434, %v326, 64
          %v1451 = vsel %vm1435, %v327, 64
          %v1452 = vsel %vm1436, %v327, 64
          %v1453 = vsel %vm1437, %v328, 64
          %v1454 = vsel %vm1438, %v328, 64
          %v1455 = vsel %vm1439, %v329, 64
          %v1456 = vsel %vm1440, %v329, 64
          %v1457 = vsel %vm1441, %v330, 64
          %v1458 = vsel %vm1442, %v330, 64
          %vm1459 = vcmp.lt.s32.totalorder %v1443, %v1447
          %v1460 = vsel %vm1459, %v1443, %v1447
          %vm1461 = vcmp.lt.s32.totalorder %v1445, %v1449
          %v1462 = vsel %vm1461, %v1445, %v1449
          %vm1463 = vcmp.lt.s32.totalorder %v1460, %v1451
          %v1464 = vsel %vm1463, %v1460, %v1451
          %vm1465 = vcmp.lt.s32.totalorder %v1462, %v1453
          %v1466 = vsel %vm1465, %v1462, %v1453
          %vm1467 = vcmp.lt.s32.totalorder %v1464, %v1455
          %v1468 = vsel %vm1467, %v1464, %v1455
          %vm1469 = vcmp.lt.s32.totalorder %v1466, %v1457
          %v1470 = vsel %vm1469, %v1466, %v1457
          %vm1471 = vcmp.lt.s32.totalorder %v1468, %v1470
          %v1472 = vsel %vm1471, %v1468, %v1470
          %v1473 = vrot.slane %v1472, 4
          %vm1474 = vcmp.lt.s32.totalorder %v1472, %v1473
          %v1475 = vsel %vm1474, %v1472, %v1473
          %v1476 = vrot.slane %v1475, 2
          %vm1477 = vcmp.lt.s32.totalorder %v1475, %v1476
          %v1478 = vsel %vm1477, %v1475, %v1476
          %v1479 = vrot.slane %v1478, 1
          %vm1480 = vcmp.lt.s32.totalorder %v1478, %v1479
          %v1481 = vsel %vm1480, %v1478, %v1479
          %vm1482 = vcmp.lt.s32.totalorder %v1444, %v1448
          %v1483 = vsel %vm1482, %v1444, %v1448
          %vm1484 = vcmp.lt.s32.totalorder %v1446, %v1450
          %v1485 = vsel %vm1484, %v1446, %v1450
          %vm1486 = vcmp.lt.s32.totalorder %v1483, %v1452
          %v1487 = vsel %vm1486, %v1483, %v1452
          %vm1488 = vcmp.lt.s32.totalorder %v1485, %v1454
          %v1489 = vsel %vm1488, %v1485, %v1454
          %vm1490 = vcmp.lt.s32.totalorder %v1487, %v1456
          %v1491 = vsel %vm1490, %v1487, %v1456
          %vm1492 = vcmp.lt.s32.totalorder %v1489, %v1458
          %v1493 = vsel %vm1492, %v1489, %v1458
          %vm1494 = vcmp.lt.s32.totalorder %v1491, %v1493
          %v1495 = vsel %vm1494, %v1491, %v1493
          %v1496 = vrot.slane %v1495, 4
          %vm1497 = vcmp.lt.s32.totalorder %v1495, %v1496
          %v1498 = vsel %vm1497, %v1495, %v1496
          %v1499 = vrot.slane %v1498, 2
          %vm1500 = vcmp.lt.s32.totalorder %v1498, %v1499
          %v1501 = vsel %vm1500, %v1498, %v1499
          %v1502 = vrot.slane %v1501, 1
          %vm1503 = vcmp.lt.s32.totalorder %v1501, %v1502
          %v1504 = vsel %vm1503, %v1501, %v1502
          %vm1505 = vcmp.eq.s32.totalorder %v323, %v1481
          %vm1506 = vcmp.eq.s32.totalorder %v323, %v1504
          %vm1507 = vcmp.eq.s32.totalorder %v324, %v1481
          %vm1508 = vcmp.eq.s32.totalorder %v324, %v1504
          %vm1509 = vcmp.eq.s32.totalorder %v325, %v1481
          %vm1510 = vcmp.eq.s32.totalorder %v325, %v1504
          %vm1511 = vcmp.eq.s32.totalorder %v326, %v1481
          %vm1512 = vcmp.eq.s32.totalorder %v326, %v1504
          %vm1513 = vcmp.eq.s32.totalorder %v327, %v1481
          %vm1514 = vcmp.eq.s32.totalorder %v327, %v1504
          %vm1515 = vcmp.eq.s32.totalorder %v328, %v1481
          %vm1516 = vcmp.eq.s32.totalorder %v328, %v1504
          %vm1517 = vcmp.eq.s32.totalorder %v329, %v1481
          %vm1518 = vcmp.eq.s32.totalorder %v329, %v1504
          %vm1519 = vcmp.eq.s32.totalorder %v330, %v1481
          %vm1520 = vcmp.eq.s32.totalorder %v330, %v1504
          %v1521 = vsel %vm1505, %v517, 0.0
          %v1522 = vsel %vm1506, %v518, 0.0
          %v1523 = vsel %vm1507, %v519, 0.0
          %v1524 = vsel %vm1508, %v520, 0.0
          %v1525 = vsel %vm1509, %v521, 0.0
          %v1526 = vsel %vm1510, %v522, 0.0
          %v1527 = vsel %vm1511, %v523, 0.0
          %v1528 = vsel %vm1512, %v524, 0.0
          %v1529 = vsel %vm1513, %v525, 0.0
          %v1530 = vsel %vm1514, %v526, 0.0
          %v1531 = vsel %vm1515, %v527, 0.0
          %v1532 = vsel %vm1516, %v528, 0.0
          %v1533 = vsel %vm1517, %v529, 0.0
          %v1534 = vsel %vm1518, %v530, 0.0
          %v1535 = vsel %vm1519, %v531, 0.0
          %v1536 = vsel %vm1520, %v532, 0.0
          %v1537 = vadd.f32 %v1521, %v1523
          %v1538 = vadd.f32 %v1537, %v1525
          %v1539 = vadd.f32 %v1538, %v1527
          %v1540 = vadd.f32 %v1539, %v1529
          %v1541 = vadd.f32 %v1540, %v1531
          %v1542 = vadd.f32 %v1541, %v1533
          %v1543 = vadd.f32 %v1542, %v1535
          %v1544 = vrot.slane %v1543, 4
          %v1545 = vadd.f32 %v1543, %v1544
          %v1546 = vrot.slane %v1545, 2
          %v1547 = vadd.f32 %v1545, %v1546
          %v1548 = vrot.slane %v1547, 1
          %v1549 = vadd.f32 %v1547, %v1548
          %v1550 = vadd.f32 %v1522, %v1524
          %v1551 = vadd.f32 %v1550, %v1526
          %v1552 = vadd.f32 %v1551, %v1528
          %v1553 = vadd.f32 %v1552, %v1530
          %v1554 = vadd.f32 %v1553, %v1532
          %v1555 = vadd.f32 %v1554, %v1534
          %v1556 = vadd.f32 %v1555, %v1536
          %v1557 = vrot.slane %v1556, 4
          %v1558 = vadd.f32 %v1556, %v1557
          %v1559 = vrot.slane %v1558, 2
          %v1560 = vadd.f32 %v1558, %v1559
          %v1561 = vrot.slane %v1560, 1
          %v1562 = vadd.f32 %v1560, %v1561
          %v1563 = vadd.s32 %v817, %v1481
          %v1564 = vadd.s32 %v817, %v1504
          %v1565 = vsel %vm1425, %v1563, 4294967295
          %v1566 = vsel %vm1426, %v1564, 4294967295
          %v1567 = vcombine.low %v1565, %v1566
          %v1569 = vunpack.c.l.s4 1966171168
          %v1570 = vunpack.c.0.s8 %v1569
          %v1571 = vlaneseq
          %v1572 = vshrl.u32 %v1571, 7
          %v1573 = vsub.s32 %v1570, %v1572
          %v1574 = vrot.slane %v1567, %v1573
          %v1576 = vunpack.c.l.s4 1966171168
          %v1577 = vunpack.c.0.s8 %v1576
          %v1578 = vlaneseq
          %v1579 = vshrl.u32 %v1578, 7
          %v1580 = vsub.s32 %v1577, %v1579
          %v1581 = vrot.slane %v1574, %v1580
          %s1582 = scalar_lea.vmem %s269, 3 [#allocation5]
          %1583 = vst.msk [vmem:[%s1582] ss:$8 sm:$0x3] %vm840, %v1581
          %1584 = vst.msk [vmem:[%s1582] ss:$8 sm:$0x0] %vm840, %v1581
          %v1585 = vsel %vm1425, %v1411, -1.0
          %v1586 = vsel %vm1426, %v1424, -1.0
          %v1589 = vcombine.low %v1585, %v1586
          %v1591 = vunpack.c.l.s4 1966171168
          %v1592 = vunpack.c.0.s8 %v1591
          %v1593 = vlaneseq
          %v1594 = vshrl.u32 %v1593, 7
          %v1595 = vsub.s32 %v1592, %v1594
          %v1596 = vrot.slane %v1589, %v1595
          %v1598 = vunpack.c.l.s4 1966171168
          %v1599 = vunpack.c.0.s8 %v1598
          %v1600 = vlaneseq
          %v1601 = vshrl.u32 %v1600, 7
          %v1602 = vsub.s32 %v1599, %v1601
          %v1603 = vrot.slane %v1596, %v1602
          %s1605 = scalar_lea.vmem %s276, 3 [#allocation6]
          %1606 = vst.msk [vmem:[%s1605] ss:$8 sm:$0x3] %vm840, %v1603
          %1607 = vst.msk [vmem:[%s1605] ss:$8 sm:$0x0] %vm840, %v1603
          %v1608 = vsel %vm1425, %v1549, -1.0
          %v1609 = vsel %vm1426, %v1562, -1.0
          %v1612 = vcombine.low %v1608, %v1609
          %v1614 = vunpack.c.l.s4 1966171168
          %v1615 = vunpack.c.0.s8 %v1614
          %v1616 = vlaneseq
          %v1617 = vshrl.u32 %v1616, 7
          %v1618 = vsub.s32 %v1615, %v1617
          %v1619 = vrot.slane %v1612, %v1618
          %v1621 = vunpack.c.l.s4 1966171168
          %v1622 = vunpack.c.0.s8 %v1621
          %v1623 = vlaneseq
          %v1624 = vshrl.u32 %v1623, 7
          %v1625 = vsub.s32 %v1622, %v1624
          %v1626 = vrot.slane %v1619, %v1625
          %s1628 = scalar_lea.vmem %s283, 3 [#allocation8]
          %1629 = vst.msk [vmem:[%s1628] ss:$8 sm:$0x3] %vm840, %v1626
          %1630 = vst.msk [vmem:[%s1628] ss:$8 sm:$0x0] %vm840, %v1626
          %v1631 = vsel %vm1505, 1e+30, %v1383
          %v1632 = vsel %vm1506, 1e+30, %v1384
          %v1633 = vsel %vm1507, 1e+30, %v1385
          %v1634 = vsel %vm1508, 1e+30, %v1386
          %v1635 = vsel %vm1509, 1e+30, %v1387
          %v1636 = vsel %vm1510, 1e+30, %v1388
          %v1637 = vsel %vm1511, 1e+30, %v1389
          %v1638 = vsel %vm1512, 1e+30, %v1390
          %v1639 = vsel %vm1513, 1e+30, %v1391
          %v1640 = vsel %vm1514, 1e+30, %v1392
          %v1641 = vsel %vm1515, 1e+30, %v1393
          %v1642 = vsel %vm1516, 1e+30, %v1394
          %v1643 = vsel %vm1517, 1e+30, %v1395
          %v1644 = vsel %vm1518, 1e+30, %v1396
          %v1645 = vsel %vm1519, 1e+30, %v1397
          %v1646 = vsel %vm1520, 1e+30, %v1398
          %v1647 = vmin.f32 %v1631, %v1635
          %v1648 = vmin.f32 %v1633, %v1637
          %v1649 = vmin.f32 %v1647, %v1639
          %v1650 = vmin.f32 %v1648, %v1641
          %v1651 = vmin.f32 %v1649, %v1643
          %v1652 = vmin.f32 %v1650, %v1645
          %v1653 = vmin.f32 %v1651, %v1652
          %v1654 = vrot.slane %v1653, 4
          %v1655 = vmin.f32 %v1653, %v1654
          %v1656 = vrot.slane %v1655, 2
          %v1657 = vmin.f32 %v1655, %v1656
          %v1658 = vrot.slane %v1657, 1
          %v1659 = vmin.f32 %v1657, %v1658
          %v1660 = vmin.f32 %v1632, %v1636
          %v1661 = vmin.f32 %v1634, %v1638
          %v1662 = vmin.f32 %v1660, %v1640
          %v1663 = vmin.f32 %v1661, %v1642
          %v1664 = vmin.f32 %v1662, %v1644
          %v1665 = vmin.f32 %v1663, %v1646
          %v1666 = vmin.f32 %v1664, %v1665
          %v1667 = vrot.slane %v1666, 4
          %v1668 = vmin.f32 %v1666, %v1667
          %v1669 = vrot.slane %v1668, 2
          %v1670 = vmin.f32 %v1668, %v1669
          %v1671 = vrot.slane %v1670, 1
          %v1672 = vmin.f32 %v1670, %v1671
          %vm1673 = vcmp.lt.f32.partialorder %v1659, 1e+30
          %vm1674 = vcmp.lt.f32.partialorder %v1672, 1e+30
          %vm1675 = vcmp.eq.f32.partialorder %v1631, %v1659
          %vm1676 = vcmp.eq.f32.partialorder %v1632, %v1672
          %vm1677 = vcmp.eq.f32.partialorder %v1633, %v1659
          %vm1678 = vcmp.eq.f32.partialorder %v1634, %v1672
          %vm1679 = vcmp.eq.f32.partialorder %v1635, %v1659
          %vm1680 = vcmp.eq.f32.partialorder %v1636, %v1672
          %vm1681 = vcmp.eq.f32.partialorder %v1637, %v1659
          %vm1682 = vcmp.eq.f32.partialorder %v1638, %v1672
          %vm1683 = vcmp.eq.f32.partialorder %v1639, %v1659
          %vm1684 = vcmp.eq.f32.partialorder %v1640, %v1672
          %vm1685 = vcmp.eq.f32.partialorder %v1641, %v1659
          %vm1686 = vcmp.eq.f32.partialorder %v1642, %v1672
          %vm1687 = vcmp.eq.f32.partialorder %v1643, %v1659
          %vm1688 = vcmp.eq.f32.partialorder %v1644, %v1672
          %vm1689 = vcmp.eq.f32.partialorder %v1645, %v1659
          %vm1690 = vcmp.eq.f32.partialorder %v1646, %v1672
          %v1691 = vsel %vm1675, %v323, 64
          %v1692 = vsel %vm1676, %v323, 64
          %v1693 = vsel %vm1677, %v324, 64
          %v1694 = vsel %vm1678, %v324, 64
          %v1695 = vsel %vm1679, %v325, 64
          %v1696 = vsel %vm1680, %v325, 64
          %v1697 = vsel %vm1681, %v326, 64
          %v1698 = vsel %vm1682, %v326, 64
          %v1699 = vsel %vm1683, %v327, 64
          %v1700 = vsel %vm1684, %v327, 64
          %v1701 = vsel %vm1685, %v328, 64
          %v1702 = vsel %vm1686, %v328, 64
          %v1703 = vsel %vm1687, %v329, 64
          %v1704 = vsel %vm1688, %v329, 64
          %v1705 = vsel %vm1689, %v330, 64
          %v1706 = vsel %vm1690, %v330, 64
          %vm1707 = vcmp.lt.s32.totalorder %v1691, %v1695
          %v1708 = vsel %vm1707, %v1691, %v1695
          %vm1709 = vcmp.lt.s32.totalorder %v1693, %v1697
          %v1710 = vsel %vm1709, %v1693, %v1697
          %vm1711 = vcmp.lt.s32.totalorder %v1708, %v1699
          %v1712 = vsel %vm1711, %v1708, %v1699
          %vm1713 = vcmp.lt.s32.totalorder %v1710, %v1701
          %v1714 = vsel %vm1713, %v1710, %v1701
          %vm1715 = vcmp.lt.s32.totalorder %v1712, %v1703
          %v1716 = vsel %vm1715, %v1712, %v1703
          %vm1717 = vcmp.lt.s32.totalorder %v1714, %v1705
          %v1718 = vsel %vm1717, %v1714, %v1705
          %vm1719 = vcmp.lt.s32.totalorder %v1716, %v1718
          %v1720 = vsel %vm1719, %v1716, %v1718
          %v1721 = vrot.slane %v1720, 4
          %vm1722 = vcmp.lt.s32.totalorder %v1720, %v1721
          %v1723 = vsel %vm1722, %v1720, %v1721
          %v1724 = vrot.slane %v1723, 2
          %vm1725 = vcmp.lt.s32.totalorder %v1723, %v1724
          %v1726 = vsel %vm1725, %v1723, %v1724
          %v1727 = vrot.slane %v1726, 1
          %vm1728 = vcmp.lt.s32.totalorder %v1726, %v1727
          %v1729 = vsel %vm1728, %v1726, %v1727
          %vm1730 = vcmp.lt.s32.totalorder %v1692, %v1696
          %v1731 = vsel %vm1730, %v1692, %v1696
          %vm1732 = vcmp.lt.s32.totalorder %v1694, %v1698
          %v1733 = vsel %vm1732, %v1694, %v1698
          %vm1734 = vcmp.lt.s32.totalorder %v1731, %v1700
          %v1735 = vsel %vm1734, %v1731, %v1700
          %vm1736 = vcmp.lt.s32.totalorder %v1733, %v1702
          %v1737 = vsel %vm1736, %v1733, %v1702
          %vm1738 = vcmp.lt.s32.totalorder %v1735, %v1704
          %v1739 = vsel %vm1738, %v1735, %v1704
          %vm1740 = vcmp.lt.s32.totalorder %v1737, %v1706
          %v1741 = vsel %vm1740, %v1737, %v1706
          %vm1742 = vcmp.lt.s32.totalorder %v1739, %v1741
          %v1743 = vsel %vm1742, %v1739, %v1741
          %v1744 = vrot.slane %v1743, 4
          %vm1745 = vcmp.lt.s32.totalorder %v1743, %v1744
          %v1746 = vsel %vm1745, %v1743, %v1744
          %v1747 = vrot.slane %v1746, 2
          %vm1748 = vcmp.lt.s32.totalorder %v1746, %v1747
          %v1749 = vsel %vm1748, %v1746, %v1747
          %v1750 = vrot.slane %v1749, 1
          %vm1751 = vcmp.lt.s32.totalorder %v1749, %v1750
          %v1752 = vsel %vm1751, %v1749, %v1750
          %vm1753 = vcmp.eq.s32.totalorder %v323, %v1729
          %vm1754 = vcmp.eq.s32.totalorder %v323, %v1752
          %vm1755 = vcmp.eq.s32.totalorder %v324, %v1729
          %vm1756 = vcmp.eq.s32.totalorder %v324, %v1752
          %vm1757 = vcmp.eq.s32.totalorder %v325, %v1729
          %vm1758 = vcmp.eq.s32.totalorder %v325, %v1752
          %vm1759 = vcmp.eq.s32.totalorder %v326, %v1729
          %vm1760 = vcmp.eq.s32.totalorder %v326, %v1752
          %vm1761 = vcmp.eq.s32.totalorder %v327, %v1729
          %vm1762 = vcmp.eq.s32.totalorder %v327, %v1752
          %vm1763 = vcmp.eq.s32.totalorder %v328, %v1729
          %vm1764 = vcmp.eq.s32.totalorder %v328, %v1752
          %vm1765 = vcmp.eq.s32.totalorder %v329, %v1729
          %vm1766 = vcmp.eq.s32.totalorder %v329, %v1752
          %vm1767 = vcmp.eq.s32.totalorder %v330, %v1729
          %vm1768 = vcmp.eq.s32.totalorder %v330, %v1752
          %v1769 = vsel %vm1753, %v517, 0.0
          %v1770 = vsel %vm1754, %v518, 0.0
          %v1771 = vsel %vm1755, %v519, 0.0
          %v1772 = vsel %vm1756, %v520, 0.0
          %v1773 = vsel %vm1757, %v521, 0.0
          %v1774 = vsel %vm1758, %v522, 0.0
          %v1775 = vsel %vm1759, %v523, 0.0
          %v1776 = vsel %vm1760, %v524, 0.0
          %v1777 = vsel %vm1761, %v525, 0.0
          %v1778 = vsel %vm1762, %v526, 0.0
          %v1779 = vsel %vm1763, %v527, 0.0
          %v1780 = vsel %vm1764, %v528, 0.0
          %v1781 = vsel %vm1765, %v529, 0.0
          %v1782 = vsel %vm1766, %v530, 0.0
          %v1783 = vsel %vm1767, %v531, 0.0
          %v1784 = vsel %vm1768, %v532, 0.0
          %v1785 = vadd.f32 %v1769, %v1771
          %v1786 = vadd.f32 %v1785, %v1773
          %v1787 = vadd.f32 %v1786, %v1775
          %v1788 = vadd.f32 %v1787, %v1777
          %v1789 = vadd.f32 %v1788, %v1779
          %v1790 = vadd.f32 %v1789, %v1781
          %v1791 = vadd.f32 %v1790, %v1783
          %v1792 = vrot.slane %v1791, 4
          %v1793 = vadd.f32 %v1791, %v1792
          %v1794 = vrot.slane %v1793, 2
          %v1795 = vadd.f32 %v1793, %v1794
          %v1796 = vrot.slane %v1795, 1
          %v1797 = vadd.f32 %v1795, %v1796
          %v1798 = vadd.f32 %v1770, %v1772
          %v1799 = vadd.f32 %v1798, %v1774
          %v1800 = vadd.f32 %v1799, %v1776
          %v1801 = vadd.f32 %v1800, %v1778
          %v1802 = vadd.f32 %v1801, %v1780
          %v1803 = vadd.f32 %v1802, %v1782
          %v1804 = vadd.f32 %v1803, %v1784
          %v1805 = vrot.slane %v1804, 4
          %v1806 = vadd.f32 %v1804, %v1805
          %v1807 = vrot.slane %v1806, 2
          %v1808 = vadd.f32 %v1806, %v1807
          %v1809 = vrot.slane %v1808, 1
          %v1810 = vadd.f32 %v1808, %v1809
          %v1811 = vadd.s32 %v817, %v1729
          %v1812 = vadd.s32 %v817, %v1752
          %v1813 = vsel %vm1673, %v1811, 4294967295
          %v1814 = vsel %vm1674, %v1812, 4294967295
          %v1815 = vcombine.low %v1813, %v1814
          %v1817 = vunpack.c.l.s4 1966171168
          %v1818 = vunpack.c.0.s8 %v1817
          %v1819 = vlaneseq
          %v1820 = vshrl.u32 %v1819, 7
          %v1821 = vsub.s32 %v1818, %v1820
          %v1822 = vrot.slane %v1815, %v1821
          %v1824 = vunpack.c.l.s4 1966171168
          %v1825 = vunpack.c.0.s8 %v1824
          %v1826 = vlaneseq
          %v1827 = vshrl.u32 %v1826, 7
          %v1828 = vsub.s32 %v1825, %v1827
          %v1829 = vrot.slane %v1822, %v1828
          %s1830 = scalar_lea.vmem %s269, 4 [#allocation5]
          %1831 = vst.msk [vmem:[%s1830] ss:$8 sm:$0x3] %vm840, %v1829
          %1832 = vst.msk [vmem:[%s1830] ss:$8 sm:$0x0] %vm840, %v1829
          %v1833 = vsel %vm1673, %v1659, -1.0
          %v1834 = vsel %vm1674, %v1672, -1.0
          %v1837 = vcombine.low %v1833, %v1834
          %v1839 = vunpack.c.l.s4 1966171168
          %v1840 = vunpack.c.0.s8 %v1839
          %v1841 = vlaneseq
          %v1842 = vshrl.u32 %v1841, 7
          %v1843 = vsub.s32 %v1840, %v1842
          %v1844 = vrot.slane %v1837, %v1843
          %v1846 = vunpack.c.l.s4 1966171168
          %v1847 = vunpack.c.0.s8 %v1846
          %v1848 = vlaneseq
          %v1849 = vshrl.u32 %v1848, 7
          %v1850 = vsub.s32 %v1847, %v1849
          %v1851 = vrot.slane %v1844, %v1850
          %s1853 = scalar_lea.vmem %s276, 4 [#allocation6]
          %1854 = vst.msk [vmem:[%s1853] ss:$8 sm:$0x3] %vm840, %v1851
          %1855 = vst.msk [vmem:[%s1853] ss:$8 sm:$0x0] %vm840, %v1851
          %v1856 = vsel %vm1673, %v1797, -1.0
          %v1857 = vsel %vm1674, %v1810, -1.0
          %v1860 = vcombine.low %v1856, %v1857
          %v1862 = vunpack.c.l.s4 1966171168
          %v1863 = vunpack.c.0.s8 %v1862
          %v1864 = vlaneseq
          %v1865 = vshrl.u32 %v1864, 7
          %v1866 = vsub.s32 %v1863, %v1865
          %v1867 = vrot.slane %v1860, %v1866
          %v1869 = vunpack.c.l.s4 1966171168
          %v1870 = vunpack.c.0.s8 %v1869
          %v1871 = vlaneseq
          %v1872 = vshrl.u32 %v1871, 7
          %v1873 = vsub.s32 %v1870, %v1872
          %v1874 = vrot.slane %v1867, %v1873
          %s1876 = scalar_lea.vmem %s283, 4 [#allocation8]
          %1877 = vst.msk [vmem:[%s1876] ss:$8 sm:$0x3] %vm840, %v1874
          %1878 = vst.msk [vmem:[%s1876] ss:$8 sm:$0x0] %vm840, %v1874
          %v1879 = vsel %vm1753, 1e+30, %v1631
          %v1880 = vsel %vm1754, 1e+30, %v1632
          %v1881 = vsel %vm1755, 1e+30, %v1633
          %v1882 = vsel %vm1756, 1e+30, %v1634
          %v1883 = vsel %vm1757, 1e+30, %v1635
          %v1884 = vsel %vm1758, 1e+30, %v1636
          %v1885 = vsel %vm1759, 1e+30, %v1637
          %v1886 = vsel %vm1760, 1e+30, %v1638
          %v1887 = vsel %vm1761, 1e+30, %v1639
          %v1888 = vsel %vm1762, 1e+30, %v1640
          %v1889 = vsel %vm1763, 1e+30, %v1641
          %v1890 = vsel %vm1764, 1e+30, %v1642
          %v1891 = vsel %vm1765, 1e+30, %v1643
          %v1892 = vsel %vm1766, 1e+30, %v1644
          %v1893 = vsel %vm1767, 1e+30, %v1645
          %v1894 = vsel %vm1768, 1e+30, %v1646
          %v1895 = vmin.f32 %v1879, %v1883
          %v1896 = vmin.f32 %v1881, %v1885
          %v1897 = vmin.f32 %v1895, %v1887
          %v1898 = vmin.f32 %v1896, %v1889
          %v1899 = vmin.f32 %v1897, %v1891
          %v1900 = vmin.f32 %v1898, %v1893
          %v1901 = vmin.f32 %v1899, %v1900
          %v1902 = vrot.slane %v1901, 4
          %v1903 = vmin.f32 %v1901, %v1902
          %v1904 = vrot.slane %v1903, 2
          %v1905 = vmin.f32 %v1903, %v1904
          %v1906 = vrot.slane %v1905, 1
          %v1907 = vmin.f32 %v1905, %v1906
          %v1908 = vmin.f32 %v1880, %v1884
          %v1909 = vmin.f32 %v1882, %v1886
          %v1910 = vmin.f32 %v1908, %v1888
          %v1911 = vmin.f32 %v1909, %v1890
          %v1912 = vmin.f32 %v1910, %v1892
          %v1913 = vmin.f32 %v1911, %v1894
          %v1914 = vmin.f32 %v1912, %v1913
          %v1915 = vrot.slane %v1914, 4
          %v1916 = vmin.f32 %v1914, %v1915
          %v1917 = vrot.slane %v1916, 2
          %v1918 = vmin.f32 %v1916, %v1917
          %v1919 = vrot.slane %v1918, 1
          %v1920 = vmin.f32 %v1918, %v1919
          %vm1921 = vcmp.lt.f32.partialorder %v1907, 1e+30
          %vm1922 = vcmp.lt.f32.partialorder %v1920, 1e+30
          %vm1923 = vcmp.eq.f32.partialorder %v1879, %v1907
          %vm1924 = vcmp.eq.f32.partialorder %v1880, %v1920
          %vm1925 = vcmp.eq.f32.partialorder %v1881, %v1907
          %vm1926 = vcmp.eq.f32.partialorder %v1882, %v1920
          %vm1927 = vcmp.eq.f32.partialorder %v1883, %v1907
          %vm1928 = vcmp.eq.f32.partialorder %v1884, %v1920
          %vm1929 = vcmp.eq.f32.partialorder %v1885, %v1907
          %vm1930 = vcmp.eq.f32.partialorder %v1886, %v1920
          %vm1931 = vcmp.eq.f32.partialorder %v1887, %v1907
          %vm1932 = vcmp.eq.f32.partialorder %v1888, %v1920
          %vm1933 = vcmp.eq.f32.partialorder %v1889, %v1907
          %vm1934 = vcmp.eq.f32.partialorder %v1890, %v1920
          %vm1935 = vcmp.eq.f32.partialorder %v1891, %v1907
          %vm1936 = vcmp.eq.f32.partialorder %v1892, %v1920
          %vm1937 = vcmp.eq.f32.partialorder %v1893, %v1907
          %vm1938 = vcmp.eq.f32.partialorder %v1894, %v1920
          %v1939 = vsel %vm1923, %v323, 64
          %v1940 = vsel %vm1924, %v323, 64
          %v1941 = vsel %vm1925, %v324, 64
          %v1942 = vsel %vm1926, %v324, 64
          %v1943 = vsel %vm1927, %v325, 64
          %v1944 = vsel %vm1928, %v325, 64
          %v1945 = vsel %vm1929, %v326, 64
          %v1946 = vsel %vm1930, %v326, 64
          %v1947 = vsel %vm1931, %v327, 64
          %v1948 = vsel %vm1932, %v327, 64
          %v1949 = vsel %vm1933, %v328, 64
          %v1950 = vsel %vm1934, %v328, 64
          %v1951 = vsel %vm1935, %v329, 64
          %v1952 = vsel %vm1936, %v329, 64
          %v1953 = vsel %vm1937, %v330, 64
          %v1954 = vsel %vm1938, %v330, 64
          %vm1955 = vcmp.lt.s32.totalorder %v1939, %v1943
          %v1956 = vsel %vm1955, %v1939, %v1943
          %vm1957 = vcmp.lt.s32.totalorder %v1941, %v1945
          %v1958 = vsel %vm1957, %v1941, %v1945
          %vm1959 = vcmp.lt.s32.totalorder %v1956, %v1947
          %v1960 = vsel %vm1959, %v1956, %v1947
          %vm1961 = vcmp.lt.s32.totalorder %v1958, %v1949
          %v1962 = vsel %vm1961, %v1958, %v1949
          %vm1963 = vcmp.lt.s32.totalorder %v1960, %v1951
          %v1964 = vsel %vm1963, %v1960, %v1951
          %vm1965 = vcmp.lt.s32.totalorder %v1962, %v1953
          %v1966 = vsel %vm1965, %v1962, %v1953
          %vm1967 = vcmp.lt.s32.totalorder %v1964, %v1966
          %v1968 = vsel %vm1967, %v1964, %v1966
          %v1969 = vrot.slane %v1968, 4
          %vm1970 = vcmp.lt.s32.totalorder %v1968, %v1969
          %v1971 = vsel %vm1970, %v1968, %v1969
          %v1972 = vrot.slane %v1971, 2
          %vm1973 = vcmp.lt.s32.totalorder %v1971, %v1972
          %v1974 = vsel %vm1973, %v1971, %v1972
          %v1975 = vrot.slane %v1974, 1
          %vm1976 = vcmp.lt.s32.totalorder %v1974, %v1975
          %v1977 = vsel %vm1976, %v1974, %v1975
          %vm1978 = vcmp.lt.s32.totalorder %v1940, %v1944
          %v1979 = vsel %vm1978, %v1940, %v1944
          %vm1980 = vcmp.lt.s32.totalorder %v1942, %v1946
          %v1981 = vsel %vm1980, %v1942, %v1946
          %vm1982 = vcmp.lt.s32.totalorder %v1979, %v1948
          %v1983 = vsel %vm1982, %v1979, %v1948
          %vm1984 = vcmp.lt.s32.totalorder %v1981, %v1950
          %v1985 = vsel %vm1984, %v1981, %v1950
          %vm1986 = vcmp.lt.s32.totalorder %v1983, %v1952
          %v1987 = vsel %vm1986, %v1983, %v1952
          %vm1988 = vcmp.lt.s32.totalorder %v1985, %v1954
          %v1989 = vsel %vm1988, %v1985, %v1954
          %vm1990 = vcmp.lt.s32.totalorder %v1987, %v1989
          %v1991 = vsel %vm1990, %v1987, %v1989
          %v1992 = vrot.slane %v1991, 4
          %vm1993 = vcmp.lt.s32.totalorder %v1991, %v1992
          %v1994 = vsel %vm1993, %v1991, %v1992
          %v1995 = vrot.slane %v1994, 2
          %vm1996 = vcmp.lt.s32.totalorder %v1994, %v1995
          %v1997 = vsel %vm1996, %v1994, %v1995
          %v1998 = vrot.slane %v1997, 1
          %vm1999 = vcmp.lt.s32.totalorder %v1997, %v1998
          %v2000 = vsel %vm1999, %v1997, %v1998
          %vm2001 = vcmp.eq.s32.totalorder %v323, %v1977
          %vm2002 = vcmp.eq.s32.totalorder %v323, %v2000
          %vm2003 = vcmp.eq.s32.totalorder %v324, %v1977
          %vm2004 = vcmp.eq.s32.totalorder %v324, %v2000
          %vm2005 = vcmp.eq.s32.totalorder %v325, %v1977
          %vm2006 = vcmp.eq.s32.totalorder %v325, %v2000
          %vm2007 = vcmp.eq.s32.totalorder %v326, %v1977
          %vm2008 = vcmp.eq.s32.totalorder %v326, %v2000
          %vm2009 = vcmp.eq.s32.totalorder %v327, %v1977
          %vm2010 = vcmp.eq.s32.totalorder %v327, %v2000
          %vm2011 = vcmp.eq.s32.totalorder %v328, %v1977
          %vm2012 = vcmp.eq.s32.totalorder %v328, %v2000
          %vm2013 = vcmp.eq.s32.totalorder %v329, %v1977
          %vm2014 = vcmp.eq.s32.totalorder %v329, %v2000
          %vm2015 = vcmp.eq.s32.totalorder %v330, %v1977
          %vm2016 = vcmp.eq.s32.totalorder %v330, %v2000
          %v2017 = vsel %vm2001, %v517, 0.0
          %v2018 = vsel %vm2002, %v518, 0.0
          %v2019 = vsel %vm2003, %v519, 0.0
          %v2020 = vsel %vm2004, %v520, 0.0
          %v2021 = vsel %vm2005, %v521, 0.0
          %v2022 = vsel %vm2006, %v522, 0.0
          %v2023 = vsel %vm2007, %v523, 0.0
          %v2024 = vsel %vm2008, %v524, 0.0
          %v2025 = vsel %vm2009, %v525, 0.0
          %v2026 = vsel %vm2010, %v526, 0.0
          %v2027 = vsel %vm2011, %v527, 0.0
          %v2028 = vsel %vm2012, %v528, 0.0
          %v2029 = vsel %vm2013, %v529, 0.0
          %v2030 = vsel %vm2014, %v530, 0.0
          %v2031 = vsel %vm2015, %v531, 0.0
          %v2032 = vsel %vm2016, %v532, 0.0
          %v2033 = vadd.f32 %v2017, %v2019
          %v2034 = vadd.f32 %v2033, %v2021
          %v2035 = vadd.f32 %v2034, %v2023
          %v2036 = vadd.f32 %v2035, %v2025
          %v2037 = vadd.f32 %v2036, %v2027
          %v2038 = vadd.f32 %v2037, %v2029
          %v2039 = vadd.f32 %v2038, %v2031
          %v2040 = vrot.slane %v2039, 4
          %v2041 = vadd.f32 %v2039, %v2040
          %v2042 = vrot.slane %v2041, 2
          %v2043 = vadd.f32 %v2041, %v2042
          %v2044 = vrot.slane %v2043, 1
          %v2045 = vadd.f32 %v2043, %v2044
          %v2046 = vadd.f32 %v2018, %v2020
          %v2047 = vadd.f32 %v2046, %v2022
          %v2048 = vadd.f32 %v2047, %v2024
          %v2049 = vadd.f32 %v2048, %v2026
          %v2050 = vadd.f32 %v2049, %v2028
          %v2051 = vadd.f32 %v2050, %v2030
          %v2052 = vadd.f32 %v2051, %v2032
          %v2053 = vrot.slane %v2052, 4
          %v2054 = vadd.f32 %v2052, %v2053
          %v2055 = vrot.slane %v2054, 2
          %v2056 = vadd.f32 %v2054, %v2055
          %v2057 = vrot.slane %v2056, 1
          %v2058 = vadd.f32 %v2056, %v2057
          %v2059 = vadd.s32 %v817, %v1977
          %v2060 = vadd.s32 %v817, %v2000
          %v2061 = vsel %vm1921, %v2059, 4294967295
          %v2062 = vsel %vm1922, %v2060, 4294967295
          %v2063 = vcombine.low %v2061, %v2062
          %v2065 = vunpack.c.l.s4 1966171168
          %v2066 = vunpack.c.0.s8 %v2065
          %v2067 = vlaneseq
          %v2068 = vshrl.u32 %v2067, 7
          %v2069 = vsub.s32 %v2066, %v2068
          %v2070 = vrot.slane %v2063, %v2069
          %v2072 = vunpack.c.l.s4 1966171168
          %v2073 = vunpack.c.0.s8 %v2072
          %v2074 = vlaneseq
          %v2075 = vshrl.u32 %v2074, 7
          %v2076 = vsub.s32 %v2073, %v2075
          %v2077 = vrot.slane %v2070, %v2076
          %s2078 = scalar_lea.vmem %s269, 5 [#allocation5]
          %2079 = vst.msk [vmem:[%s2078] ss:$8 sm:$0x3] %vm840, %v2077
          %2080 = vst.msk [vmem:[%s2078] ss:$8 sm:$0x0] %vm840, %v2077
          %v2081 = vsel %vm1921, %v1907, -1.0
          %v2082 = vsel %vm1922, %v1920, -1.0
          %v2085 = vcombine.low %v2081, %v2082
          %v2087 = vunpack.c.l.s4 1966171168
          %v2088 = vunpack.c.0.s8 %v2087
          %v2089 = vlaneseq
          %v2090 = vshrl.u32 %v2089, 7
          %v2091 = vsub.s32 %v2088, %v2090
          %v2092 = vrot.slane %v2085, %v2091
          %v2094 = vunpack.c.l.s4 1966171168
          %v2095 = vunpack.c.0.s8 %v2094
          %v2096 = vlaneseq
          %v2097 = vshrl.u32 %v2096, 7
          %v2098 = vsub.s32 %v2095, %v2097
          %v2099 = vrot.slane %v2092, %v2098
          %s2101 = scalar_lea.vmem %s276, 5 [#allocation6]
          %2102 = vst.msk [vmem:[%s2101] ss:$8 sm:$0x3] %vm840, %v2099
          %2103 = vst.msk [vmem:[%s2101] ss:$8 sm:$0x0] %vm840, %v2099
          %v2104 = vsel %vm1921, %v2045, -1.0
          %v2105 = vsel %vm1922, %v2058, -1.0
          %v2108 = vcombine.low %v2104, %v2105
          %v2110 = vunpack.c.l.s4 1966171168
          %v2111 = vunpack.c.0.s8 %v2110
          %v2112 = vlaneseq
          %v2113 = vshrl.u32 %v2112, 7
          %v2114 = vsub.s32 %v2111, %v2113
          %v2115 = vrot.slane %v2108, %v2114
          %v2117 = vunpack.c.l.s4 1966171168
          %v2118 = vunpack.c.0.s8 %v2117
          %v2119 = vlaneseq
          %v2120 = vshrl.u32 %v2119, 7
          %v2121 = vsub.s32 %v2118, %v2120
          %v2122 = vrot.slane %v2115, %v2121
          %s2124 = scalar_lea.vmem %s283, 5 [#allocation8]
          %2125 = vst.msk [vmem:[%s2124] ss:$8 sm:$0x3] %vm840, %v2122
          %2126 = vst.msk [vmem:[%s2124] ss:$8 sm:$0x0] %vm840, %v2122
          %v2127 = vsel %vm2001, 1e+30, %v1879
          %v2128 = vsel %vm2002, 1e+30, %v1880
          %v2129 = vsel %vm2003, 1e+30, %v1881
          %v2130 = vsel %vm2004, 1e+30, %v1882
          %v2131 = vsel %vm2005, 1e+30, %v1883
          %v2132 = vsel %vm2006, 1e+30, %v1884
          %v2133 = vsel %vm2007, 1e+30, %v1885
          %v2134 = vsel %vm2008, 1e+30, %v1886
          %v2135 = vsel %vm2009, 1e+30, %v1887
          %v2136 = vsel %vm2010, 1e+30, %v1888
          %v2137 = vsel %vm2011, 1e+30, %v1889
          %v2138 = vsel %vm2012, 1e+30, %v1890
          %v2139 = vsel %vm2013, 1e+30, %v1891
          %v2140 = vsel %vm2014, 1e+30, %v1892
          %v2141 = vsel %vm2015, 1e+30, %v1893
          %v2142 = vsel %vm2016, 1e+30, %v1894
          %v2143 = vmin.f32 %v2127, %v2131
          %v2144 = vmin.f32 %v2129, %v2133
          %v2145 = vmin.f32 %v2143, %v2135
          %v2146 = vmin.f32 %v2144, %v2137
          %v2147 = vmin.f32 %v2145, %v2139
          %v2148 = vmin.f32 %v2146, %v2141
          %v2149 = vmin.f32 %v2147, %v2148
          %v2150 = vrot.slane %v2149, 4
          %v2151 = vmin.f32 %v2149, %v2150
          %v2152 = vrot.slane %v2151, 2
          %v2153 = vmin.f32 %v2151, %v2152
          %v2154 = vrot.slane %v2153, 1
          %v2155 = vmin.f32 %v2153, %v2154
          %v2156 = vmin.f32 %v2128, %v2132
          %v2157 = vmin.f32 %v2130, %v2134
          %v2158 = vmin.f32 %v2156, %v2136
          %v2159 = vmin.f32 %v2157, %v2138
          %v2160 = vmin.f32 %v2158, %v2140
          %v2161 = vmin.f32 %v2159, %v2142
          %v2162 = vmin.f32 %v2160, %v2161
          %v2163 = vrot.slane %v2162, 4
          %v2164 = vmin.f32 %v2162, %v2163
          %v2165 = vrot.slane %v2164, 2
          %v2166 = vmin.f32 %v2164, %v2165
          %v2167 = vrot.slane %v2166, 1
          %v2168 = vmin.f32 %v2166, %v2167
          %vm2169 = vcmp.lt.f32.partialorder %v2155, 1e+30
          %vm2170 = vcmp.lt.f32.partialorder %v2168, 1e+30
          %vm2171 = vcmp.eq.f32.partialorder %v2127, %v2155
          %vm2172 = vcmp.eq.f32.partialorder %v2128, %v2168
          %vm2173 = vcmp.eq.f32.partialorder %v2129, %v2155
          %vm2174 = vcmp.eq.f32.partialorder %v2130, %v2168
          %vm2175 = vcmp.eq.f32.partialorder %v2131, %v2155
          %vm2176 = vcmp.eq.f32.partialorder %v2132, %v2168
          %vm2177 = vcmp.eq.f32.partialorder %v2133, %v2155
          %vm2178 = vcmp.eq.f32.partialorder %v2134, %v2168
          %vm2179 = vcmp.eq.f32.partialorder %v2135, %v2155
          %vm2180 = vcmp.eq.f32.partialorder %v2136, %v2168
          %vm2181 = vcmp.eq.f32.partialorder %v2137, %v2155
          %vm2182 = vcmp.eq.f32.partialorder %v2138, %v2168
          %vm2183 = vcmp.eq.f32.partialorder %v2139, %v2155
          %vm2184 = vcmp.eq.f32.partialorder %v2140, %v2168
          %vm2185 = vcmp.eq.f32.partialorder %v2141, %v2155
          %vm2186 = vcmp.eq.f32.partialorder %v2142, %v2168
          %v2187 = vsel %vm2171, %v323, 64
          %v2188 = vsel %vm2172, %v323, 64
          %v2189 = vsel %vm2173, %v324, 64
          %v2190 = vsel %vm2174, %v324, 64
          %v2191 = vsel %vm2175, %v325, 64
          %v2192 = vsel %vm2176, %v325, 64
          %v2193 = vsel %vm2177, %v326, 64
          %v2194 = vsel %vm2178, %v326, 64
          %v2195 = vsel %vm2179, %v327, 64
          %v2196 = vsel %vm2180, %v327, 64
          %v2197 = vsel %vm2181, %v328, 64
          %v2198 = vsel %vm2182, %v328, 64
          %v2199 = vsel %vm2183, %v329, 64
          %v2200 = vsel %vm2184, %v329, 64
          %v2201 = vsel %vm2185, %v330, 64
          %v2202 = vsel %vm2186, %v330, 64
          %vm2203 = vcmp.lt.s32.totalorder %v2187, %v2191
          %v2204 = vsel %vm2203, %v2187, %v2191
          %vm2205 = vcmp.lt.s32.totalorder %v2189, %v2193
          %v2206 = vsel %vm2205, %v2189, %v2193
          %vm2207 = vcmp.lt.s32.totalorder %v2204, %v2195
          %v2208 = vsel %vm2207, %v2204, %v2195
          %vm2209 = vcmp.lt.s32.totalorder %v2206, %v2197
          %v2210 = vsel %vm2209, %v2206, %v2197
          %vm2211 = vcmp.lt.s32.totalorder %v2208, %v2199
          %v2212 = vsel %vm2211, %v2208, %v2199
          %vm2213 = vcmp.lt.s32.totalorder %v2210, %v2201
          %v2214 = vsel %vm2213, %v2210, %v2201
          %vm2215 = vcmp.lt.s32.totalorder %v2212, %v2214
          %v2216 = vsel %vm2215, %v2212, %v2214
          %v2217 = vrot.slane %v2216, 4
          %vm2218 = vcmp.lt.s32.totalorder %v2216, %v2217
          %v2219 = vsel %vm2218, %v2216, %v2217
          %v2220 = vrot.slane %v2219, 2
          %vm2221 = vcmp.lt.s32.totalorder %v2219, %v2220
          %v2222 = vsel %vm2221, %v2219, %v2220
          %v2223 = vrot.slane %v2222, 1
          %vm2224 = vcmp.lt.s32.totalorder %v2222, %v2223
          %v2225 = vsel %vm2224, %v2222, %v2223
          %vm2226 = vcmp.lt.s32.totalorder %v2188, %v2192
          %v2227 = vsel %vm2226, %v2188, %v2192
          %vm2228 = vcmp.lt.s32.totalorder %v2190, %v2194
          %v2229 = vsel %vm2228, %v2190, %v2194
          %vm2230 = vcmp.lt.s32.totalorder %v2227, %v2196
          %v2231 = vsel %vm2230, %v2227, %v2196
          %vm2232 = vcmp.lt.s32.totalorder %v2229, %v2198
          %v2233 = vsel %vm2232, %v2229, %v2198
          %vm2234 = vcmp.lt.s32.totalorder %v2231, %v2200
          %v2235 = vsel %vm2234, %v2231, %v2200
          %vm2236 = vcmp.lt.s32.totalorder %v2233, %v2202
          %v2237 = vsel %vm2236, %v2233, %v2202
          %vm2238 = vcmp.lt.s32.totalorder %v2235, %v2237
          %v2239 = vsel %vm2238, %v2235, %v2237
          %v2240 = vrot.slane %v2239, 4
          %vm2241 = vcmp.lt.s32.totalorder %v2239, %v2240
          %v2242 = vsel %vm2241, %v2239, %v2240
          %v2243 = vrot.slane %v2242, 2
          %vm2244 = vcmp.lt.s32.totalorder %v2242, %v2243
          %v2245 = vsel %vm2244, %v2242, %v2243
          %v2246 = vrot.slane %v2245, 1
          %vm2247 = vcmp.lt.s32.totalorder %v2245, %v2246
          %v2248 = vsel %vm2247, %v2245, %v2246
          %vm2249 = vcmp.eq.s32.totalorder %v323, %v2225
          %vm2250 = vcmp.eq.s32.totalorder %v323, %v2248
          %vm2251 = vcmp.eq.s32.totalorder %v324, %v2225
          %vm2252 = vcmp.eq.s32.totalorder %v324, %v2248
          %vm2253 = vcmp.eq.s32.totalorder %v325, %v2225
          %vm2254 = vcmp.eq.s32.totalorder %v325, %v2248
          %vm2255 = vcmp.eq.s32.totalorder %v326, %v2225
          %vm2256 = vcmp.eq.s32.totalorder %v326, %v2248
          %vm2257 = vcmp.eq.s32.totalorder %v327, %v2225
          %vm2258 = vcmp.eq.s32.totalorder %v327, %v2248
          %vm2259 = vcmp.eq.s32.totalorder %v328, %v2225
          %vm2260 = vcmp.eq.s32.totalorder %v328, %v2248
          %vm2261 = vcmp.eq.s32.totalorder %v329, %v2225
          %vm2262 = vcmp.eq.s32.totalorder %v329, %v2248
          %vm2263 = vcmp.eq.s32.totalorder %v330, %v2225
          %vm2264 = vcmp.eq.s32.totalorder %v330, %v2248
          %v2265 = vsel %vm2249, %v517, 0.0
          %v2266 = vsel %vm2250, %v518, 0.0
          %v2267 = vsel %vm2251, %v519, 0.0
          %v2268 = vsel %vm2252, %v520, 0.0
          %v2269 = vsel %vm2253, %v521, 0.0
          %v2270 = vsel %vm2254, %v522, 0.0
          %v2271 = vsel %vm2255, %v523, 0.0
          %v2272 = vsel %vm2256, %v524, 0.0
          %v2273 = vsel %vm2257, %v525, 0.0
          %v2274 = vsel %vm2258, %v526, 0.0
          %v2275 = vsel %vm2259, %v527, 0.0
          %v2276 = vsel %vm2260, %v528, 0.0
          %v2277 = vsel %vm2261, %v529, 0.0
          %v2278 = vsel %vm2262, %v530, 0.0
          %v2279 = vsel %vm2263, %v531, 0.0
          %v2280 = vsel %vm2264, %v532, 0.0
          %v2281 = vadd.f32 %v2265, %v2267
          %v2282 = vadd.f32 %v2281, %v2269
          %v2283 = vadd.f32 %v2282, %v2271
          %v2284 = vadd.f32 %v2283, %v2273
          %v2285 = vadd.f32 %v2284, %v2275
          %v2286 = vadd.f32 %v2285, %v2277
          %v2287 = vadd.f32 %v2286, %v2279
          %v2288 = vrot.slane %v2287, 4
          %v2289 = vadd.f32 %v2287, %v2288
          %v2290 = vrot.slane %v2289, 2
          %v2291 = vadd.f32 %v2289, %v2290
          %v2292 = vrot.slane %v2291, 1
          %v2293 = vadd.f32 %v2291, %v2292
          %v2294 = vadd.f32 %v2266, %v2268
          %v2295 = vadd.f32 %v2294, %v2270
          %v2296 = vadd.f32 %v2295, %v2272
          %v2297 = vadd.f32 %v2296, %v2274
          %v2298 = vadd.f32 %v2297, %v2276
          %v2299 = vadd.f32 %v2298, %v2278
          %v2300 = vadd.f32 %v2299, %v2280
          %v2301 = vrot.slane %v2300, 4
          %v2302 = vadd.f32 %v2300, %v2301
          %v2303 = vrot.slane %v2302, 2
          %v2304 = vadd.f32 %v2302, %v2303
          %v2305 = vrot.slane %v2304, 1
          %v2306 = vadd.f32 %v2304, %v2305
          %v2307 = vadd.s32 %v817, %v2225
          %v2308 = vadd.s32 %v817, %v2248
          %v2309 = vsel %vm2169, %v2307, 4294967295
          %v2310 = vsel %vm2170, %v2308, 4294967295
          %v2311 = vcombine.low %v2309, %v2310
          %v2313 = vunpack.c.l.s4 1966171168
          %v2314 = vunpack.c.0.s8 %v2313
          %v2315 = vlaneseq
          %v2316 = vshrl.u32 %v2315, 7
          %v2317 = vsub.s32 %v2314, %v2316
          %v2318 = vrot.slane %v2311, %v2317
          %v2320 = vunpack.c.l.s4 1966171168
          %v2321 = vunpack.c.0.s8 %v2320
          %v2322 = vlaneseq
          %v2323 = vshrl.u32 %v2322, 7
          %v2324 = vsub.s32 %v2321, %v2323
          %v2325 = vrot.slane %v2318, %v2324
          %s2326 = scalar_lea.vmem %s269, 6 [#allocation5]
          %2327 = vst.msk [vmem:[%s2326] ss:$8 sm:$0x3] %vm840, %v2325
          %2328 = vst.msk [vmem:[%s2326] ss:$8 sm:$0x0] %vm840, %v2325
          %v2329 = vsel %vm2169, %v2155, -1.0
          %v2330 = vsel %vm2170, %v2168, -1.0
          %v2333 = vcombine.low %v2329, %v2330
          %v2335 = vunpack.c.l.s4 1966171168
          %v2336 = vunpack.c.0.s8 %v2335
          %v2337 = vlaneseq
          %v2338 = vshrl.u32 %v2337, 7
          %v2339 = vsub.s32 %v2336, %v2338
          %v2340 = vrot.slane %v2333, %v2339
          %v2342 = vunpack.c.l.s4 1966171168
          %v2343 = vunpack.c.0.s8 %v2342
          %v2344 = vlaneseq
          %v2345 = vshrl.u32 %v2344, 7
          %v2346 = vsub.s32 %v2343, %v2345
          %v2347 = vrot.slane %v2340, %v2346
          %s2349 = scalar_lea.vmem %s276, 6 [#allocation6]
          %2350 = vst.msk [vmem:[%s2349] ss:$8 sm:$0x3] %vm840, %v2347
          %2351 = vst.msk [vmem:[%s2349] ss:$8 sm:$0x0] %vm840, %v2347
          %v2352 = vsel %vm2169, %v2293, -1.0
          %v2353 = vsel %vm2170, %v2306, -1.0
          %v2356 = vcombine.low %v2352, %v2353
          %v2358 = vunpack.c.l.s4 1966171168
          %v2359 = vunpack.c.0.s8 %v2358
          %v2360 = vlaneseq
          %v2361 = vshrl.u32 %v2360, 7
          %v2362 = vsub.s32 %v2359, %v2361
          %v2363 = vrot.slane %v2356, %v2362
          %v2365 = vunpack.c.l.s4 1966171168
          %v2366 = vunpack.c.0.s8 %v2365
          %v2367 = vlaneseq
          %v2368 = vshrl.u32 %v2367, 7
          %v2369 = vsub.s32 %v2366, %v2368
          %v2370 = vrot.slane %v2363, %v2369
          %s2372 = scalar_lea.vmem %s283, 6 [#allocation8]
          %2373 = vst.msk [vmem:[%s2372] ss:$8 sm:$0x3] %vm840, %v2370
          %2374 = vst.msk [vmem:[%s2372] ss:$8 sm:$0x0] %vm840, %v2370
          %v2375 = vsel %vm2249, 1e+30, %v2127
          %v2376 = vsel %vm2250, 1e+30, %v2128
          %v2377 = vsel %vm2251, 1e+30, %v2129
          %v2378 = vsel %vm2252, 1e+30, %v2130
          %v2379 = vsel %vm2253, 1e+30, %v2131
          %v2380 = vsel %vm2254, 1e+30, %v2132
          %v2381 = vsel %vm2255, 1e+30, %v2133
          %v2382 = vsel %vm2256, 1e+30, %v2134
          %v2383 = vsel %vm2257, 1e+30, %v2135
          %v2384 = vsel %vm2258, 1e+30, %v2136
          %v2385 = vsel %vm2259, 1e+30, %v2137
          %v2386 = vsel %vm2260, 1e+30, %v2138
          %v2387 = vsel %vm2261, 1e+30, %v2139
          %v2388 = vsel %vm2262, 1e+30, %v2140
          %v2389 = vsel %vm2263, 1e+30, %v2141
          %v2390 = vsel %vm2264, 1e+30, %v2142
          %v2391 = vmin.f32 %v2375, %v2379
          %v2392 = vmin.f32 %v2377, %v2381
          %v2393 = vmin.f32 %v2391, %v2383
          %v2394 = vmin.f32 %v2392, %v2385
          %v2395 = vmin.f32 %v2393, %v2387
          %v2396 = vmin.f32 %v2394, %v2389
          %v2397 = vmin.f32 %v2395, %v2396
          %v2398 = vrot.slane %v2397, 4
          %v2399 = vmin.f32 %v2397, %v2398
          %v2400 = vrot.slane %v2399, 2
          %v2401 = vmin.f32 %v2399, %v2400
          %v2402 = vrot.slane %v2401, 1
          %v2403 = vmin.f32 %v2401, %v2402
          %v2404 = vmin.f32 %v2376, %v2380
          %v2405 = vmin.f32 %v2378, %v2382
          %v2406 = vmin.f32 %v2404, %v2384
          %v2407 = vmin.f32 %v2405, %v2386
          %v2408 = vmin.f32 %v2406, %v2388
          %v2409 = vmin.f32 %v2407, %v2390
          %v2410 = vmin.f32 %v2408, %v2409
          %v2411 = vrot.slane %v2410, 4
          %v2412 = vmin.f32 %v2410, %v2411
          %v2413 = vrot.slane %v2412, 2
          %v2414 = vmin.f32 %v2412, %v2413
          %v2415 = vrot.slane %v2414, 1
          %v2416 = vmin.f32 %v2414, %v2415
          %vm2417 = vcmp.lt.f32.partialorder %v2403, 1e+30
          %vm2418 = vcmp.lt.f32.partialorder %v2416, 1e+30
          %vm2419 = vcmp.eq.f32.partialorder %v2375, %v2403
          %vm2420 = vcmp.eq.f32.partialorder %v2376, %v2416
          %vm2421 = vcmp.eq.f32.partialorder %v2377, %v2403
          %vm2422 = vcmp.eq.f32.partialorder %v2378, %v2416
          %vm2423 = vcmp.eq.f32.partialorder %v2379, %v2403
          %vm2424 = vcmp.eq.f32.partialorder %v2380, %v2416
          %vm2425 = vcmp.eq.f32.partialorder %v2381, %v2403
          %vm2426 = vcmp.eq.f32.partialorder %v2382, %v2416
          %vm2427 = vcmp.eq.f32.partialorder %v2383, %v2403
          %vm2428 = vcmp.eq.f32.partialorder %v2384, %v2416
          %vm2429 = vcmp.eq.f32.partialorder %v2385, %v2403
          %vm2430 = vcmp.eq.f32.partialorder %v2386, %v2416
          %vm2431 = vcmp.eq.f32.partialorder %v2387, %v2403
          %vm2432 = vcmp.eq.f32.partialorder %v2388, %v2416
          %vm2433 = vcmp.eq.f32.partialorder %v2389, %v2403
          %vm2434 = vcmp.eq.f32.partialorder %v2390, %v2416
          %v2435 = vsel %vm2419, %v323, 64
          %v2436 = vsel %vm2420, %v323, 64
          %v2437 = vsel %vm2421, %v324, 64
          %v2438 = vsel %vm2422, %v324, 64
          %v2439 = vsel %vm2423, %v325, 64
          %v2440 = vsel %vm2424, %v325, 64
          %v2441 = vsel %vm2425, %v326, 64
          %v2442 = vsel %vm2426, %v326, 64
          %v2443 = vsel %vm2427, %v327, 64
          %v2444 = vsel %vm2428, %v327, 64
          %v2445 = vsel %vm2429, %v328, 64
          %v2446 = vsel %vm2430, %v328, 64
          %v2447 = vsel %vm2431, %v329, 64
          %v2448 = vsel %vm2432, %v329, 64
          %v2449 = vsel %vm2433, %v330, 64
          %v2450 = vsel %vm2434, %v330, 64
          %vm2451 = vcmp.lt.s32.totalorder %v2435, %v2439
          %v2452 = vsel %vm2451, %v2435, %v2439
          %vm2453 = vcmp.lt.s32.totalorder %v2437, %v2441
          %v2454 = vsel %vm2453, %v2437, %v2441
          %vm2455 = vcmp.lt.s32.totalorder %v2452, %v2443
          %v2456 = vsel %vm2455, %v2452, %v2443
          %vm2457 = vcmp.lt.s32.totalorder %v2454, %v2445
          %v2458 = vsel %vm2457, %v2454, %v2445
          %vm2459 = vcmp.lt.s32.totalorder %v2456, %v2447
          %v2460 = vsel %vm2459, %v2456, %v2447
          %vm2461 = vcmp.lt.s32.totalorder %v2458, %v2449
          %v2462 = vsel %vm2461, %v2458, %v2449
          %vm2463 = vcmp.lt.s32.totalorder %v2460, %v2462
          %v2464 = vsel %vm2463, %v2460, %v2462
          %v2465 = vrot.slane %v2464, 4
          %vm2466 = vcmp.lt.s32.totalorder %v2464, %v2465
          %v2467 = vsel %vm2466, %v2464, %v2465
          %v2468 = vrot.slane %v2467, 2
          %vm2469 = vcmp.lt.s32.totalorder %v2467, %v2468
          %v2470 = vsel %vm2469, %v2467, %v2468
          %v2471 = vrot.slane %v2470, 1
          %vm2472 = vcmp.lt.s32.totalorder %v2470, %v2471
          %v2473 = vsel %vm2472, %v2470, %v2471
          %vm2474 = vcmp.lt.s32.totalorder %v2436, %v2440
          %v2475 = vsel %vm2474, %v2436, %v2440
          %vm2476 = vcmp.lt.s32.totalorder %v2438, %v2442
          %v2477 = vsel %vm2476, %v2438, %v2442
          %vm2478 = vcmp.lt.s32.totalorder %v2475, %v2444
          %v2479 = vsel %vm2478, %v2475, %v2444
          %vm2480 = vcmp.lt.s32.totalorder %v2477, %v2446
          %v2481 = vsel %vm2480, %v2477, %v2446
          %vm2482 = vcmp.lt.s32.totalorder %v2479, %v2448
          %v2483 = vsel %vm2482, %v2479, %v2448
          %vm2484 = vcmp.lt.s32.totalorder %v2481, %v2450
          %v2485 = vsel %vm2484, %v2481, %v2450
          %vm2486 = vcmp.lt.s32.totalorder %v2483, %v2485
          %v2487 = vsel %vm2486, %v2483, %v2485
          %v2488 = vrot.slane %v2487, 4
          %vm2489 = vcmp.lt.s32.totalorder %v2487, %v2488
          %v2490 = vsel %vm2489, %v2487, %v2488
          %v2491 = vrot.slane %v2490, 2
          %vm2492 = vcmp.lt.s32.totalorder %v2490, %v2491
          %v2493 = vsel %vm2492, %v2490, %v2491
          %v2494 = vrot.slane %v2493, 1
          %vm2495 = vcmp.lt.s32.totalorder %v2493, %v2494
          %v2496 = vsel %vm2495, %v2493, %v2494
          %vm2497 = vcmp.eq.s32.totalorder %v323, %v2473
          %vm2498 = vcmp.eq.s32.totalorder %v323, %v2496
          %vm2499 = vcmp.eq.s32.totalorder %v324, %v2473
          %vm2500 = vcmp.eq.s32.totalorder %v324, %v2496
          %vm2501 = vcmp.eq.s32.totalorder %v325, %v2473
          %vm2502 = vcmp.eq.s32.totalorder %v325, %v2496
          %vm2503 = vcmp.eq.s32.totalorder %v326, %v2473
          %vm2504 = vcmp.eq.s32.totalorder %v326, %v2496
          %vm2505 = vcmp.eq.s32.totalorder %v327, %v2473
          %vm2506 = vcmp.eq.s32.totalorder %v327, %v2496
          %vm2507 = vcmp.eq.s32.totalorder %v328, %v2473
          %vm2508 = vcmp.eq.s32.totalorder %v328, %v2496
          %vm2509 = vcmp.eq.s32.totalorder %v329, %v2473
          %vm2510 = vcmp.eq.s32.totalorder %v329, %v2496
          %vm2511 = vcmp.eq.s32.totalorder %v330, %v2473
          %vm2512 = vcmp.eq.s32.totalorder %v330, %v2496
          %v2513 = vsel %vm2497, %v517, 0.0
          %v2514 = vsel %vm2498, %v518, 0.0
          %v2515 = vsel %vm2499, %v519, 0.0
          %v2516 = vsel %vm2500, %v520, 0.0
          %v2517 = vsel %vm2501, %v521, 0.0
          %v2518 = vsel %vm2502, %v522, 0.0
          %v2519 = vsel %vm2503, %v523, 0.0
          %v2520 = vsel %vm2504, %v524, 0.0
          %v2521 = vsel %vm2505, %v525, 0.0
          %v2522 = vsel %vm2506, %v526, 0.0
          %v2523 = vsel %vm2507, %v527, 0.0
          %v2524 = vsel %vm2508, %v528, 0.0
          %v2525 = vsel %vm2509, %v529, 0.0
          %v2526 = vsel %vm2510, %v530, 0.0
          %v2527 = vsel %vm2511, %v531, 0.0
          %v2528 = vsel %vm2512, %v532, 0.0
          %v2529 = vadd.f32 %v2513, %v2515
          %v2530 = vadd.f32 %v2529, %v2517
          %v2531 = vadd.f32 %v2530, %v2519
          %v2532 = vadd.f32 %v2531, %v2521
          %v2533 = vadd.f32 %v2532, %v2523
          %v2534 = vadd.f32 %v2533, %v2525
          %v2535 = vadd.f32 %v2534, %v2527
          %v2536 = vrot.slane %v2535, 4
          %v2537 = vadd.f32 %v2535, %v2536
          %v2538 = vrot.slane %v2537, 2
          %v2539 = vadd.f32 %v2537, %v2538
          %v2540 = vrot.slane %v2539, 1
          %v2541 = vadd.f32 %v2539, %v2540
          %v2542 = vadd.f32 %v2514, %v2516
          %v2543 = vadd.f32 %v2542, %v2518
          %v2544 = vadd.f32 %v2543, %v2520
          %v2545 = vadd.f32 %v2544, %v2522
          %v2546 = vadd.f32 %v2545, %v2524
          %v2547 = vadd.f32 %v2546, %v2526
          %v2548 = vadd.f32 %v2547, %v2528
          %v2549 = vrot.slane %v2548, 4
          %v2550 = vadd.f32 %v2548, %v2549
          %v2551 = vrot.slane %v2550, 2
          %v2552 = vadd.f32 %v2550, %v2551
          %v2553 = vrot.slane %v2552, 1
          %v2554 = vadd.f32 %v2552, %v2553
          %v2555 = vadd.s32 %v817, %v2473
          %v2556 = vadd.s32 %v817, %v2496
          %v2557 = vsel %vm2417, %v2555, 4294967295
          %v2558 = vsel %vm2418, %v2556, 4294967295
          %v2559 = vcombine.low %v2557, %v2558
          %v2561 = vunpack.c.l.s4 1966171168
          %v2562 = vunpack.c.0.s8 %v2561
          %v2563 = vlaneseq
          %v2564 = vshrl.u32 %v2563, 7
          %v2565 = vsub.s32 %v2562, %v2564
          %v2566 = vrot.slane %v2559, %v2565
          %v2568 = vunpack.c.l.s4 1966171168
          %v2569 = vunpack.c.0.s8 %v2568
          %v2570 = vlaneseq
          %v2571 = vshrl.u32 %v2570, 7
          %v2572 = vsub.s32 %v2569, %v2571
          %v2573 = vrot.slane %v2566, %v2572
          %s2574 = scalar_lea.vmem %s269, 7 [#allocation5]
          %2575 = vst.msk [vmem:[%s2574] ss:$8 sm:$0x3] %vm840, %v2573
          %2576 = vst.msk [vmem:[%s2574] ss:$8 sm:$0x0] %vm840, %v2573
          %v2577 = vsel %vm2417, %v2403, -1.0
          %v2578 = vsel %vm2418, %v2416, -1.0
          %v2581 = vcombine.low %v2577, %v2578
          %v2583 = vunpack.c.l.s4 1966171168
          %v2584 = vunpack.c.0.s8 %v2583
          %v2585 = vlaneseq
          %v2586 = vshrl.u32 %v2585, 7
          %v2587 = vsub.s32 %v2584, %v2586
          %v2588 = vrot.slane %v2581, %v2587
          %v2590 = vunpack.c.l.s4 1966171168
          %v2591 = vunpack.c.0.s8 %v2590
          %v2592 = vlaneseq
          %v2593 = vshrl.u32 %v2592, 7
          %v2594 = vsub.s32 %v2591, %v2593
          %v2595 = vrot.slane %v2588, %v2594
          %s2597 = scalar_lea.vmem %s276, 7 [#allocation6]
          %2598 = vst.msk [vmem:[%s2597] ss:$8 sm:$0x3] %vm840, %v2595
          %2599 = vst.msk [vmem:[%s2597] ss:$8 sm:$0x0] %vm840, %v2595
          %v2600 = vsel %vm2417, %v2541, -1.0
          %v2601 = vsel %vm2418, %v2554, -1.0
          %v2604 = vcombine.low %v2600, %v2601
          %v2606 = vunpack.c.l.s4 1966171168
          %v2607 = vunpack.c.0.s8 %v2606
          %v2608 = vlaneseq
          %v2609 = vshrl.u32 %v2608, 7
          %v2610 = vsub.s32 %v2607, %v2609
          %v2611 = vrot.slane %v2604, %v2610
          %v2613 = vunpack.c.l.s4 1966171168
          %v2614 = vunpack.c.0.s8 %v2613
          %v2615 = vlaneseq
          %v2616 = vshrl.u32 %v2615, 7
          %v2617 = vsub.s32 %v2614, %v2616
          %v2618 = vrot.slane %v2611, %v2617
          %s2620 = scalar_lea.vmem %s283, 7 [#allocation8]
          %2621 = vst.msk [vmem:[%s2620] ss:$8 sm:$0x3] %vm840, %v2618
          %2622 = vst.msk [vmem:[%s2620] ss:$8 sm:$0x0] %vm840, %v2618
        $region44: #{tpu_custom_call.1} parent=31 // pred_fallthru
          _
        %s2623 = sand.u32 %s119, 1
        %s2624 = scalar_lea.sflag [#allocation3], %s2623
        %s2625 = sand.u32 %s119, 1
        %s2626 = smul.addr %s2625, 16
        %s2627 = scalar_lea.vmem [#allocation5], %s2626
        %s2628 = sand.u32 %s24, 1
        %s2629 = scalar_lea.sflag [#allocation7], %s2628
        %s2630 = sand.u32 %s147, 1
        %s2631 = smul.addr %s2630, 16
        %s2632 = scalar_lea.vmem [#allocation6], %s2631
        %s2633 = sand.u32 %s24, 1
        %s2634 = scalar_lea.sflag [#allocation7], %s2633
        %s2635 = sand.u32 %s175, 1
        %s2636 = smul.addr %s2635, 16
        %s2637 = scalar_lea.vmem [#allocation8], %s2636
        // Predicated region
        $region45: #{tpu_custom_call.1} parent=31 // pred_check
          %p2638 = pneg %p129
        $region46: #{tpu_custom_call.1} parent=31 // pred_check_branch
          %2640 = sbr.rel (%p2638) target = $region48
        $region47: #{tpu_custom_call.1} parent=31 // pred_region
          %s2641 = smul.u32 2, %s29
          %s2643 = ssub.s32 256, 256
          %2644 = vsyncadd %s2624, %s2643
          %s2645 = smul.addr %s28, 2
          %s2646 = sadd.s32 %s2641, %s2645
          %s2647 = smul.addr %s2646, 128
          %s2648 = scalar_lea.hbm %s3, %s2647
          %s2650 = sshll.u32 %s2627, 4
          %s2651 = int_to_ptr.vmem [resolvable:$true] %s2650
          %2653 = dma.vmem_to_hbm [thread:$0]  %s2651, 256, %s2648, %s2624
        $region48: #{tpu_custom_call.1} parent=31 // pred_fallthru
          _
        // Predicated region
        $region49: #{tpu_custom_call.1} parent=31 // pred_check
          %p2654 = pneg %p157
        $region50: #{tpu_custom_call.1} parent=31 // pred_check_branch
          %2656 = sbr.rel (%p2654) target = $region52
        $region51: #{tpu_custom_call.1} parent=31 // pred_region
          %s2657 = smul.u32 2, %s29
          %s2659 = ssub.s32 256, 256
          %2660 = vsyncadd %s2629, %s2659
          %s2661 = smul.addr %s28, 2
          %s2662 = sadd.s32 %s2657, %s2661
          %s2663 = smul.addr %s2662, 128
          %s2664 = scalar_lea.hbm %s4, %s2663
          %s2666 = sshll.u32 %s2632, 4
          %s2667 = int_to_ptr.vmem [resolvable:$true] %s2666
          %2669 = dma.vmem_to_hbm [thread:$0]  %s2667, 256, %s2664, %s2629
        $region52: #{tpu_custom_call.1} parent=31 // pred_fallthru
          _
        // Predicated region
        $region53: #{tpu_custom_call.1} parent=31 // pred_check
          %p2670 = pneg %p185
        $region54: #{tpu_custom_call.1} parent=31 // pred_check_branch
          %2672 = sbr.rel (%p2670) target = $region56
        $region55: #{tpu_custom_call.1} parent=31 // pred_region
          %s2673 = smul.u32 2, %s29
          %s2675 = ssub.s32 256, 256
          %2676 = vsyncadd %s2634, %s2675
          %s2677 = smul.addr %s28, 2
          %s2678 = sadd.s32 %s2673, %s2677
          %s2679 = smul.addr %s2678, 128
          %s2680 = scalar_lea.hbm %s5, %s2679
          %s2682 = sshll.u32 %s2637, 4
          %s2683 = int_to_ptr.vmem [resolvable:$true] %s2682
          %2685 = dma.vmem_to_hbm [thread:$0]  %s2683, 256, %s2680, %s2634
        $region56: #{tpu_custom_call.1} parent=31 // pred_fallthru
          _
      $region32: #{tpu_custom_call.1} parent=5 // pred_fallthru
        _
      %p2686 = scmp.le.s32.totalorder 2, %s19
      // Predicated region
      $region57: #{tpu_custom_call.1} parent=5 // pred_check
        %p2687 = pneg %p2686
      $region58: #{tpu_custom_call.1} parent=5 // pred_check_branch
        %2689 = sbr.rel (%p2687) target = $region60
      $region59: #{tpu_custom_call.1} parent=5 // pred_region
        %s2690 = ssub.s32 %s19, 2
        // Predicated region
        $region61: #{tpu_custom_call.1} parent=59 // pred_check
          %p2691 = pneg %p135
        $region62: #{tpu_custom_call.1} parent=59 // pred_check_branch
          %2693 = sbr.rel (%p2691) target = $region64
        $region63: #{tpu_custom_call.1} parent=59 // pred_region
          %s2694 = sand.u32 %s120, 1
          %s2695 = scalar_lea.sflag [#allocation3], %s2694
          %s2696 = sand.u32 %s120, 1
          %s2697 = smul.addr %s2696, 16
          %s2698 = scalar_lea.vmem [#allocation5], %s2697
          %2699 = dma.done %s2695, 256
        $region64: #{tpu_custom_call.1} parent=59 // pred_fallthru
          _
        // Predicated region
        $region65: #{tpu_custom_call.1} parent=59 // pred_check
          %p2700 = pneg %p163
        $region66: #{tpu_custom_call.1} parent=59 // pred_check_branch
          %2702 = sbr.rel (%p2700) target = $region68
        $region67: #{tpu_custom_call.1} parent=59 // pred_region
          %s2703 = sand.u32 %s25, 1
          %s2704 = scalar_lea.sflag [#allocation7], %s2703
          %s2705 = sand.u32 %s148, 1
          %s2706 = smul.addr %s2705, 16
          %s2707 = scalar_lea.vmem [#allocation6], %s2706
          %2708 = dma.done %s2704, 256
        $region68: #{tpu_custom_call.1} parent=59 // pred_fallthru
          _
        // Predicated region
        $region69: #{tpu_custom_call.1} parent=59 // pred_check
          %p2709 = pneg %p191
        $region70: #{tpu_custom_call.1} parent=59 // pred_check_branch
          %2711 = sbr.rel (%p2709) target = $region72
        $region71: #{tpu_custom_call.1} parent=59 // pred_region
          %s2712 = sand.u32 %s25, 1
          %s2713 = scalar_lea.sflag [#allocation7], %s2712
          %s2714 = sand.u32 %s176, 1
          %s2715 = smul.addr %s2714, 16
          %s2716 = scalar_lea.vmem [#allocation8], %s2715
          %2717 = dma.done %s2713, 256
        $region72: #{tpu_custom_call.1} parent=59 // pred_fallthru
          _
      $region60: #{tpu_custom_call.1} parent=5 // pred_fallthru
        _
    $region6: #{tpu_custom_call.1} parent=1 // loop_footer
      %s23 = sadd.s32 1, %s19
    $region7: #{tpu_custom_call.1} parent=1 // loop_footer_branch
      %18 = sbr.rel target = $region3
    $region8: #{tpu_custom_call.1} parent=1 // loop_exit
      _
    %2718 = vsyncpa [#allocation3], 1
    %s2719 = scalar_lea.sflag [#allocation3], 1
    %2720 = vsyncpa %s2719, 1
    %2721 = vsyncpa [#allocation7], 1
    %s2722 = scalar_lea.sflag [#allocation7], 1
    %2723 = vsyncpa %s2722, 1
    %2724 = vsyncpa [#allocation4], 1
    %s2725 = scalar_lea.sflag [#allocation4], 1
    %2726 = vsyncpa %s2725, 1

</llo_original>
